<compile_context>
chip_gen: v7x
topology: tpu7x:2x2x1
jax: 0.10.0
libtpu: 0.0.40
codegen_flags: <defaults>
</compile_context>

<pallas_src>
import functools

import numpy as np

import jax
import jax.numpy as jnp
from jax.experimental import pallas as pl
from jax.experimental.pallas import tpu as pltpu

VMEM = pltpu.MemorySpace.VMEM
LEAK = 0.01     # PyTorch leaky_relu default negative slope
EPS = 1e-5      # PyTorch BatchNorm2d default eps


def _rup8(v):
    return (v + 7) // 8 * 8


def _u_offsets(n):
    """Row offsets of the three packed transposed-conv upsample matrices."""
    o1 = 0
    o2 = _rup8(9 * n)
    o3 = o2 + _rup8(16 * n)
    return o1, o2, o3, o3 + 30 * n


# ----------------------------------------------------------------------------
# In-kernel building blocks
# ----------------------------------------------------------------------------
def _leaky(x):
    return jnp.where(x > 0, x, LEAK * x)


def _bn(x, proj, gamma, beta, count):
    """Training-mode BatchNorm on the (N*H, W*C) layout.  One projector dot
    turns the stacked [sum(x); sum(x^2)] (2, W*C) matrix into per-channel
    stats replicated across W; var = E[x^2] - mean^2 (biased)."""
    s = jnp.concatenate([jnp.sum(x, axis=0, keepdims=True),
                         jnp.sum(x * x, axis=0, keepdims=True)], axis=0)
    t = jnp.dot(s, proj, preferred_element_type=jnp.float32) * (1.0 / count)
    mean = t[0:1, :]
    var = t[1:2, :] - mean * mean
    return (x - mean) * jax.lax.rsqrt(var + EPS) * gamma + beta


def _conv_gather(x, xp_ref, n, hi, ho, pad):
    """Stage x (n*hi, wc) into a row-padded VMEM scratch and return the
    tap-concatenated gather G (n*ho, 3*wc) of a stride-2, k=3 forward conv.
    Replaces the 0/1 row-selector matmuls with static strided VMEM reads."""
    hp = xp_ref.shape[0] // n
    if pad:
        xp_ref[...] = jnp.zeros_like(xp_ref)
    for b in range(n):
        xp_ref[pl.ds(b * hp + pad, hi), :] = x[b * hi:(b + 1) * hi, :]
    taps = []
    for t in range(3):
        rows = [xp_ref[pl.ds(b * hp + t, ho, stride=2), :] for b in range(n)]
        taps.append(rows[0] if n == 1 else jnp.concatenate(rows, axis=0))
    return jnp.concatenate(taps, axis=1)


def _tconv_gather(zp, n, hz, ho):
    """zp holds zero-interleaved (stride-2 upsampled) input rows; each tap of
    the transposed conv is a contiguous row window of zp."""
    taps = []
    for t in range(3):
        off = 2 - t
        rows = [zp[b * hz + off:b * hz + off + ho, :] for b in range(n)]
        taps.append(rows[0] if n == 1 else jnp.concatenate(rows, axis=0))
    return jnp.concatenate(taps, axis=1)


# ----------------------------------------------------------------------------
# Fused encoder + decoder kernel
# ----------------------------------------------------------------------------
def _vae_kernel(x_ref, noise_ref, rows_ref, proj_ref, enc_r_ref, enc_w_ref,
                head_w_ref, dec_w1_ref, dec_w2_ref, dec_u_ref, dec_r_ref,
                o_ref, xp1_ref, xp2_ref, xp3_ref, *, n, latent):
    f32 = jnp.float32
    rows = rows_ref[...]

    def row(i, w):
        return rows[i:i + 1, 0:w]

    def dot(a, b):
        return jnp.dot(a, b, preferred_element_type=f32)

    # ------------------------------ encoder ------------------------------
    x = x_ref[...]                                                   # (n*28, 28)
    g = _conv_gather(x, xp1_ref, n, 28, 14, 1)                       # (n*14, 84)
    h = _leaky(dot(g, enc_r_ref[pl.ds(0, 84), :]) + row(0, 112))     # (n*14, 112)
    g = _conv_gather(h, xp2_ref, n, 14, 7, 1)                        # (n*7, 336)
    h = dot(g, enc_r_ref[pl.ds(88, 336), :]) + row(1, 112)           # (n*7, 112)
    h = _leaky(_bn(h, proj_ref[pl.ds(0, 112), :], row(2, 112), row(3, 112), n * 49))
    g = _conv_gather(h, xp3_ref, n, 7, 3, 0)                         # (n*3, 336)
    h = _leaky(dot(g, enc_r_ref[pl.ds(424, 336), pl.ds(0, 96)]) + row(4, 96))   # (n*3, 96)
    # torch.flatten(NCHW) re-ordered into the (n, 288) layout [h*96 + w*32 + c]
    flat = jnp.concatenate(
        [jnp.concatenate([h[b * 3 + r:b * 3 + r + 1, :] for r in range(3)], axis=1)
         for b in range(n)], axis=0)                                 # (n, 288)
    h = _leaky(dot(flat, enc_w_ref[...]) + row(5, 128))              # (n, 128)
    heads = dot(h, head_w_ref[...]) + row(6, 2 * latent)             # (n, 2L)
    mu = heads[:, 0:latent]
    sigma = jnp.exp(heads[:, latent:2 * latent])
    z = mu + sigma * noise_ref[...]                                  # (n, L)
    # TODO(synk): encoder.kl (scalar side attribute) is not part of the
    # module's forward return value and is omitted.

    # ------------------------------ decoder ------------------------------
    o1, o2, o3, _ = _u_offsets(n)
    h = jnp.maximum(dot(z, dec_w1_ref[...]) + row(7, 128), 0.0)      # (n, 128)
    f = jnp.maximum(dot(h, dec_w2_ref[...]) + row(8, 288), 0.0)      # (n, 288)
    bcat = jnp.concatenate([f[:, 0:96], f[:, 96:192], f[:, 192:288]], axis=0)   # (3n, 96)

    zp = dot(dec_u_ref[pl.ds(o1, 9 * n), pl.ds(0, 3 * n)], bcat)     # (9n, 96)
    y = dot(_tconv_gather(zp, n, 9, 7), dec_r_ref[pl.ds(0, 288), :]) + row(9, 112)
    y = jnp.maximum(_bn(y, proj_ref[pl.ds(0, 112), :],
                        row(10, 112), row(11, 112), n * 49), 0.0)    # (7n, 112)

    zp = dot(dec_u_ref[pl.ds(o2, 16 * n), pl.ds(0, 7 * n)], y)       # (16n, 112)
    y = dot(_tconv_gather(zp, n, 16, 14), dec_r_ref[pl.ds(288, 336), :]) + row(12, 112)
    y = jnp.maximum(_bn(y, proj_ref[pl.ds(112, 112), :],
                        row(13, 112), row(14, 112), n * 196), 0.0)   # (14n, 112)

    zp = dot(dec_u_ref[pl.ds(o3, 30 * n), pl.ds(0, 14 * n)], y)      # (30n, 112)
    y = dot(_tconv_gather(zp, n, 30, 28),
            dec_r_ref[pl.ds(624, 336), pl.ds(0, 28)]) + row(15, 28)  # (28n, 28)
    o_ref[...] = 1.0 / (1.0 + jnp.exp(-y))


# ----------------------------------------------------------------------------
# Init-time operand construction (all weight preprocessing hoisted here)
# ----------------------------------------------------------------------------
def _conv_rcat(w, transposed, stride, pad, wi, wo):
    """Stacked per-tap W-gather + channel-mixing matrix (3*wi*cin, wo*cout)."""
    w = np.asarray(w, np.float32)
    if transposed:              # PyTorch ConvTranspose2d weight (Cin, Cout, k, k)
        cin, cout, k, _ = w.shape
    else:                       # PyTorch Conv2d weight (Cout, Cin, k, k)
        cout, cin, k, _ = w.shape
    r = np.zeros((k, wi * cin, wo * cout), np.float32)
    for di in range(k):
        for iw in range(wi):
            for ow in range(wo):
                if transposed:
                    dj = ow - stride * iw + pad
                    if 0 <= dj < k:
                        r[di, iw * cin:(iw + 1) * cin,
                          ow * cout:(ow + 1) * cout] = w[:, :, di, dj]
                else:
                    dj = iw - stride * ow + pad
                    if 0 <= dj < k:
                        r[di, iw * cin:(iw + 1) * cin,
                          ow * cout:(ow + 1) * cout] = w[:, :, di, dj].T
    return r.reshape(k * wi * cin, wo * cout)


def _upsample_mat(n, hi, ho, stride, pad):
    """Block-diag 0/1 matrix placing input rows at strided positions of a
    (ho + 2)-row-per-batch staging; the 3 tconv taps become contiguous windows."""
    hz = ho + 2
    off = 2 - pad
    u = np.zeros((n * hz, n * hi), np.float32)
    for b in range(n):
        for ih in range(hi):
            u[b * hz + stride * ih + off, b * hi + ih] = 1.0
    return u


def _scat(n):
    """Unflatten row placement: stacked per-h blocks (3n, 96) -> (n*3, 96) layout."""
    s = np.zeros((n * 3, 3 * n), np.float32)
    for b in range(n):
        for h in range(3):
            s[b * 3 + h, h * n + b] = 1.0
    return s


def init_params(latent_dims, key):
    ks = jax.random.split(key, 32)
    it = iter(range(32))

    def w(shape, scale=0.1):
        return scale * jax.random.normal(ks[next(it)], shape, dtype=jnp.float32)

    p = {}
    # ---- encoder ----
    p["e_conv1_w"] = w((8, 1, 3, 3));       p["e_conv1_b"] = w((8,))
    p["e_conv2_w"] = w((16, 8, 3, 3));      p["e_conv2_b"] = w((16,))
    p["e_bn2_g"] = 1.0 + w((16,));          p["e_bn2_b"] = w((16,))
    p["e_conv3_w"] = w((32, 16, 3, 3));     p["e_conv3_b"] = w((32,))
    p["e_lin1_w"] = w((288, 128));          p["e_lin1_b"] = w((128,))
    p["e_lin2_w"] = w((128, latent_dims));  p["e_lin2_b"] = w((latent_dims,))
    p["e_lin3_w"] = w((128, latent_dims));  p["e_lin3_b"] = w((latent_dims,))
    # ---- decoder ----
    p["d_lin1_w"] = w((latent_dims, 128));  p["d_lin1_b"] = w((128,))
    p["d_lin2_w"] = w((128, 288));          p["d_lin2_b"] = w((288,))
    p["d_ct1_w"] = w((32, 16, 3, 3));       p["d_ct1_b"] = w((16,))   # (Cin,Cout,k,k)
    p["d_bn1_g"] = 1.0 + w((16,));          p["d_bn1_b"] = w((16,))
    p["d_ct2_w"] = w((16, 8, 3, 3));        p["d_ct2_b"] = w((8,))
    p["d_bn2_g"] = 1.0 + w((8,));           p["d_bn2_b"] = w((8,))
    p["d_ct3_w"] = w((8, 1, 3, 3));         p["d_ct3_b"] = w((1,))
    return p


def build_operands(p, n, latent):
    f = np.float32

    # ---- encoder conv R_cat stack (row offsets 0 / 88 / 424) ----
    enc_r = np.zeros((760, 112), f)
    enc_r[0:84, :] = _conv_rcat(p["e_conv1_w"], False, 2, 1, 28, 14)
    enc_r[88:424, :] = _conv_rcat(p["e_conv2_w"], False, 2, 1, 14, 7)
    enc_r[424:760, 0:96] = _conv_rcat(p["e_conv3_w"], False, 2, 0, 7, 3)

    # ---- decoder transposed-conv R_cat stack (0 / 288 / 624) ----
    dec_r = np.zeros((960, 112), f)
    dec_r[0:288, :] = _conv_rcat(p["d_ct1_w"], True, 2, 0, 3, 7)
    dec_r[288:624, :] = _conv_rcat(p["d_ct2_w"], True, 2, 1, 7, 14)
    dec_r[624:960, 0:28] = _conv_rcat(p["d_ct3_w"], True, 2, 1, 14, 28)

    # ---- flatten / unflatten permuted linear weights ----
    w1 = np.asarray(p["e_lin1_w"], f)                  # torch flatten index c*9+h*3+w
    w1p = np.zeros_like(w1)
    d2 = np.asarray(p["d_lin2_w"], f)
    d2p = np.zeros_like(d2)
    d2b = np.asarray(p["d_lin2_b"], f)
    d2bp = np.zeros((288,), f)
    for h in range(3):
        for ww in range(3):
            for c in range(32):
                src = c * 9 + h * 3 + ww
                dst = h * 96 + ww * 32 + c
                w1p[dst, :] = w1[src, :]
                d2p[:, dst] = d2[:, src]
                d2bp[dst] = d2b[src]
    head_w = np.concatenate([np.asarray(p["e_lin2_w"], f),
                             np.asarray(p["e_lin3_w"], f)], axis=1)   # (128, 2L)

    # ---- packed transposed-conv upsample matrices ----
    o1, o2, o3, tot = _u_offsets(n)
    dec_u = np.zeros((tot, 14 * n), f)
    dec_u[o1:o1 + 9 * n, 0:3 * n] = _upsample_mat(n, 3, 7, 2, 0) @ _scat(n)
    dec_u[o2:o2 + 16 * n, 0:7 * n] = _upsample_mat(n, 7, 14, 2, 1)
    dec_u[o3:o3 + 30 * n, 0:14 * n] = _upsample_mat(n, 14, 28, 2, 1)

    # ---- stacked BN channel-sum projectors ----
    proj = np.concatenate([np.kron(np.ones((7, 7), f), np.eye(16, dtype=f)),
                           np.kron(np.ones((14, 14), f), np.eye(8, dtype=f))], axis=0)

    # ---- all bias / BN-affine rows packed into one (16, 288) operand ----
    def trow(v, rep):
        return np.tile(np.asarray(v, f), rep)

    rows = np.zeros((16, 288), f)
    rows[0, :112] = trow(p["e_conv1_b"], 14)
    rows[1, :112] = trow(p["e_conv2_b"], 7)
    rows[2, :112] = trow(p["e_bn2_g"], 7)
    rows[3, :112] = trow(p["e_bn2_b"], 7)
    rows[4, :96] = trow(p["e_conv3_b"], 3)
    rows[5, :128] = np.asarray(p["e_lin1_b"], f)
    rows[6, :2 * latent] = np.concatenate([np.asarray(p["e_lin2_b"], f),
                                           np.asarray(p["e_lin3_b"], f)])
    rows[7, :128] = np.asarray(p["d_lin1_b"], f)
    rows[8, :288] = d2bp
    rows[9, :112] = trow(p["d_ct1_b"], 7)
    rows[10, :112] = trow(p["d_bn1_g"], 7)
    rows[11, :112] = trow(p["d_bn1_b"], 7)
    rows[12, :112] = trow(p["d_ct2_b"], 14)
    rows[13, :112] = trow(p["d_bn2_g"], 14)
    rows[14, :112] = trow(p["d_bn2_b"], 14)
    rows[15, :28] = trow(p["d_ct3_b"], 28)

    ops = (rows, proj, enc_r, w1p, head_w,
           np.asarray(p["d_lin1_w"], f), d2p, dec_u, dec_r)
    return tuple(jnp.asarray(a) for a in ops)


# ----------------------------------------------------------------------------
# Forward wrapper: ONE pallas_call per forward pass
# ----------------------------------------------------------------------------
def vae_nn_fwd(ops, x_nchw, noise):
    n = x_nchw.shape[0]
    latent = noise.shape[1]
    x2 = x_nchw.reshape(n * 28, 28).astype(jnp.float32)       # (N*H, W*C), Cin=1
    kernel = functools.partial(_vae_kernel, n=n, latent=latent)
    y2 = pl.pallas_call(
        kernel,
        out_shape=jax.ShapeDtypeStruct((n * 28, 28), jnp.float32),
        in_specs=[pl.BlockSpec(memory_space=VMEM)] * (2 + len(ops)),
        out_specs=pl.BlockSpec(memory_space=VMEM),
        scratch_shapes=[
            pltpu.VMEM((n * 29, 28), jnp.float32),     # conv1 row-padded staging
            pltpu.VMEM((n * 15, 112), jnp.float32),    # conv2 staging
            pltpu.VMEM((n * 7, 112), jnp.float32),     # conv3 staging
        ],
    )(x2, noise.astype(jnp.float32), *ops)
    # TODO(synk): a lane-dense (N, 784) output layout would avoid 28-lane masked
    # stores on v5e; negligible at this size, so the reshape stays in the wrapper.
    return y2.reshape(n, 1, 28, 28)


# ----------------------------------------------------------------------------
# Pure-JAX reference (mirrors the PyTorch module, training-mode BatchNorm)
# ----------------------------------------------------------------------------
def _reference_forward(p, x, noise):
    lrelu = lambda v: jnp.where(v > 0, v, LEAK * v)

    def conv(v, w, b, stride, pad):
        y = jax.lax.conv_general_dilated(
            v, w, (stride, stride), [(pad, pad), (pad, pad)],
            dimension_numbers=("NCHW", "OIHW", "NCHW"))
        return y + b.reshape(1, -1, 1, 1)

    def tconv(v, w, b, stride, pad, opad):
        k = w.shape[2]
        wf = jnp.transpose(w, (1, 0, 2, 3))[:, :, ::-1, ::-1]
        y = jax.lax.conv_general_dilated(
            v, wf, (1, 1), [(k - 1 - pad, k - 1 - pad + opad)] * 2,
            lhs_dilation=(stride, stride),
            dimension_numbers=("NCHW", "OIHW", "NCHW"))
        return y + b.reshape(1, -1, 1, 1)

    def bn(v, g, b):
        m = v.mean(axis=(0, 2, 3), keepdims=True)
        var = v.var(axis=(0, 2, 3), keepdims=True)
        return ((v - m) * jax.lax.rsqrt(var + EPS) * g.reshape(1, -1, 1, 1)
                + b.reshape(1, -1, 1, 1))

    h = lrelu(conv(x, p["e_conv1_w"], p["e_conv1_b"], 2, 1))
    h = lrelu(bn(conv(h, p["e_conv2_w"], p["e_conv2_b"], 2, 1),
                 p["e_bn2_g"], p["e_bn2_b"]))
    h = lrelu(conv(h, p["e_conv3_w"], p["e_conv3_b"], 2, 0))
    h = h.reshape(h.shape[0], -1)
    h = lrelu(h @ p["e_lin1_w"] + p["e_lin1_b"])
    mu = h @ p["e_lin2_w"] + p["e_lin2_b"]
    sigma = jnp.exp(h @ p["e_lin3_w"] + p["e_lin3_b"])
    z = mu + sigma * noise
    d = jnp.maximum(z @ p["d_lin1_w"] + p["d_lin1_b"], 0.0)
    d = jnp.maximum(d @ p["d_lin2_w"] + p["d_lin2_b"], 0.0)
    d = d.reshape(d.shape[0], 32, 3, 3)
    d = jnp.maximum(bn(tconv(d, p["d_ct1_w"], p["d_ct1_b"], 2, 0, 0),
                       p["d_bn1_g"], p["d_bn1_b"]), 0.0)
    d = jnp.maximum(bn(tconv(d, p["d_ct2_w"], p["d_ct2_b"], 2, 1, 1),
                       p["d_bn2_g"], p["d_bn2_b"]), 0.0)
    return jax.nn.sigmoid(tconv(d, p["d_ct3_w"], p["d_ct3_b"], 2, 1, 1))


# ----------------------------------------------------------------------------
if __name__ == "__main__":
    latent_dims = 4
    batch = 2

    key = jax.random.PRNGKey(0)
    k_params, k_x, k_noise = jax.random.split(key, 3)

    params = init_params(latent_dims, k_params)
    ops = build_operands(params, batch, latent_dims)

    x = jax.random.uniform(k_x, (batch, 1, 28, 28), dtype=jnp.float32)   # MNIST-like NCHW
    noise = jax.random.normal(k_noise, (batch, latent_dims), dtype=jnp.float32)

    fwd = jax.jit(vae_nn_fwd)
    x_hat = fwd(ops, x, noise)
    jax.block_until_ready(x_hat)

    assert x_hat.shape == (batch, 1, 28, 28), x_hat.shape
    assert bool(jnp.all(jnp.isfinite(x_hat)))
    assert bool(jnp.all((x_hat >= 0.0) & (x_hat <= 1.0)))   # sigmoid output range

    ref = _reference_forward(params, x, noise)
    np.testing.assert_allclose(np.asarray(x_hat), np.asarray(ref), atol=3e-2, rtol=0.0)

    print("KERNEL_OK")
</pallas_src>

<mosaic_0001>
module attributes {stable_mosaic.version = 11 : i64} {
  func.func @_vae_kernel(%arg0: memref<56x28xf32, #tpu.memory_space<vmem>>, %arg1: memref<2x4xf32, #tpu.memory_space<vmem>>, %arg2: memref<16x288xf32, #tpu.memory_space<vmem>>, %arg3: memref<224x112xf32, #tpu.memory_space<vmem>>, %arg4: memref<760x112xf32, #tpu.memory_space<vmem>>, %arg5: memref<288x128xf32, #tpu.memory_space<vmem>>, %arg6: memref<128x8xf32, #tpu.memory_space<vmem>>, %arg7: memref<4x128xf32, #tpu.memory_space<vmem>>, %arg8: memref<128x288xf32, #tpu.memory_space<vmem>>, %arg9: memref<116x28xf32, #tpu.memory_space<vmem>>, %arg10: memref<960x112xf32, #tpu.memory_space<vmem>>, %arg11: memref<56x28xf32, #tpu.memory_space<vmem>>, %arg12: memref<58x28xf32, #tpu.memory_space<vmem>>, %arg13: memref<30x112xf32, #tpu.memory_space<vmem>>, %arg14: memref<14x112xf32, #tpu.memory_space<vmem>>) attributes {dimension_semantics = [], scalar_prefetch = 0 : i64, scratch_operands = 3 : i64, tpu.core_type = #tpu.core_type<tc>} {
    %c0 = arith.constant 0 : index
    %c0_0 = arith.constant 0 : index
    %0 = vector.load %arg2[%c0, %c0_0] : memref<16x288xf32, #tpu.memory_space<vmem>>, vector<16x288xf32>
    %c0_1 = arith.constant 0 : index
    %c0_2 = arith.constant 0 : index
    %1 = vector.load %arg0[%c0_1, %c0_2] : memref<56x28xf32, #tpu.memory_space<vmem>>, vector<56x28xf32>
    %cst = arith.constant 0.000000e+00 : f32
    %2 = vector.broadcast %cst : f32 to vector<58x28xf32>
    %c0_3 = arith.constant 0 : index
    %c0_4 = arith.constant 0 : index
    %3 = vector.load %arg12[%c0_3, %c0_4] : memref<58x28xf32, #tpu.memory_space<vmem>>, vector<58x28xf32>
    tpu.vector_store %arg12[%c0_3, %c0_4], %2 {strides = array<i32>} : memref<58x28xf32, #tpu.memory_space<vmem>>, vector<58x28xf32>,
    %4 = vector.extract_strided_slice %1 {offsets = [0, 0], sizes = [28, 28], strides = [1, 1]} : vector<56x28xf32> to vector<28x28xf32>
    %c1 = arith.constant 1 : index
    %c0_5 = arith.constant 0 : index
    %5 = vector.load %arg12[%c1, %c0_5] : memref<58x28xf32, #tpu.memory_space<vmem>>, vector<28x28xf32>
    tpu.vector_store %arg12[%c1, %c0_5], %4 {strides = array<i32>} : memref<58x28xf32, #tpu.memory_space<vmem>>, vector<28x28xf32>,
    %6 = vector.extract_strided_slice %1 {offsets = [28, 0], sizes = [28, 28], strides = [1, 1]} : vector<56x28xf32> to vector<28x28xf32>
    %c30 = arith.constant 30 : index
    %c0_6 = arith.constant 0 : index
    %7 = vector.load %arg12[%c30, %c0_6] : memref<58x28xf32, #tpu.memory_space<vmem>>, vector<28x28xf32>
    tpu.vector_store %arg12[%c30, %c0_6], %6 {strides = array<i32>} : memref<58x28xf32, #tpu.memory_space<vmem>>, vector<28x28xf32>,
    %c0_7 = arith.constant 0 : index
    %c0_8 = arith.constant 0 : index
    %8 = tpu.strided_load %arg12[%c0_7, %c0_8] {strides = array<i32: 2, 1>} : memref<58x28xf32, #tpu.memory_space<vmem>>, vector<14x28xf32>
    %c29 = arith.constant 29 : index
    %c0_9 = arith.constant 0 : index
    %9 = tpu.strided_load %arg12[%c29, %c0_9] {strides = array<i32: 2, 1>} : memref<58x28xf32, #tpu.memory_space<vmem>>, vector<14x28xf32>
    %10 = tpu.concatenate %8, %9 in 0 : vector<14x28xf32>, vector<14x28xf32> -> vector<28x28xf32>
    %c1_10 = arith.constant 1 : index
    %c0_11 = arith.constant 0 : index
    %11 = tpu.strided_load %arg12[%c1_10, %c0_11] {strides = array<i32: 2, 1>} : memref<58x28xf32, #tpu.memory_space<vmem>>, vector<14x28xf32>
    %c30_12 = arith.constant 30 : index
    %c0_13 = arith.constant 0 : index
    %12 = tpu.strided_load %arg12[%c30_12, %c0_13] {strides = array<i32: 2, 1>} : memref<58x28xf32, #tpu.memory_space<vmem>>, vector<14x28xf32>
    %13 = tpu.concatenate %11, %12 in 0 : vector<14x28xf32>, vector<14x28xf32> -> vector<28x28xf32>
    %c2 = arith.constant 2 : index
    %c0_14 = arith.constant 0 : index
    %14 = tpu.strided_load %arg12[%c2, %c0_14] {strides = array<i32: 2, 1>} : memref<58x28xf32, #tpu.memory_space<vmem>>, vector<14x28xf32>
    %c31 = arith.constant 31 : index
    %c0_15 = arith.constant 0 : index
    %15 = tpu.strided_load %arg12[%c31, %c0_15] {strides = array<i32: 2, 1>} : memref<58x28xf32, #tpu.memory_space<vmem>>, vector<14x28xf32>
    %16 = tpu.concatenate %14, %15 in 0 : vector<14x28xf32>, vector<14x28xf32> -> vector<28x28xf32>
    %17 = tpu.concatenate %10, %13, %16 in 1 : vector<28x28xf32>, vector<28x28xf32>, vector<28x28xf32> -> vector<28x84xf32>
    %c0_16 = arith.constant 0 : index
    %c0_17 = arith.constant 0 : index
    %18 = vector.load %arg4[%c0_16, %c0_17] : memref<760x112xf32, #tpu.memory_space<vmem>>, vector<84x112xf32>
    %cst_18 = arith.constant dense<0.000000e+00> : vector<28x112xf32>
    %19 = tpu.matmul %17, %18, %cst_18 {dimension_numbers = #tpu.dot_dimension_numbers<[1], [0], [0], [1], [0, 0, 1, 1], [], []>} : vector<28x84xf32>, vector<84x112xf32>, vector<28x112xf32> -> vector<28x112xf32>
    %20 = vector.extract_strided_slice %0 {offsets = [0, 0], sizes = [1, 112], strides = [1, 1]} : vector<16x288xf32> to vector<1x112xf32>
    %21 = vector.broadcast %20 : vector<1x112xf32> to vector<28x112xf32>
    %22 = arith.addf %19, %21 : vector<28x112xf32>
    %cst_19 = arith.constant 0.000000e+00 : f32
    %23 = vector.broadcast %cst_19 : f32 to vector<28x112xf32>
    %24 = arith.cmpf ogt, %22, %23 : vector<28x112xf32>
    %cst_20 = arith.constant 0.00999999977 : f32
    %25 = vector.broadcast %cst_20 : f32 to vector<28x112xf32>
    %26 = arith.mulf %25, %22 : vector<28x112xf32>
    %27 = arith.select %24, %22, %26 : vector<28x112xi1>, vector<28x112xf32>
    %cst_21 = arith.constant 0.000000e+00 : f32
    %28 = vector.broadcast %cst_21 : f32 to vector<30x112xf32>
    %c0_22 = arith.constant 0 : index
    %c0_23 = arith.constant 0 : index
    %29 = vector.load %arg13[%c0_22, %c0_23] : memref<30x112xf32, #tpu.memory_space<vmem>>, vector<30x112xf32>
    tpu.vector_store %arg13[%c0_22, %c0_23], %28 {strides = array<i32>} : memref<30x112xf32, #tpu.memory_space<vmem>>, vector<30x112xf32>,
    %30 = vector.extract_strided_slice %27 {offsets = [0, 0], sizes = [14, 112], strides = [1, 1]} : vector<28x112xf32> to vector<14x112xf32>
    %c1_24 = arith.constant 1 : index
    %c0_25 = arith.constant 0 : index
    %31 = vector.load %arg13[%c1_24, %c0_25] : memref<30x112xf32, #tpu.memory_space<vmem>>, vector<14x112xf32>
    tpu.vector_store %arg13[%c1_24, %c0_25], %30 {strides = array<i32>} : memref<30x112xf32, #tpu.memory_space<vmem>>, vector<14x112xf32>,
    %32 = vector.extract_strided_slice %27 {offsets = [14, 0], sizes = [14, 112], strides = [1, 1]} : vector<28x112xf32> to vector<14x112xf32>
    %c16 = arith.constant 16 : index
    %c0_26 = arith.constant 0 : index
    %33 = vector.load %arg13[%c16, %c0_26] : memref<30x112xf32, #tpu.memory_space<vmem>>, vector<14x112xf32>
    tpu.vector_store %arg13[%c16, %c0_26], %32 {strides = array<i32>} : memref<30x112xf32, #tpu.memory_space<vmem>>, vector<14x112xf32>,
    %c0_27 = arith.constant 0 : index
    %c0_28 = arith.constant 0 : index
    %34 = tpu.strided_load %arg13[%c0_27, %c0_28] {strides = array<i32: 2, 1>} : memref<30x112xf32, #tpu.memory_space<vmem>>, vector<7x112xf32>
    %c15 = arith.constant 15 : index
    %c0_29 = arith.constant 0 : index
    %35 = tpu.strided_load %arg13[%c15, %c0_29] {strides = array<i32: 2, 1>} : memref<30x112xf32, #tpu.memory_space<vmem>>, vector<7x112xf32>
    %36 = tpu.concatenate %34, %35 in 0 : vector<7x112xf32>, vector<7x112xf32> -> vector<14x112xf32>
    %c1_30 = arith.constant 1 : index
    %c0_31 = arith.constant 0 : index
    %37 = tpu.strided_load %arg13[%c1_30, %c0_31] {strides = array<i32: 2, 1>} : memref<30x112xf32, #tpu.memory_space<vmem>>, vector<7x112xf32>
    %c16_32 = arith.constant 16 : index
    %c0_33 = arith.constant 0 : index
    %38 = tpu.strided_load %arg13[%c16_32, %c0_33] {strides = array<i32: 2, 1>} : memref<30x112xf32, #tpu.memory_space<vmem>>, vector<7x112xf32>
    %39 = tpu.concatenate %37, %38 in 0 : vector<7x112xf32>, vector<7x112xf32> -> vector<14x112xf32>
    %c2_34 = arith.constant 2 : index
    %c0_35 = arith.constant 0 : index
    %40 = tpu.strided_load %arg13[%c2_34, %c0_35] {strides = array<i32: 2, 1>} : memref<30x112xf32, #tpu.memory_space<vmem>>, vector<7x112xf32>
    %c17 = arith.constant 17 : index
    %c0_36 = arith.constant 0 : index
    %41 = tpu.strided_load %arg13[%c17, %c0_36] {strides = array<i32: 2, 1>} : memref<30x112xf32, #tpu.memory_space<vmem>>, vector<7x112xf32>
    %42 = tpu.concatenate %40, %41 in 0 : vector<7x112xf32>, vector<7x112xf32> -> vector<14x112xf32>
    %43 = tpu.concatenate %36, %39, %42 in 1 : vector<14x112xf32>, vector<14x112xf32>, vector<14x112xf32> -> vector<14x336xf32>
    %c88 = arith.constant 88 : index
    %c0_37 = arith.constant 0 : index
    %44 = vector.load %arg4[%c88, %c0_37] : memref<760x112xf32, #tpu.memory_space<vmem>>, vector<336x112xf32>
    %cst_38 = arith.constant dense<0.000000e+00> : vector<14x112xf32>
    %45 = tpu.matmul %43, %44, %cst_38 {dimension_numbers = #tpu.dot_dimension_numbers<[1], [0], [0], [1], [0, 0, 1, 1], [], []>} : vector<14x336xf32>, vector<336x112xf32>, vector<14x112xf32> -> vector<14x112xf32>
    %46 = vector.extract_strided_slice %0 {offsets = [1, 0], sizes = [1, 112], strides = [1, 1]} : vector<16x288xf32> to vector<1x112xf32>
    %47 = vector.broadcast %46 : vector<1x112xf32> to vector<14x112xf32>
    %48 = arith.addf %45, %47 : vector<14x112xf32>
    %c0_39 = arith.constant 0 : index
    %c0_40 = arith.constant 0 : index
    %49 = vector.load %arg3[%c0_39, %c0_40] : memref<224x112xf32, #tpu.memory_space<vmem>>, vector<112x112xf32>
    %50 = vector.extract_strided_slice %0 {offsets = [2, 0], sizes = [1, 112], strides = [1, 1]} : vector<16x288xf32> to vector<1x112xf32>
    %51 = vector.extract_strided_slice %0 {offsets = [3, 0], sizes = [1, 112], strides = [1, 1]} : vector<16x288xf32> to vector<1x112xf32>
    %cst_41 = arith.constant dense<0.000000e+00> : vector<112xf32>
    %52 = vector.multi_reduction <add>, %48, %cst_41 [0] : vector<14x112xf32> to vector<112xf32>
    %53 = vector.shape_cast %52 : vector<112xf32> to vector<1x112xf32>
    %54 = arith.mulf %48, %48 : vector<14x112xf32>
    %cst_42 = arith.constant dense<0.000000e+00> : vector<112xf32>
    %55 = vector.multi_reduction <add>, %54, %cst_42 [0] : vector<14x112xf32> to vector<112xf32>
    %56 = vector.shape_cast %55 : vector<112xf32> to vector<1x112xf32>
    %57 = tpu.concatenate %53, %56 in 0 : vector<1x112xf32>, vector<1x112xf32> -> vector<2x112xf32>
    %cst_43 = arith.constant dense<0.000000e+00> : vector<2x112xf32>
    %58 = tpu.matmul %57, %49, %cst_43 {dimension_numbers = #tpu.dot_dimension_numbers<[1], [0], [0], [1], [0, 0, 1, 1], [], []>} : vector<2x112xf32>, vector<112x112xf32>, vector<2x112xf32> -> vector<2x112xf32>
    %cst_44 = arith.constant 0.0102040814 : f32
    %59 = vector.broadcast %cst_44 : f32 to vector<2x112xf32>
    %60 = arith.mulf %58, %59 : vector<2x112xf32>
    %61 = vector.extract_strided_slice %60 {offsets = [0, 0], sizes = [1, 112], strides = [1, 1]} : vector<2x112xf32> to vector<1x112xf32>
    %62 = vector.extract_strided_slice %60 {offsets = [1, 0], sizes = [1, 112], strides = [1, 1]} : vector<2x112xf32> to vector<1x112xf32>
    %63 = arith.mulf %61, %61 : vector<1x112xf32>
    %64 = arith.subf %62, %63 : vector<1x112xf32>
    %65 = vector.broadcast %61 : vector<1x112xf32> to vector<14x112xf32>
    %66 = arith.subf %48, %65 : vector<14x112xf32>
    %cst_45 = arith.constant 9.99999974E-6 : f32
    %67 = vector.broadcast %cst_45 : f32 to vector<1x112xf32>
    %68 = arith.addf %64, %67 : vector<1x112xf32>
    %69 = math.rsqrt %68 : vector<1x112xf32>
    %70 = vector.broadcast %69 : vector<1x112xf32> to vector<14x112xf32>
    %71 = arith.mulf %66, %70 : vector<14x112xf32>
    %72 = vector.broadcast %50 : vector<1x112xf32> to vector<14x112xf32>
    %73 = arith.mulf %71, %72 : vector<14x112xf32>
    %74 = vector.broadcast %51 : vector<1x112xf32> to vector<14x112xf32>
    %75 = arith.addf %73, %74 : vector<14x112xf32>
    %cst_46 = arith.constant 0.000000e+00 : f32
    %76 = vector.broadcast %cst_46 : f32 to vector<14x112xf32>
    %77 = arith.cmpf ogt, %75, %76 : vector<14x112xf32>
    %cst_47 = arith.constant 0.00999999977 : f32
    %78 = vector.broadcast %cst_47 : f32 to vector<14x112xf32>
    %79 = arith.mulf %78, %75 : vector<14x112xf32>
    %80 = arith.select %77, %75, %79 : vector<14x112xi1>, vector<14x112xf32>
    %81 = vector.extract_strided_slice %80 {offsets = [0, 0], sizes = [7, 112], strides = [1, 1]} : vector<14x112xf32> to vector<7x112xf32>
    %c0_48 = arith.constant 0 : index
    %c0_49 = arith.constant 0 : index
    %82 = vector.load %arg14[%c0_48, %c0_49] : memref<14x112xf32, #tpu.memory_space<vmem>>, vector<7x112xf32>
    tpu.vector_store %arg14[%c0_48, %c0_49], %81 {strides = array<i32>} : memref<14x112xf32, #tpu.memory_space<vmem>>, vector<7x112xf32>,
    %83 = vector.extract_strided_slice %80 {offsets = [7, 0], sizes = [7, 112], strides = [1, 1]} : vector<14x112xf32> to vector<7x112xf32>
    %c7 = arith.constant 7 : index
    %c0_50 = arith.constant 0 : index
    %84 = vector.load %arg14[%c7, %c0_50] : memref<14x112xf32, #tpu.memory_space<vmem>>, vector<7x112xf32>
    tpu.vector_store %arg14[%c7, %c0_50], %83 {strides = array<i32>} : memref<14x112xf32, #tpu.memory_space<vmem>>, vector<7x112xf32>,
    %c0_51 = arith.constant 0 : index
    %c0_52 = arith.constant 0 : index
    %85 = tpu.strided_load %arg14[%c0_51, %c0_52] {strides = array<i32: 2, 1>} : memref<14x112xf32, #tpu.memory_space<vmem>>, vector<3x112xf32>
    %c7_53 = arith.constant 7 : index
    %c0_54 = arith.constant 0 : index
    %86 = tpu.strided_load %arg14[%c7_53, %c0_54] {strides = array<i32: 2, 1>} : memref<14x112xf32, #tpu.memory_space<vmem>>, vector<3x112xf32>
    %87 = tpu.concatenate %85, %86 in 0 : vector<3x112xf32>, vector<3x112xf32> -> vector<6x112xf32>
    %c1_55 = arith.constant 1 : index
    %c0_56 = arith.constant 0 : index
    %88 = tpu.strided_load %arg14[%c1_55, %c0_56] {strides = array<i32: 2, 1>} : memref<14x112xf32, #tpu.memory_space<vmem>>, vector<3x112xf32>
    %c8 = arith.constant 8 : index
    %c0_57 = arith.constant 0 : index
    %89 = tpu.strided_load %arg14[%c8, %c0_57] {strides = array<i32: 2, 1>} : memref<14x112xf32, #tpu.memory_space<vmem>>, vector<3x112xf32>
    %90 = tpu.concatenate %88, %89 in 0 : vector<3x112xf32>, vector<3x112xf32> -> vector<6x112xf32>
    %c2_58 = arith.constant 2 : index
    %c0_59 = arith.constant 0 : index
    %91 = tpu.strided_load %arg14[%c2_58, %c0_59] {strides = array<i32: 2, 1>} : memref<14x112xf32, #tpu.memory_space<vmem>>, vector<3x112xf32>
    %c9 = arith.constant 9 : index
    %c0_60 = arith.constant 0 : index
    %92 = tpu.strided_load %arg14[%c9, %c0_60] {strides = array<i32: 2, 1>} : memref<14x112xf32, #tpu.memory_space<vmem>>, vector<3x112xf32>
    %93 = tpu.concatenate %91, %92 in 0 : vector<3x112xf32>, vector<3x112xf32> -> vector<6x112xf32>
    %94 = tpu.concatenate %87, %90, %93 in 1 : vector<6x112xf32>, vector<6x112xf32>, vector<6x112xf32> -> vector<6x336xf32>
    %c424 = arith.constant 424 : index
    %c0_61 = arith.constant 0 : index
    %95 = vector.load %arg4[%c424, %c0_61] : memref<760x112xf32, #tpu.memory_space<vmem>>, vector<336x96xf32>
    %cst_62 = arith.constant dense<0.000000e+00> : vector<6x96xf32>
    %96 = tpu.matmul %94, %95, %cst_62 {dimension_numbers = #tpu.dot_dimension_numbers<[1], [0], [0], [1], [0, 0, 1, 1], [], []>} : vector<6x336xf32>, vector<336x96xf32>, vector<6x96xf32> -> vector<6x96xf32>
    %97 = vector.extract_strided_slice %0 {offsets = [4, 0], sizes = [1, 96], strides = [1, 1]} : vector<16x288xf32> to vector<1x96xf32>
    %98 = vector.broadcast %97 : vector<1x96xf32> to vector<6x96xf32>
    %99 = arith.addf %96, %98 : vector<6x96xf32>
    %cst_63 = arith.constant 0.000000e+00 : f32
    %100 = vector.broadcast %cst_63 : f32 to vector<6x96xf32>
    %101 = arith.cmpf ogt, %99, %100 : vector<6x96xf32>
    %cst_64 = arith.constant 0.00999999977 : f32
    %102 = vector.broadcast %cst_64 : f32 to vector<6x96xf32>
    %103 = arith.mulf %102, %99 : vector<6x96xf32>
    %104 = arith.select %101, %99, %103 : vector<6x96xi1>, vector<6x96xf32>
    %105 = vector.extract_strided_slice %104 {offsets = [0, 0], sizes = [1, 96], strides = [1, 1]} : vector<6x96xf32> to vector<1x96xf32>
    %106 = vector.extract_strided_slice %104 {offsets = [1, 0], sizes = [1, 96], strides = [1, 1]} : vector<6x96xf32> to vector<1x96xf32>
    %107 = vector.extract_strided_slice %104 {offsets = [2, 0], sizes = [1, 96], strides = [1, 1]} : vector<6x96xf32> to vector<1x96xf32>
    %108 = tpu.concatenate %105, %106, %107 in 1 : vector<1x96xf32>, vector<1x96xf32>, vector<1x96xf32> -> vector<1x288xf32>
    %109 = vector.extract_strided_slice %104 {offsets = [3, 0], sizes = [1, 96], strides = [1, 1]} : vector<6x96xf32> to vector<1x96xf32>
    %110 = vector.extract_strided_slice %104 {offsets = [4, 0], sizes = [1, 96], strides = [1, 1]} : vector<6x96xf32> to vector<1x96xf32>
    %111 = vector.extract_strided_slice %104 {offsets = [5, 0], sizes = [1, 96], strides = [1, 1]} : vector<6x96xf32> to vector<1x96xf32>
    %112 = tpu.concatenate %109, %110, %111 in 1 : vector<1x96xf32>, vector<1x96xf32>, vector<1x96xf32> -> vector<1x288xf32>
    %113 = tpu.concatenate %108, %112 in 0 : vector<1x288xf32>, vector<1x288xf32> -> vector<2x288xf32>
    %c0_65 = arith.constant 0 : index
    %c0_66 = arith.constant 0 : index
    %114 = vector.load %arg5[%c0_65, %c0_66] : memref<288x128xf32, #tpu.memory_space<vmem>>, vector<288x128xf32>
    %cst_67 = arith.constant dense<0.000000e+00> : vector<2x128xf32>
    %115 = tpu.matmul %113, %114, %cst_67 {dimension_numbers = #tpu.dot_dimension_numbers<[1], [0], [0], [1], [0, 0, 1, 1], [], []>} : vector<2x288xf32>, vector<288x128xf32>, vector<2x128xf32> -> vector<2x128xf32>
    %116 = vector.extract_strided_slice %0 {offsets = [5, 0], sizes = [1, 128], strides = [1, 1]} : vector<16x288xf32> to vector<1x128xf32>
    %117 = vector.broadcast %116 : vector<1x128xf32> to vector<2x128xf32>
    %118 = arith.addf %115, %117 : vector<2x128xf32>
    %cst_68 = arith.constant 0.000000e+00 : f32
    %119 = vector.broadcast %cst_68 : f32 to vector<2x128xf32>
    %120 = arith.cmpf ogt, %118, %119 : vector<2x128xf32>
    %cst_69 = arith.constant 0.00999999977 : f32
    %121 = vector.broadcast %cst_69 : f32 to vector<2x128xf32>
    %122 = arith.mulf %121, %118 : vector<2x128xf32>
    %123 = arith.select %120, %118, %122 : vector<2x128xi1>, vector<2x128xf32>
    %c0_70 = arith.constant 0 : index
    %c0_71 = arith.constant 0 : index
    %124 = vector.load %arg6[%c0_70, %c0_71] : memref<128x8xf32, #tpu.memory_space<vmem>>, vector<128x8xf32>
    %cst_72 = arith.constant dense<0.000000e+00> : vector<2x8xf32>
    %125 = tpu.matmul %123, %124, %cst_72 {dimension_numbers = #tpu.dot_dimension_numbers<[1], [0], [0], [1], [0, 0, 1, 1], [], []>} : vector<2x128xf32>, vector<128x8xf32>, vector<2x8xf32> -> vector<2x8xf32>
    %126 = vector.extract_strided_slice %0 {offsets = [6, 0], sizes = [1, 8], strides = [1, 1]} : vector<16x288xf32> to vector<1x8xf32>
    %127 = vector.broadcast %126 : vector<1x8xf32> to vector<2x8xf32>
    %128 = arith.addf %125, %127 : vector<2x8xf32>
    %129 = vector.extract_strided_slice %128 {offsets = [0, 0], sizes = [2, 4], strides = [1, 1]} : vector<2x8xf32> to vector<2x4xf32>
    %130 = vector.extract_strided_slice %128 {offsets = [0, 4], sizes = [2, 4], strides = [1, 1]} : vector<2x8xf32> to vector<2x4xf32>
    %131 = math.exp %130 : vector<2x4xf32>
    %c0_73 = arith.constant 0 : index
    %c0_74 = arith.constant 0 : index
    %132 = vector.load %arg1[%c0_73, %c0_74] : memref<2x4xf32, #tpu.memory_space<vmem>>, vector<2x4xf32>
    %133 = arith.mulf %131, %132 : vector<2x4xf32>
    %134 = arith.addf %129, %133 : vector<2x4xf32>
    %c0_75 = arith.constant 0 : index
    %c0_76 = arith.constant 0 : index
    %135 = vector.load %arg7[%c0_75, %c0_76] : memref<4x128xf32, #tpu.memory_space<vmem>>, vector<4x128xf32>
    %cst_77 = arith.constant dense<0.000000e+00> : vector<2x128xf32>
    %136 = tpu.matmul %134, %135, %cst_77 {dimension_numbers = #tpu.dot_dimension_numbers<[1], [0], [0], [1], [0, 0, 1, 1], [], []>} : vector<2x4xf32>, vector<4x128xf32>, vector<2x128xf32> -> vector<2x128xf32>
    %137 = vector.extract_strided_slice %0 {offsets = [7, 0], sizes = [1, 128], strides = [1, 1]} : vector<16x288xf32> to vector<1x128xf32>
    %138 = vector.broadcast %137 : vector<1x128xf32> to vector<2x128xf32>
    %139 = arith.addf %136, %138 : vector<2x128xf32>
    %cst_78 = arith.constant 0.000000e+00 : f32
    %140 = vector.broadcast %cst_78 : f32 to vector<2x128xf32>
    %141 = arith.maximumf %139, %140 : vector<2x128xf32>
    %c0_79 = arith.constant 0 : index
    %c0_80 = arith.constant 0 : index
    %142 = vector.load %arg8[%c0_79, %c0_80] : memref<128x288xf32, #tpu.memory_space<vmem>>, vector<128x288xf32>
    %cst_81 = arith.constant dense<0.000000e+00> : vector<2x288xf32>
    %143 = tpu.matmul %141, %142, %cst_81 {dimension_numbers = #tpu.dot_dimension_numbers<[1], [0], [0], [1], [0, 0, 1, 1], [], []>} : vector<2x128xf32>, vector<128x288xf32>, vector<2x288xf32> -> vector<2x288xf32>
    %144 = vector.extract_strided_slice %0 {offsets = [8, 0], sizes = [1, 288], strides = [1, 1]} : vector<16x288xf32> to vector<1x288xf32>
    %145 = vector.broadcast %144 : vector<1x288xf32> to vector<2x288xf32>
    %146 = arith.addf %143, %145 : vector<2x288xf32>
    %cst_82 = arith.constant 0.000000e+00 : f32
    %147 = vector.broadcast %cst_82 : f32 to vector<2x288xf32>
    %148 = arith.maximumf %146, %147 : vector<2x288xf32>
    %149 = vector.extract_strided_slice %148 {offsets = [0, 0], sizes = [2, 96], strides = [1, 1]} : vector<2x288xf32> to vector<2x96xf32>
    %150 = vector.extract_strided_slice %148 {offsets = [0, 96], sizes = [2, 96], strides = [1, 1]} : vector<2x288xf32> to vector<2x96xf32>
    %151 = vector.extract_strided_slice %148 {offsets = [0, 192], sizes = [2, 96], strides = [1, 1]} : vector<2x288xf32> to vector<2x96xf32>
    %152 = tpu.concatenate %149, %150, %151 in 0 : vector<2x96xf32>, vector<2x96xf32>, vector<2x96xf32> -> vector<6x96xf32>
    %c0_83 = arith.constant 0 : index
    %c0_84 = arith.constant 0 : index
    %153 = vector.load %arg9[%c0_83, %c0_84] : memref<116x28xf32, #tpu.memory_space<vmem>>, vector<18x6xf32>
    %cst_85 = arith.constant dense<0.000000e+00> : vector<18x96xf32>
    %154 = tpu.matmul %153, %152, %cst_85 {dimension_numbers = #tpu.dot_dimension_numbers<[1], [0], [0], [1], [0, 0, 1, 1], [], []>} : vector<18x6xf32>, vector<6x96xf32>, vector<18x96xf32> -> vector<18x96xf32>
    %155 = vector.extract_strided_slice %154 {offsets = [2, 0], sizes = [7, 96], strides = [1, 1]} : vector<18x96xf32> to vector<7x96xf32>
    %156 = vector.extract_strided_slice %154 {offsets = [11, 0], sizes = [7, 96], strides = [1, 1]} : vector<18x96xf32> to vector<7x96xf32>
    %157 = tpu.concatenate %155, %156 in 0 : vector<7x96xf32>, vector<7x96xf32> -> vector<14x96xf32>
    %158 = vector.extract_strided_slice %154 {offsets = [1, 0], sizes = [7, 96], strides = [1, 1]} : vector<18x96xf32> to vector<7x96xf32>
    %159 = vector.extract_strided_slice %154 {offsets = [10, 0], sizes = [7, 96], strides = [1, 1]} : vector<18x96xf32> to vector<7x96xf32>
    %160 = tpu.concatenate %158, %159 in 0 : vector<7x96xf32>, vector<7x96xf32> -> vector<14x96xf32>
    %161 = vector.extract_strided_slice %154 {offsets = [0, 0], sizes = [7, 96], strides = [1, 1]} : vector<18x96xf32> to vector<7x96xf32>
    %162 = vector.extract_strided_slice %154 {offsets = [9, 0], sizes = [7, 96], strides = [1, 1]} : vector<18x96xf32> to vector<7x96xf32>
    %163 = tpu.concatenate %161, %162 in 0 : vector<7x96xf32>, vector<7x96xf32> -> vector<14x96xf32>
    %164 = tpu.concatenate %157, %160, %163 in 1 : vector<14x96xf32>, vector<14x96xf32>, vector<14x96xf32> -> vector<14x288xf32>
    %c0_86 = arith.constant 0 : index
    %c0_87 = arith.constant 0 : index
    %165 = vector.load %arg10[%c0_86, %c0_87] : memref<960x112xf32, #tpu.memory_space<vmem>>, vector<288x112xf32>
    %cst_88 = arith.constant dense<0.000000e+00> : vector<14x112xf32>
    %166 = tpu.matmul %164, %165, %cst_88 {dimension_numbers = #tpu.dot_dimension_numbers<[1], [0], [0], [1], [0, 0, 1, 1], [], []>} : vector<14x288xf32>, vector<288x112xf32>, vector<14x112xf32> -> vector<14x112xf32>
    %167 = vector.extract_strided_slice %0 {offsets = [9, 0], sizes = [1, 112], strides = [1, 1]} : vector<16x288xf32> to vector<1x112xf32>
    %168 = vector.broadcast %167 : vector<1x112xf32> to vector<14x112xf32>
    %169 = arith.addf %166, %168 : vector<14x112xf32>
    %c0_89 = arith.constant 0 : index
    %c0_90 = arith.constant 0 : index
    %170 = vector.load %arg3[%c0_89, %c0_90] : memref<224x112xf32, #tpu.memory_space<vmem>>, vector<112x112xf32>
    %171 = vector.extract_strided_slice %0 {offsets = [10, 0], sizes = [1, 112], strides = [1, 1]} : vector<16x288xf32> to vector<1x112xf32>
    %172 = vector.extract_strided_slice %0 {offsets = [11, 0], sizes = [1, 112], strides = [1, 1]} : vector<16x288xf32> to vector<1x112xf32>
    %cst_91 = arith.constant dense<0.000000e+00> : vector<112xf32>
    %173 = vector.multi_reduction <add>, %169, %cst_91 [0] : vector<14x112xf32> to vector<112xf32>
    %174 = vector.shape_cast %173 : vector<112xf32> to vector<1x112xf32>
    %175 = arith.mulf %169, %169 : vector<14x112xf32>
    %cst_92 = arith.constant dense<0.000000e+00> : vector<112xf32>
    %176 = vector.multi_reduction <add>, %175, %cst_92 [0] : vector<14x112xf32> to vector<112xf32>
    %177 = vector.shape_cast %176 : vector<112xf32> to vector<1x112xf32>
    %178 = tpu.concatenate %174, %177 in 0 : vector<1x112xf32>, vector<1x112xf32> -> vector<2x112xf32>
    %cst_93 = arith.constant dense<0.000000e+00> : vector<2x112xf32>
    %179 = tpu.matmul %178, %170, %cst_93 {dimension_numbers = #tpu.dot_dimension_numbers<[1], [0], [0], [1], [0, 0, 1, 1], [], []>} : vector<2x112xf32>, vector<112x112xf32>, vector<2x112xf32> -> vector<2x112xf32>
    %cst_94 = arith.constant 0.0102040814 : f32
    %180 = vector.broadcast %cst_94 : f32 to vector<2x112xf32>
    %181 = arith.mulf %179, %180 : vector<2x112xf32>
    %182 = vector.extract_strided_slice %181 {offsets = [0, 0], sizes = [1, 112], strides = [1, 1]} : vector<2x112xf32> to vector<1x112xf32>
    %183 = vector.extract_strided_slice %181 {offsets = [1, 0], sizes = [1, 112], strides = [1, 1]} : vector<2x112xf32> to vector<1x112xf32>
    %184 = arith.mulf %182, %182 : vector<1x112xf32>
    %185 = arith.subf %183, %184 : vector<1x112xf32>
    %186 = vector.broadcast %182 : vector<1x112xf32> to vector<14x112xf32>
    %187 = arith.subf %169, %186 : vector<14x112xf32>
    %cst_95 = arith.constant 9.99999974E-6 : f32
    %188 = vector.broadcast %cst_95 : f32 to vector<1x112xf32>
    %189 = arith.addf %185, %188 : vector<1x112xf32>
    %190 = math.rsqrt %189 : vector<1x112xf32>
    %191 = vector.broadcast %190 : vector<1x112xf32> to vector<14x112xf32>
    %192 = arith.mulf %187, %191 : vector<14x112xf32>
    %193 = vector.broadcast %171 : vector<1x112xf32> to vector<14x112xf32>
    %194 = arith.mulf %192, %193 : vector<14x112xf32>
    %195 = vector.broadcast %172 : vector<1x112xf32> to vector<14x112xf32>
    %196 = arith.addf %194, %195 : vector<14x112xf32>
    %cst_96 = arith.constant 0.000000e+00 : f32
    %197 = vector.broadcast %cst_96 : f32 to vector<14x112xf32>
    %198 = arith.maximumf %196, %197 : vector<14x112xf32>
    %c24 = arith.constant 24 : index
    %c0_97 = arith.constant 0 : index
    %199 = vector.load %arg9[%c24, %c0_97] : memref<116x28xf32, #tpu.memory_space<vmem>>, vector<32x14xf32>
    %cst_98 = arith.constant dense<0.000000e+00> : vector<32x112xf32>
    %200 = tpu.matmul %199, %198, %cst_98 {dimension_numbers = #tpu.dot_dimension_numbers<[1], [0], [0], [1], [0, 0, 1, 1], [], []>} : vector<32x14xf32>, vector<14x112xf32>, vector<32x112xf32> -> vector<32x112xf32>
    %201 = vector.extract_strided_slice %200 {offsets = [2, 0], sizes = [14, 112], strides = [1, 1]} : vector<32x112xf32> to vector<14x112xf32>
    %202 = vector.extract_strided_slice %200 {offsets = [18, 0], sizes = [14, 112], strides = [1, 1]} : vector<32x112xf32> to vector<14x112xf32>
    %203 = tpu.concatenate %201, %202 in 0 : vector<14x112xf32>, vector<14x112xf32> -> vector<28x112xf32>
    %204 = vector.extract_strided_slice %200 {offsets = [1, 0], sizes = [14, 112], strides = [1, 1]} : vector<32x112xf32> to vector<14x112xf32>
    %205 = vector.extract_strided_slice %200 {offsets = [17, 0], sizes = [14, 112], strides = [1, 1]} : vector<32x112xf32> to vector<14x112xf32>
    %206 = tpu.concatenate %204, %205 in 0 : vector<14x112xf32>, vector<14x112xf32> -> vector<28x112xf32>
    %207 = vector.extract_strided_slice %200 {offsets = [0, 0], sizes = [14, 112], strides = [1, 1]} : vector<32x112xf32> to vector<14x112xf32>
    %208 = vector.extract_strided_slice %200 {offsets = [16, 0], sizes = [14, 112], strides = [1, 1]} : vector<32x112xf32> to vector<14x112xf32>
    %209 = tpu.concatenate %207, %208 in 0 : vector<14x112xf32>, vector<14x112xf32> -> vector<28x112xf32>
    %210 = tpu.concatenate %203, %206, %209 in 1 : vector<28x112xf32>, vector<28x112xf32>, vector<28x112xf32> -> vector<28x336xf32>
    %c288 = arith.constant 288 : index
    %c0_99 = arith.constant 0 : index
    %211 = vector.load %arg10[%c288, %c0_99] : memref<960x112xf32, #tpu.memory_space<vmem>>, vector<336x112xf32>
    %cst_100 = arith.constant dense<0.000000e+00> : vector<28x112xf32>
    %212 = tpu.matmul %210, %211, %cst_100 {dimension_numbers = #tpu.dot_dimension_numbers<[1], [0], [0], [1], [0, 0, 1, 1], [], []>} : vector<28x336xf32>, vector<336x112xf32>, vector<28x112xf32> -> vector<28x112xf32>
    %213 = vector.extract_strided_slice %0 {offsets = [12, 0], sizes = [1, 112], strides = [1, 1]} : vector<16x288xf32> to vector<1x112xf32>
    %214 = vector.broadcast %213 : vector<1x112xf32> to vector<28x112xf32>
    %215 = arith.addf %212, %214 : vector<28x112xf32>
    %c112 = arith.constant 112 : index
    %c0_101 = arith.constant 0 : index
    %216 = vector.load %arg3[%c112, %c0_101] : memref<224x112xf32, #tpu.memory_space<vmem>>, vector<112x112xf32>
    %217 = vector.extract_strided_slice %0 {offsets = [13, 0], sizes = [1, 112], strides = [1, 1]} : vector<16x288xf32> to vector<1x112xf32>
    %218 = vector.extract_strided_slice %0 {offsets = [14, 0], sizes = [1, 112], strides = [1, 1]} : vector<16x288xf32> to vector<1x112xf32>
    %cst_102 = arith.constant dense<0.000000e+00> : vector<112xf32>
    %219 = vector.multi_reduction <add>, %215, %cst_102 [0] : vector<28x112xf32> to vector<112xf32>
    %220 = vector.shape_cast %219 : vector<112xf32> to vector<1x112xf32>
    %221 = arith.mulf %215, %215 : vector<28x112xf32>
    %cst_103 = arith.constant dense<0.000000e+00> : vector<112xf32>
    %222 = vector.multi_reduction <add>, %221, %cst_103 [0] : vector<28x112xf32> to vector<112xf32>
    %223 = vector.shape_cast %222 : vector<112xf32> to vector<1x112xf32>
    %224 = tpu.concatenate %220, %223 in 0 : vector<1x112xf32>, vector<1x112xf32> -> vector<2x112xf32>
    %cst_104 = arith.constant dense<0.000000e+00> : vector<2x112xf32>
    %225 = tpu.matmul %224, %216, %cst_104 {dimension_numbers = #tpu.dot_dimension_numbers<[1], [0], [0], [1], [0, 0, 1, 1], [], []>} : vector<2x112xf32>, vector<112x112xf32>, vector<2x112xf32> -> vector<2x112xf32>
    %cst_105 = arith.constant 0.00255102036 : f32
    %226 = vector.broadcast %cst_105 : f32 to vector<2x112xf32>
    %227 = arith.mulf %225, %226 : vector<2x112xf32>
    %228 = vector.extract_strided_slice %227 {offsets = [0, 0], sizes = [1, 112], strides = [1, 1]} : vector<2x112xf32> to vector<1x112xf32>
    %229 = vector.extract_strided_slice %227 {offsets = [1, 0], sizes = [1, 112], strides = [1, 1]} : vector<2x112xf32> to vector<1x112xf32>
    %230 = arith.mulf %228, %228 : vector<1x112xf32>
    %231 = arith.subf %229, %230 : vector<1x112xf32>
    %232 = vector.broadcast %228 : vector<1x112xf32> to vector<28x112xf32>
    %233 = arith.subf %215, %232 : vector<28x112xf32>
    %cst_106 = arith.constant 9.99999974E-6 : f32
    %234 = vector.broadcast %cst_106 : f32 to vector<1x112xf32>
    %235 = arith.addf %231, %234 : vector<1x112xf32>
    %236 = math.rsqrt %235 : vector<1x112xf32>
    %237 = vector.broadcast %236 : vector<1x112xf32> to vector<28x112xf32>
    %238 = arith.mulf %233, %237 : vector<28x112xf32>
    %239 = vector.broadcast %217 : vector<1x112xf32> to vector<28x112xf32>
    %240 = arith.mulf %238, %239 : vector<28x112xf32>
    %241 = vector.broadcast %218 : vector<1x112xf32> to vector<28x112xf32>
    %242 = arith.addf %240, %241 : vector<28x112xf32>
    %cst_107 = arith.constant 0.000000e+00 : f32
    %243 = vector.broadcast %cst_107 : f32 to vector<28x112xf32>
    %244 = arith.maximumf %242, %243 : vector<28x112xf32>
    %c56 = arith.constant 56 : index
    %c0_108 = arith.constant 0 : index
    %245 = vector.load %arg9[%c56, %c0_108] : memref<116x28xf32, #tpu.memory_space<vmem>>, vector<60x28xf32>
    %cst_109 = arith.constant dense<0.000000e+00> : vector<60x112xf32>
    %246 = tpu.matmul %245, %244, %cst_109 {dimension_numbers = #tpu.dot_dimension_numbers<[1], [0], [0], [1], [0, 0, 1, 1], [], []>} : vector<60x28xf32>, vector<28x112xf32>, vector<60x112xf32> -> vector<60x112xf32>
    %247 = vector.extract_strided_slice %246 {offsets = [2, 0], sizes = [28, 112], strides = [1, 1]} : vector<60x112xf32> to vector<28x112xf32>
    %248 = vector.extract_strided_slice %246 {offsets = [32, 0], sizes = [28, 112], strides = [1, 1]} : vector<60x112xf32> to vector<28x112xf32>
    %249 = tpu.concatenate %247, %248 in 0 : vector<28x112xf32>, vector<28x112xf32> -> vector<56x112xf32>
    %250 = vector.extract_strided_slice %246 {offsets = [1, 0], sizes = [28, 112], strides = [1, 1]} : vector<60x112xf32> to vector<28x112xf32>
    %251 = vector.extract_strided_slice %246 {offsets = [31, 0], sizes = [28, 112], strides = [1, 1]} : vector<60x112xf32> to vector<28x112xf32>
    %252 = tpu.concatenate %250, %251 in 0 : vector<28x112xf32>, vector<28x112xf32> -> vector<56x112xf32>
    %253 = vector.extract_strided_slice %246 {offsets = [0, 0], sizes = [28, 112], strides = [1, 1]} : vector<60x112xf32> to vector<28x112xf32>
    %254 = vector.extract_strided_slice %246 {offsets = [30, 0], sizes = [28, 112], strides = [1, 1]} : vector<60x112xf32> to vector<28x112xf32>
    %255 = tpu.concatenate %253, %254 in 0 : vector<28x112xf32>, vector<28x112xf32> -> vector<56x112xf32>
    %256 = tpu.concatenate %249, %252, %255 in 1 : vector<56x112xf32>, vector<56x112xf32>, vector<56x112xf32> -> vector<56x336xf32>
    %c624 = arith.constant 624 : index
    %c0_110 = arith.constant 0 : index
    %257 = vector.load %arg10[%c624, %c0_110] : memref<960x112xf32, #tpu.memory_space<vmem>>, vector<336x28xf32>
    %cst_111 = arith.constant dense<0.000000e+00> : vector<56x28xf32>
    %258 = tpu.matmul %256, %257, %cst_111 {dimension_numbers = #tpu.dot_dimension_numbers<[1], [0], [0], [1], [0, 0, 1, 1], [], []>} : vector<56x336xf32>, vector<336x28xf32>, vector<56x28xf32> -> vector<56x28xf32>
    %259 = vector.extract_strided_slice %0 {offsets = [15, 0], sizes = [1, 28], strides = [1, 1]} : vector<16x288xf32> to vector<1x28xf32>
    %260 = vector.broadcast %259 : vector<1x28xf32> to vector<56x28xf32>
    %261 = arith.addf %258, %260 : vector<56x28xf32>
    %cst_112 = arith.constant 0.000000e+00 : f32
    %262 = vector.broadcast %cst_112 : f32 to vector<56x28xf32>
    %263 = arith.subf %262, %261 : vector<56x28xf32>
    %264 = math.exp %263 : vector<56x28xf32>
    %cst_113 = arith.constant 1.000000e+00 : f32
    %265 = vector.broadcast %cst_113 : f32 to vector<56x28xf32>
    %266 = arith.addf %265, %264 : vector<56x28xf32>
    %cst_114 = arith.constant 1.000000e+00 : f32
    %267 = vector.broadcast %cst_114 : f32 to vector<56x28xf32>
    %268 = arith.divf %267, %266 : vector<56x28xf32>
    %c0_115 = arith.constant 0 : index
    %c0_116 = arith.constant 0 : index
    %269 = vector.load %arg11[%c0_115, %c0_116] : memref<56x28xf32, #tpu.memory_space<vmem>>, vector<56x28xf32>
    tpu.vector_store %arg11[%c0_115, %c0_116], %268 {strides = array<i32>} : memref<56x28xf32, #tpu.memory_space<vmem>>, vector<56x28xf32>,
    return
  }
}

</mosaic_0001>

<llo_original>
// kernel: vae_nn_fwd.1
$region0: #{vae_nn_fwd.1}
  #allocation0 [shape = 'u32[]', space=smem, size = 0x4, offset = 0x4, fixed_abs, tag = 'smem constant byte address 0x4 - core index']
  #allocation1 [shape = 'u32[144,128]{1,0:T(1,128)}', space=vmem, size = 0x12000, scoped, tag = 'internal scratch']
  #allocation2 [shape = 'f32[58,28]{1,0:T(8,128)}', space=vmem, size = 0x8000, scoped, tag = 'scratch operand']
  #allocation3 [shape = 'f32[30,112]{1,0:T(8,128)}', space=vmem, size = 0x4000, scoped, tag = 'scratch operand']
  #allocation4 [shape = 'f32[14,112]{1,0:T(8,128)}', space=vmem, size = 0x2000, scoped, tag = 'scratch operand']
  %s0 = inlined_call_operand.vmem [shape: f32[56,28], index: 0, kind: input, shape index: {}]
  %s1 = inlined_call_operand.vmem [shape: f32[2,4], index: 1, kind: input, shape index: {}]
  %s2 = inlined_call_operand.vmem [shape: f32[16,288], index: 2, kind: input, shape index: {}]
  %s3 = inlined_call_operand.vmem [shape: f32[224,112], index: 3, kind: input, shape index: {}]
  %s4 = inlined_call_operand.vmem [shape: f32[760,112], index: 4, kind: input, shape index: {}]
  %s5 = inlined_call_operand.vmem [shape: f32[288,128], index: 5, kind: input, shape index: {}]
  %s6 = inlined_call_operand.vmem [shape: f32[128,8], index: 6, kind: input, shape index: {}]
  %s7 = inlined_call_operand.vmem [shape: f32[4,128], index: 7, kind: input, shape index: {}]
  %s8 = inlined_call_operand.vmem [shape: f32[128,288], index: 8, kind: input, shape index: {}]
  %s9 = inlined_call_operand.vmem [shape: f32[116,28], index: 9, kind: input, shape index: {}]
  %s10 = inlined_call_operand.vmem [shape: f32[960,112], index: 10, kind: input, shape index: {}]
  %s11 = inlined_call_operand.hbm [shape: f32[56,28], index: 11, kind: output, shape index: {}]
  %s12 = sld [smem:[#allocation0]]
  $region54: #{vae_nn_fwd.1} parent=0
    _
  %s14 = ssub.s32 1, %s12
  %s15 = scalar_select 0, %s14, %s12
  $region1: #{vae_nn_fwd.1} parent=0
    #allocation5 [shape = 'u8[28672]{0}', space=vmem, size = 0x7000, scoped, tag = 'output window, operand 0, single buffered']
    #allocation6 [shape = 's32[1]{0}', space=sflag, size = 0x4, scoped, tag = 'scoped memory for vae_nn_fwd.1']
    %16 = vsyncpa [#allocation6], 0
    // Predicated region
    $region2: #{vae_nn_fwd.1} parent=1 // pred_check
      _
    $region3: #{vae_nn_fwd.1} parent=1 // pred_check_branch
      %18 = sbr.rel (0) target = $region5
    $region4: #{vae_nn_fwd.1} parent=1 // pred_region
      _
    $region5: #{vae_nn_fwd.1} parent=1 // pred_fallthru
      _
    // Predicated region
    $region6: #{vae_nn_fwd.1} parent=1 // pred_check
      _
    $region7: #{vae_nn_fwd.1} parent=1 // pred_check_branch
      %20 = sbr.rel (0) target = $region9
    $region8: #{vae_nn_fwd.1} parent=1 // pred_region
      _
    $region9: #{vae_nn_fwd.1} parent=1 // pred_fallthru
      _
    // Predicated region
    $region10: #{vae_nn_fwd.1} parent=1 // pred_check
      _
    $region11: #{vae_nn_fwd.1} parent=1 // pred_check_branch
      %22 = sbr.rel (0) target = $region13
    $region12: #{vae_nn_fwd.1} parent=1 // pred_region
      _
    $region13: #{vae_nn_fwd.1} parent=1 // pred_fallthru
      _
    // Predicated region
    $region14: #{vae_nn_fwd.1} parent=1 // pred_check
      _
    $region15: #{vae_nn_fwd.1} parent=1 // pred_check_branch
      %24 = sbr.rel (0) target = $region17
    $region16: #{vae_nn_fwd.1} parent=1 // pred_region
      _
    $region17: #{vae_nn_fwd.1} parent=1 // pred_fallthru
      _
    // Predicated region
    $region18: #{vae_nn_fwd.1} parent=1 // pred_check
      _
    $region19: #{vae_nn_fwd.1} parent=1 // pred_check_branch
      %26 = sbr.rel (0) target = $region21
    $region20: #{vae_nn_fwd.1} parent=1 // pred_region
      _
    $region21: #{vae_nn_fwd.1} parent=1 // pred_fallthru
      _
    // Predicated region
    $region22: #{vae_nn_fwd.1} parent=1 // pred_check
      _
    $region23: #{vae_nn_fwd.1} parent=1 // pred_check_branch
      %28 = sbr.rel (0) target = $region25
    $region24: #{vae_nn_fwd.1} parent=1 // pred_region
      _
    $region25: #{vae_nn_fwd.1} parent=1 // pred_fallthru
      _
    // Predicated region
    $region26: #{vae_nn_fwd.1} parent=1 // pred_check
      _
    $region27: #{vae_nn_fwd.1} parent=1 // pred_check_branch
      %30 = sbr.rel (0) target = $region29
    $region28: #{vae_nn_fwd.1} parent=1 // pred_region
      _
    $region29: #{vae_nn_fwd.1} parent=1 // pred_fallthru
      _
    // Predicated region
    $region30: #{vae_nn_fwd.1} parent=1 // pred_check
      _
    $region31: #{vae_nn_fwd.1} parent=1 // pred_check_branch
      %32 = sbr.rel (0) target = $region33
    $region32: #{vae_nn_fwd.1} parent=1 // pred_region
      _
    $region33: #{vae_nn_fwd.1} parent=1 // pred_fallthru
      _
    // Predicated region
    $region34: #{vae_nn_fwd.1} parent=1 // pred_check
      _
    $region35: #{vae_nn_fwd.1} parent=1 // pred_check_branch
      %34 = sbr.rel (0) target = $region37
    $region36: #{vae_nn_fwd.1} parent=1 // pred_region
      _
    $region37: #{vae_nn_fwd.1} parent=1 // pred_fallthru
      _
    // Predicated region
    $region38: #{vae_nn_fwd.1} parent=1 // pred_check
      _
    $region39: #{vae_nn_fwd.1} parent=1 // pred_check_branch
      %36 = sbr.rel (0) target = $region41
    $region40: #{vae_nn_fwd.1} parent=1 // pred_region
      _
    $region41: #{vae_nn_fwd.1} parent=1 // pred_fallthru
      _
    // Predicated region
    $region42: #{vae_nn_fwd.1} parent=1 // pred_check
      _
    $region43: #{vae_nn_fwd.1} parent=1 // pred_check_branch
      %38 = sbr.rel (0) target = $region45
    $region44: #{vae_nn_fwd.1} parent=1 // pred_region
      _
    $region45: #{vae_nn_fwd.1} parent=1 // pred_fallthru
      _
    %v39 = vld [vmem:[%s2] sm:$0xff]
    %v40 = vld [vmem:[%s2 + $0x18] sm:$0xff]
    %v41 = vld [vmem:[%s2 + $0x20] sm:$0xff]
    %v42 = vld [vmem:[%s2 + $0x28] sm:$0xff]
    %v43 = vld [vmem:[%s0] sm:$0xff]
    %v44 = vld [vmem:[%s0 + $0x8] sm:$0xff]
    %v45 = vld [vmem:[%s0 + $0x10] sm:$0xff]
    %v46 = vld [vmem:[%s0 + $0x18] sm:$0xff]
    %v47 = vld [vmem:[%s0 + $0x20] sm:$0xff]
    %v48 = vld [vmem:[%s0 + $0x28] sm:$0xff]
    %v49 = vld [vmem:[%s0 + $0x30] sm:$0xff]
    %vm50 = vcmask 228352
    %51 = vst.msk [vmem:[#allocation2] sm:$0xff] %vm50, 0.0
    %52 = vst.msk [vmem:[#allocation2 + $0x8] sm:$0xff] %vm50, 0.0
    %53 = vst.msk [vmem:[#allocation2 + $0x10] sm:$0xff] %vm50, 0.0
    %54 = vst.msk [vmem:[#allocation2 + $0x18] sm:$0xff] %vm50, 0.0
    %55 = vst.msk [vmem:[#allocation2 + $0x20] sm:$0xff] %vm50, 0.0
    %56 = vst.msk [vmem:[#allocation2 + $0x28] sm:$0xff] %vm50, 0.0
    %57 = vst.msk [vmem:[#allocation2 + $0x30] sm:$0xff] %vm50, 0.0
    %vm58 = vcmask 222208
    %59 = vst.msk [vmem:[#allocation2 + $0x38] sm:$0x3] %vm58, 0.0
    %60 = vst.msk [vmem:[#allocation2 + $0x1] sm:$0xff] %vm50, %v43
    %61 = vst.msk [vmem:[#allocation2 + $0x9] sm:$0xff] %vm50, %v44
    %62 = vst.msk [vmem:[#allocation2 + $0x11] sm:$0xff] %vm50, %v45
    %vm63 = vcmask 224256
    %64 = vst.msk [vmem:[#allocation2 + $0x19] sm:$0xf] %vm63, %v46
    %vm65 = vcmask 228356
    %66 = vst.msk [vmem:[#allocation2 + $0x1a] sm:$0xf0] %vm65, %v46
    %67 = vst.msk [vmem:[#allocation2 + $0x22] sm:$0xff] %vm50, %v47
    %68 = vst.msk [vmem:[#allocation2 + $0x2a] sm:$0xff] %vm50, %v48
    %69 = vst.msk [vmem:[#allocation2 + $0x32] sm:$0xff] %vm50, %v49
    %v70 = vld [vmem:[#allocation2] ss:$2 sm:$0xff]
    %s71 = scalar_lea.vmem [#allocation2], 16
    %v72 = vld [vmem:[%s71] ss:$2 sm:$0x3f]
    %s73 = scalar_lea.vmem [#allocation2], 29
    %v74 = vld [vmem:[%s73] ss:$2 sm:$0xff]
    %s75 = scalar_lea.vmem [#allocation2], 45
    %v76 = vld [vmem:[%s75] ss:$2 sm:$0x3f]
    %vm79 = vcmask 1045504
    %v80 = vrot.slane %v74, 2
    %v81 = vrot.slane %v76, 2
    %v82 = vsel %vm79, %v80, %v81
    %v86 = vsel %vm79, %v72, %v80
    %s87 = scalar_lea.vmem [#allocation2], 1
    %v88 = vld [vmem:[%s87] ss:$2 sm:$0xff]
    %s89 = scalar_lea.vmem [#allocation2], 17
    %v90 = vld [vmem:[%s89] ss:$2 sm:$0x3f]
    %s91 = scalar_lea.vmem [#allocation2], 30
    %v92 = vld [vmem:[%s91] ss:$2 sm:$0xff]
    %s93 = scalar_lea.vmem [#allocation2], 46
    %v94 = vld [vmem:[%s93] ss:$2 sm:$0x3f]
    %v97 = vrot.slane %v92, 2
    %v98 = vrot.slane %v94, 2
    %v99 = vsel %vm79, %v97, %v98
    %v101 = vsel %vm79, %v90, %v97
    %s102 = scalar_lea.vmem [#allocation2], 2
    %v103 = vld [vmem:[%s102] ss:$2 sm:$0xff]
    %s104 = scalar_lea.vmem [#allocation2], 18
    %v105 = vld [vmem:[%s104] ss:$2 sm:$0x3f]
    %s106 = scalar_lea.vmem [#allocation2], 31
    %v107 = vld [vmem:[%s106] ss:$2 sm:$0xff]
    %s108 = scalar_lea.vmem [#allocation2], 47
    %v109 = vld [vmem:[%s108] ss:$2 sm:$0x3f]
    %v112 = vrot.slane %v107, 2
    %v113 = vrot.slane %v109, 2
    %v114 = vsel %vm79, %v112, %v113
    %v116 = vsel %vm79, %v105, %v112
    %119 = vrot.lane.b32.xlu0 %v88, 28
    %v120 = vpop.permute.xlu0 %119
    %121 = vrot.lane.b32.xlu0 %v101, 28
    %v122 = vpop.permute.xlu0 %121
    %123 = vrot.lane.b32.xlu0 %v99, 28
    %v124 = vpop.permute.xlu0 %123
    %125 = vrot.lane.b32.xlu0 %v98, 28
    %v126 = vpop.permute.xlu0 %125
    %133 = vrot.lane.b32.xlu0 %v103, 56
    %v134 = vpop.permute.xlu0 %133
    %135 = vrot.lane.b32.xlu0 %v116, 56
    %v136 = vpop.permute.xlu0 %135
    %137 = vrot.lane.b32.xlu0 %v114, 56
    %v138 = vpop.permute.xlu0 %137
    %139 = vrot.lane.b32.xlu0 %v113, 56
    %v140 = vpop.permute.xlu0 %139
    %v145 = vsel %vm50, %v70, %v120
    %v146 = vsel %vm50, %v86, %v122
    %v147 = vsel %vm50, %v82, %v124
    %v148 = vsel %vm50, %v81, %v126
    %vm149 = vcmask 457728
    %v150 = vsel %vm149, %v145, %v134
    %v151 = vsel %vm149, %v146, %v136
    %v152 = vsel %vm149, %v147, %v138
    %v153 = vsel %vm149, %v148, %v140
    %v154 = vld [vmem:[%s4] sm:$0xff]
    %v155 = vld [vmem:[%s4 + $0x8] sm:$0xff]
    %v156 = vld [vmem:[%s4 + $0x10] sm:$0xff]
    %v157 = vld [vmem:[%s4 + $0x18] sm:$0xff]
    %v158 = vld [vmem:[%s4 + $0x20] sm:$0xff]
    %v159 = vld [vmem:[%s4 + $0x28] sm:$0xff]
    %v160 = vld [vmem:[%s4 + $0x30] sm:$0xff]
    %v161 = vld [vmem:[%s4 + $0x38] sm:$0xff]
    %v162 = vld [vmem:[%s4 + $0x40] sm:$0xff]
    %v163 = vld [vmem:[%s4 + $0x48] sm:$0xff]
    %v164 = vld [vmem:[%s4 + $0x50] sm:$0xf]
    %v165 = vlaneseq
    %v166 = vshrl.u32 %v165, 7
    %v167 = vsub.s32 0, %v166
    %v168 = vrot.slane %v39, %v167
    %vm169 = vcmask 687104
    %v171 = vsel %vm169, %v150, 0
    %v174 = vsel %vm169, %v151, 0
    %v177 = vsel %vm169, %v152, 0
    %v180 = vsel %vm169, %v153, 0
    %vm182 = vcmask 1043456
    %v184 = vsel %vm182, %v164, 0
    %186 = vmatprep.subr.mxu0 0.0
    %187 = vmatpush1.msra.mxu0 %v154
    %188 = vmatprep.subr.mxu0 0.0
    %189 = vmatpush1.msra.mxu0 %v155
    %190 = vmatprep.subr.mxu0 0.0
    %191 = vmatpush1.msra.mxu0 %v156
    %192 = vmatprep.subr.mxu0 0.0
    %193 = vmatpush1.msra.mxu0 %v157
    %194 = vmatprep.subr.mxu0 0.0
    %195 = vmatpush1.msra.mxu0 %v158
    %196 = vmatprep.subr.mxu0 0.0
    %197 = vmatpush1.msra.mxu0 %v159
    %198 = vmatprep.subr.mxu0 0.0
    %199 = vmatpush1.msra.mxu0 %v160
    %200 = vmatprep.subr.mxu0 0.0
    %201 = vmatpush1.msra.mxu0 %v161
    %202 = vmatprep.subr.mxu0 0.0
    %203 = vmatpush1.msra.mxu0 %v162
    %204 = vmatprep.subr.mxu0 0.0
    %205 = vmatpush1.msra.mxu0 %v163
    %206 = vmatprep.subr.mxu0 0.0
    %207 = vmatpush1.msra.mxu0 %v184
    %208 = vmatprep.subr.mxu0 0.0
    %209 = vmatpush1.msra.mxu0 0.0
    %210 = vmatprep.subr.mxu0 0.0
    %211 = vmatpush1.msra.mxu0 0.0
    %212 = vmatprep.subr.mxu0 0.0
    %213 = vmatpush1.msra.mxu0 0.0
    %214 = vmatprep.subr.mxu0 0.0
    %215 = vmatpush1.msra.mxu0 0.0
    %216 = vmatprep.subr.mxu0 0.0
    %217 = vmatpush1.msra.mxu0 0.0
    %218 = vmatprep.subr.mxu0 0.0
    %219 = vmatpush1.msra.mxu0 0.0
    %220 = vmatprep.subr.mxu0 0.0
    %221 = vmatpush1.msra.mxu0 0.0
    %222 = vmatprep.subr.mxu0 0.0
    %223 = vmatpush1.msra.mxu0 0.0
    %224 = vmatprep.subr.mxu0 0.0
    %225 = vmatpush1.msra.mxu0 0.0
    %226 = vmatprep.subr.mxu0 0.0
    %227 = vmatpush1.msra.mxu0 0.0
    %228 = vmatprep.subr.mxu0 0.0
    %229 = vmatpush1.msra.mxu0 0.0
    %230 = vmatprep.subr.mxu0 0.0
    %231 = vmatpush1.msra.mxu0 0.0
    %232 = vmatprep.subr.mxu0 0.0
    %233 = vmatpush1.msra.mxu0 0.0
    %234 = vmatprep.subr.mxu0 0.0
    %235 = vmatpush1.msra.mxu0 0.0
    %236 = vmatprep.subr.mxu0 0.0
    %237 = vmatpush1.msra.mxu0 0.0
    %238 = vmatprep.subr.mxu0 0.0
    %239 = vmatpush1.msra.mxu0 0.0
    %240 = vmatprep.subr.mxu0 0.0
    %241 = vmatpush1.msra.mxu0 0.0
    %242 = vmatprep.subr.mxu0 0.0
    %243 = vmatpush1.msra.mxu0 0.0
    %244 = vmatprep.subr.mxu0 0.0
    %245 = vmatpush1.msra.mxu0 0.0
    %246 = vmatprep.subr.mxu0 0.0
    %247 = vmatpush1.msra.mxu0 0.0
    %248 = vmatprep.subr.mxu0 0.0
    %249 = vmatpush1.msra.mxu0 0.0
    %250 = vmatprep.mubr.f32.mxu0 0.0
    %251 = vmatmul.mubr.f32.gmra.mrb[0].mxu0 %v171
    %v252 = vpop.f32.mrb[0].mxu0
    %v253 = vadd.f32 %v168, %v252
    %v254 = vpop.f32.mrb[0].mxu0
    %255 = vmatprep.mubr.f32.mxu0 0.0
    %256 = vmatmul.mubr.f32.gmra.mrb[0].mxu0 %v174
    %v257 = vpop.f32.mrb[0].mxu0
    %v258 = vadd.f32 %v168, %v257
    %v259 = vpop.f32.mrb[0].mxu0
    %260 = vmatprep.mubr.f32.mxu0 0.0
    %261 = vmatmul.mubr.f32.gmra.mrb[0].mxu0 %v177
    %v262 = vpop.f32.mrb[0].mxu0
    %v263 = vadd.f32 %v168, %v262
    %v264 = vpop.f32.mrb[0].mxu0
    %265 = vmatprep.mubr.f32.mxu0 0.0
    %266 = vmatmul.mubr.f32.gmra.mrb[0].mxu0 %v180
    %v267 = vpop.f32.mrb[0].mxu0
    %v268 = vadd.f32 %v168, %v267
    %v269 = vpop.f32.mrb[0].mxu0
    %270 = vdwg.mxu0
    %vm271 = vcmp.gt.f32.partialorder %v253, 0.0
    %vm272 = vcmp.gt.f32.partialorder %v258, 0.0
    %vm273 = vcmp.gt.f32.partialorder %v263, 0.0
    %vm274 = vcmp.gt.f32.partialorder %v268, 0.0
    %v275 = vmul.f32 %v253, 0.01
    %v276 = vmul.f32 %v258, 0.01
    %v277 = vmul.f32 %v263, 0.01
    %v278 = vmul.f32 %v268, 0.01
    %v279 = vsel %vm271, %v253, %v275
    %v280 = vsel %vm272, %v258, %v276
    %v281 = vsel %vm273, %v263, %v277
    %v282 = vsel %vm274, %v268, %v278
    %vm283 = vcmask 916480
    %284 = vst.msk [vmem:[#allocation3] sm:$0xff] %vm283, 0.0
    %285 = vst.msk [vmem:[#allocation3 + $0x8] sm:$0xff] %vm283, 0.0
    %286 = vst.msk [vmem:[#allocation3 + $0x10] sm:$0xff] %vm283, 0.0
    %vm287 = vcmask 914432
    %288 = vst.msk [vmem:[#allocation3 + $0x18] sm:$0x3f] %vm287, 0.0
    %289 = vst.msk [vmem:[#allocation3 + $0x1] sm:$0xff] %vm283, %v279
    %290 = vst.msk [vmem:[#allocation3 + $0x9] sm:$0x3f] %vm287, %v280
    %vm291 = vcmask 916486
    %292 = vst.msk [vmem:[#allocation3 + $0xa] sm:$0xc0] %vm291, %v280
    %293 = vst.msk [vmem:[#allocation3 + $0x12] sm:$0xff] %vm283, %v281
    %vm294 = vcmask 912384
    %295 = vst.msk [vmem:[#allocation3 + $0x1a] sm:$0xf] %vm294, %v282
    %v296 = vld [vmem:[#allocation3] ss:$2 sm:$0x7f]
    %s297 = scalar_lea.vmem [#allocation3], 15
    %v298 = vld [vmem:[%s297] ss:$2 sm:$0x7f]
    %v300 = vrot.slane %v298, 1
    %vm302 = vcmask 1046528
    %v303 = vsel %vm302, %v296, %v300
    %s304 = scalar_lea.vmem [#allocation3], 1
    %v305 = vld [vmem:[%s304] ss:$2 sm:$0x7f]
    %s306 = scalar_lea.vmem [#allocation3], 16
    %v307 = vld [vmem:[%s306] ss:$2 sm:$0x7f]
    %v309 = vrot.slane %v307, 1
    %v311 = vsel %vm302, %v305, %v309
    %s312 = scalar_lea.vmem [#allocation3], 2
    %v313 = vld [vmem:[%s312] ss:$2 sm:$0x7f]
    %s314 = scalar_lea.vmem [#allocation3], 17
    %v315 = vld [vmem:[%s314] ss:$2 sm:$0x7f]
    %v317 = vrot.slane %v315, 1
    %v319 = vsel %vm302, %v313, %v317
    %321 = vrot.lane.b32.xlu0 %v311, 112
    %v322 = vpop.permute.xlu0 %321
    %323 = vrot.lane.b32.xlu0 %v309, 112
    %v324 = vpop.permute.xlu0 %323
    %328 = vrot.lane.b32.xlu0 %v319, 96
    %v329 = vpop.permute.xlu0 %328
    %330 = vrot.lane.b32.xlu0 %v317, 96
    %v331 = vpop.permute.xlu0 %330
    %v334 = vsel %vm283, %v303, %v322
    %v335 = vsel %vm283, %v300, %v324
    %vm336 = vcmask 785408
    %v337 = vsel %vm336, %v322, %v329
    %v338 = vsel %vm336, %v324, %v331
    %v339 = vld [vmem:[%s4 + $0x58] sm:$0xff]
    %v340 = vld [vmem:[%s4 + $0x60] sm:$0xff]
    %v341 = vld [vmem:[%s4 + $0x68] sm:$0xff]
    %v342 = vld [vmem:[%s4 + $0x70] sm:$0xff]
    %v343 = vld [vmem:[%s4 + $0x78] sm:$0xff]
    %v344 = vld [vmem:[%s4 + $0x80] sm:$0xff]
    %v345 = vld [vmem:[%s4 + $0x88] sm:$0xff]
    %v346 = vld [vmem:[%s4 + $0x90] sm:$0xff]
    %v347 = vld [vmem:[%s4 + $0x98] sm:$0xff]
    %v348 = vld [vmem:[%s4 + $0xa0] sm:$0xff]
    %v349 = vld [vmem:[%s4 + $0xa8] sm:$0xff]
    %v350 = vld [vmem:[%s4 + $0xb0] sm:$0xff]
    %v351 = vld [vmem:[%s4 + $0xb8] sm:$0xff]
    %v352 = vld [vmem:[%s4 + $0xc0] sm:$0xff]
    %v353 = vld [vmem:[%s4 + $0xc8] sm:$0xff]
    %v354 = vld [vmem:[%s4 + $0xd0] sm:$0xff]
    %v355 = vld [vmem:[%s4 + $0xd8] sm:$0xff]
    %v356 = vld [vmem:[%s4 + $0xe0] sm:$0xff]
    %v357 = vld [vmem:[%s4 + $0xe8] sm:$0xff]
    %v358 = vld [vmem:[%s4 + $0xf0] sm:$0xff]
    %v359 = vld [vmem:[%s4 + $0xf8] sm:$0xff]
    %v360 = vld [vmem:[%s4 + $0x100] sm:$0xff]
    %v361 = vld [vmem:[%s4 + $0x108] sm:$0xff]
    %v362 = vld [vmem:[%s4 + $0x110] sm:$0xff]
    %v363 = vld [vmem:[%s4 + $0x118] sm:$0xff]
    %v364 = vld [vmem:[%s4 + $0x120] sm:$0xff]
    %v365 = vld [vmem:[%s4 + $0x128] sm:$0xff]
    %v366 = vld [vmem:[%s4 + $0x130] sm:$0xff]
    %v367 = vld [vmem:[%s4 + $0x138] sm:$0xff]
    %v368 = vld [vmem:[%s4 + $0x140] sm:$0xff]
    %v369 = vld [vmem:[%s4 + $0x148] sm:$0xff]
    %v370 = vld [vmem:[%s4 + $0x150] sm:$0xff]
    %v371 = vld [vmem:[%s4 + $0x158] sm:$0xff]
    %v372 = vld [vmem:[%s4 + $0x160] sm:$0xff]
    %v373 = vld [vmem:[%s4 + $0x168] sm:$0xff]
    %v374 = vld [vmem:[%s4 + $0x170] sm:$0xff]
    %v375 = vld [vmem:[%s4 + $0x178] sm:$0xff]
    %v376 = vld [vmem:[%s4 + $0x180] sm:$0xff]
    %v377 = vld [vmem:[%s4 + $0x188] sm:$0xff]
    %v378 = vld [vmem:[%s4 + $0x190] sm:$0xff]
    %v379 = vld [vmem:[%s4 + $0x198] sm:$0xff]
    %v380 = vld [vmem:[%s4 + $0x1a0] sm:$0xff]
    %v381 = vlaneseq
    %v382 = vshrl.u32 %v381, 7
    %v383 = vsub.s32 1, %v382
    %v384 = vrot.slane %v39, %v383
    %vm385 = vcmask 654336
    %v386 = vsel %vm385, %v329, 0
    %v388 = vsel %vm385, %v331, 0
    %390 = vmatprep.subr.mxu0 0.0
    %391 = vmatpush1.msra.mxu0 %v339
    %392 = vmatprep.subr.mxu0 0.0
    %393 = vmatpush1.msra.mxu0 %v340
    %394 = vmatprep.subr.mxu0 0.0
    %395 = vmatpush1.msra.mxu0 %v341
    %396 = vmatprep.subr.mxu0 0.0
    %397 = vmatpush1.msra.mxu0 %v342
    %398 = vmatprep.subr.mxu0 0.0
    %399 = vmatpush1.msra.mxu0 %v343
    %400 = vmatprep.subr.mxu0 0.0
    %401 = vmatpush1.msra.mxu0 %v344
    %402 = vmatprep.subr.mxu0 0.0
    %403 = vmatpush1.msra.mxu0 %v345
    %404 = vmatprep.subr.mxu0 0.0
    %405 = vmatpush1.msra.mxu0 %v346
    %406 = vmatprep.subr.mxu0 0.0
    %407 = vmatpush1.msra.mxu0 %v347
    %408 = vmatprep.subr.mxu0 0.0
    %409 = vmatpush1.msra.mxu0 %v348
    %410 = vmatprep.subr.mxu0 0.0
    %411 = vmatpush1.msra.mxu0 %v349
    %412 = vmatprep.subr.mxu0 0.0
    %413 = vmatpush1.msra.mxu0 %v350
    %414 = vmatprep.subr.mxu0 0.0
    %415 = vmatpush1.msra.mxu0 %v351
    %416 = vmatprep.subr.mxu0 0.0
    %417 = vmatpush1.msra.mxu0 %v352
    %418 = vmatprep.subr.mxu0 0.0
    %419 = vmatpush1.msra.mxu0 %v353
    %420 = vmatprep.subr.mxu0 0.0
    %421 = vmatpush1.msra.mxu0 %v354
    %422 = vmatprep.subr.mxu0 0.0
    %423 = vmatpush1.msra.mxu0 %v355
    %424 = vmatprep.subr.mxu0 0.0
    %425 = vmatpush1.msra.mxu0 %v356
    %426 = vmatprep.subr.mxu0 0.0
    %427 = vmatpush1.msra.mxu0 %v357
    %428 = vmatprep.subr.mxu0 0.0
    %429 = vmatpush1.msra.mxu0 %v358
    %430 = vmatprep.subr.mxu0 0.0
    %431 = vmatpush1.msra.mxu0 %v359
    %432 = vmatprep.subr.mxu0 0.0
    %433 = vmatpush1.msra.mxu0 %v360
    %434 = vmatprep.subr.mxu0 0.0
    %435 = vmatpush1.msra.mxu0 %v361
    %436 = vmatprep.subr.mxu0 0.0
    %437 = vmatpush1.msra.mxu0 %v362
    %438 = vmatprep.subr.mxu0 0.0
    %439 = vmatpush1.msra.mxu0 %v363
    %440 = vmatprep.subr.mxu0 0.0
    %441 = vmatpush1.msra.mxu0 %v364
    %442 = vmatprep.subr.mxu0 0.0
    %443 = vmatpush1.msra.mxu0 %v365
    %444 = vmatprep.subr.mxu0 0.0
    %445 = vmatpush1.msra.mxu0 %v366
    %446 = vmatprep.subr.mxu0 0.0
    %447 = vmatpush1.msra.mxu0 %v367
    %448 = vmatprep.subr.mxu0 0.0
    %449 = vmatpush1.msra.mxu0 %v368
    %450 = vmatprep.subr.mxu0 0.0
    %451 = vmatpush1.msra.mxu0 %v369
    %452 = vmatprep.subr.mxu0 0.0
    %453 = vmatpush1.msra.mxu0 %v370
    %454 = vmatprep.mubr.f32.mxu0 %v337
    %455 = vmatmul.mubr.f32.gmra.mrb[0].mxu0 %v334
    %v456 = vpop.f32.mrb[0].mxu0
    %v457 = vadd.f32 %v384, %v456
    %v458 = vpop.f32.mrb[0].mxu0
    %459 = vmatprep.mubr.f32.mxu0 %v338
    %460 = vmatmul.mubr.f32.gmra.mrb[0].mxu0 %v335
    %v461 = vpop.f32.mrb[0].mxu0
    %v462 = vadd.f32 %v384, %v461
    %v463 = vpop.f32.mrb[0].mxu0
    %464 = vdwg.mxu0
    %465 = vmatprep.subr.mxu0 0.0
    %466 = vmatpush1.msra.mxu0 %v371
    %467 = vmatprep.subr.mxu0 0.0
    %468 = vmatpush1.msra.mxu0 %v372
    %469 = vmatprep.subr.mxu0 0.0
    %470 = vmatpush1.msra.mxu0 %v373
    %471 = vmatprep.subr.mxu0 0.0
    %472 = vmatpush1.msra.mxu0 %v374
    %473 = vmatprep.subr.mxu0 0.0
    %474 = vmatpush1.msra.mxu0 %v375
    %475 = vmatprep.subr.mxu0 0.0
    %476 = vmatpush1.msra.mxu0 %v376
    %477 = vmatprep.subr.mxu0 0.0
    %478 = vmatpush1.msra.mxu0 %v377
    %479 = vmatprep.subr.mxu0 0.0
    %480 = vmatpush1.msra.mxu0 %v378
    %481 = vmatprep.subr.mxu0 0.0
    %482 = vmatpush1.msra.mxu0 %v379
    %483 = vmatprep.subr.mxu0 0.0
    %484 = vmatpush1.msra.mxu0 %v380
    %485 = vmatprep.subr.mxu0 0.0
    %486 = vmatpush1.msra.mxu0 0.0
    %487 = vmatprep.subr.mxu0 0.0
    %488 = vmatpush1.msra.mxu0 0.0
    %489 = vmatprep.subr.mxu0 0.0
    %490 = vmatpush1.msra.mxu0 0.0
    %491 = vmatprep.subr.mxu0 0.0
    %492 = vmatpush1.msra.mxu0 0.0
    %493 = vmatprep.subr.mxu0 0.0
    %494 = vmatpush1.msra.mxu0 0.0
    %495 = vmatprep.subr.mxu0 0.0
    %496 = vmatpush1.msra.mxu0 0.0
    %497 = vmatprep.subr.mxu0 0.0
    %498 = vmatpush1.msra.mxu0 0.0
    %499 = vmatprep.subr.mxu0 0.0
    %500 = vmatpush1.msra.mxu0 0.0
    %501 = vmatprep.subr.mxu0 0.0
    %502 = vmatpush1.msra.mxu0 0.0
    %503 = vmatprep.subr.mxu0 0.0
    %504 = vmatpush1.msra.mxu0 0.0
    %505 = vmatprep.subr.mxu0 0.0
    %506 = vmatpush1.msra.mxu0 0.0
    %507 = vmatprep.subr.mxu0 0.0
    %508 = vmatpush1.msra.mxu0 0.0
    %509 = vmatprep.subr.mxu0 0.0
    %510 = vmatpush1.msra.mxu0 0.0
    %511 = vmatprep.subr.mxu0 0.0
    %512 = vmatpush1.msra.mxu0 0.0
    %513 = vmatprep.subr.mxu0 0.0
    %514 = vmatpush1.msra.mxu0 0.0
    %515 = vmatprep.subr.mxu0 0.0
    %516 = vmatpush1.msra.mxu0 0.0
    %517 = vmatprep.subr.mxu0 0.0
    %518 = vmatpush1.msra.mxu0 0.0
    %519 = vmatprep.subr.mxu0 0.0
    %520 = vmatpush1.msra.mxu0 0.0
    %521 = vmatprep.subr.mxu0 0.0
    %522 = vmatpush1.msra.mxu0 0.0
    %523 = vmatprep.subr.mxu0 0.0
    %524 = vmatpush1.msra.mxu0 0.0
    %525 = vmatprep.subr.mxu0 0.0
    %526 = vmatpush1.msra.mxu0 0.0
    %527 = vmatprep.subr.mxu0 0.0
    %528 = vmatpush1.msra.mxu0 0.0
    %529 = vmatprep.mubr.f32.mxu0 0.0
    %530 = vmatmul.mubr.f32.gmra.mrb[0].mxu0 %v386
    %v531 = vpop.f32.mrb[0].mxu0
    %v532 = vadd.f32 %v457, %v531
    %v533 = vpop.f32.mrb[0].mxu0
    %534 = vmatprep.mubr.f32.mxu0 0.0
    %535 = vmatmul.mubr.f32.gmra.mrb[0].mxu0 %v388
    %v536 = vpop.f32.mrb[0].mxu0
    %v537 = vadd.f32 %v462, %v536
    %v538 = vpop.f32.mrb[0].mxu0
    %539 = vdwg.mxu0
    %v540 = vld [vmem:[%s3] sm:$0xff]
    %v541 = vld [vmem:[%s3 + $0x8] sm:$0xff]
    %v542 = vld [vmem:[%s3 + $0x10] sm:$0xff]
    %v543 = vld [vmem:[%s3 + $0x18] sm:$0xff]
    %v544 = vld [vmem:[%s3 + $0x20] sm:$0xff]
    %v545 = vld [vmem:[%s3 + $0x28] sm:$0xff]
    %v546 = vld [vmem:[%s3 + $0x30] sm:$0xff]
    %v547 = vld [vmem:[%s3 + $0x38] sm:$0xff]
    %v548 = vld [vmem:[%s3 + $0x40] sm:$0xff]
    %v549 = vld [vmem:[%s3 + $0x48] sm:$0xff]
    %v550 = vld [vmem:[%s3 + $0x50] sm:$0xff]
    %v551 = vld [vmem:[%s3 + $0x58] sm:$0xff]
    %v552 = vld [vmem:[%s3 + $0x60] sm:$0xff]
    %v553 = vld [vmem:[%s3 + $0x68] sm:$0xff]
    %v554 = vsel %vm283, %v532, 0.0
    %v555 = vsel %vm287, %v537, 0.0
    %v556 = vadd.f32 %v554, %v555
    %v557 = vrot.slane %v556, 4
    %v558 = vadd.f32 %v556, %v557
    %v559 = vrot.slane %v558, 2
    %v560 = vadd.f32 %v558, %v559
    %v561 = vrot.slane %v560, 1
    %v562 = vadd.f32 %v560, %v561
    %v563 = vmul.f32 %v532, %v532
    %v564 = vmul.f32 %v537, %v537
    %v565 = vsel %vm283, %v563, 0.0
    %v566 = vsel %vm287, %v564, 0.0
    %v567 = vadd.f32 %v565, %v566
    %v568 = vrot.slane %v567, 4
    %v569 = vadd.f32 %v567, %v568
    %v570 = vrot.slane %v569, 2
    %v571 = vadd.f32 %v569, %v570
    %v572 = vrot.slane %v571, 1
    %v573 = vadd.f32 %v571, %v572
    %vm574 = vcmask 1040384
    %v575 = vsel %vm574, %v562, %v573
    %v577 = vsel %vm283, %v575, 0
    %579 = vmatprep.subr.mxu0 0.0
    %580 = vmatpush1.msra.mxu0 %v540
    %581 = vmatprep.subr.mxu0 0.0
    %582 = vmatpush1.msra.mxu0 %v541
    %583 = vmatprep.subr.mxu0 0.0
    %584 = vmatpush1.msra.mxu0 %v542
    %585 = vmatprep.subr.mxu0 0.0
    %586 = vmatpush1.msra.mxu0 %v543
    %587 = vmatprep.subr.mxu0 0.0
    %588 = vmatpush1.msra.mxu0 %v544
    %589 = vmatprep.subr.mxu0 0.0
    %590 = vmatpush1.msra.mxu0 %v545
    %591 = vmatprep.subr.mxu0 0.0
    %592 = vmatpush1.msra.mxu0 %v546
    %593 = vmatprep.subr.mxu0 0.0
    %594 = vmatpush1.msra.mxu0 %v547
    %595 = vmatprep.subr.mxu0 0.0
    %596 = vmatpush1.msra.mxu0 %v548
    %597 = vmatprep.subr.mxu0 0.0
    %598 = vmatpush1.msra.mxu0 %v549
    %599 = vmatprep.subr.mxu0 0.0
    %600 = vmatpush1.msra.mxu0 %v550
    %601 = vmatprep.subr.mxu0 0.0
    %602 = vmatpush1.msra.mxu0 %v551
    %603 = vmatprep.subr.mxu0 0.0
    %604 = vmatpush1.msra.mxu0 %v552
    %605 = vmatprep.subr.mxu0 0.0
    %606 = vmatpush1.msra.mxu0 %v553
    %607 = vmatprep.subr.mxu0 0.0
    %608 = vmatpush1.msra.mxu0 0.0
    %609 = vmatprep.subr.mxu0 0.0
    %610 = vmatpush1.msra.mxu0 0.0
    %611 = vmatprep.subr.mxu0 0.0
    %612 = vmatpush1.msra.mxu0 0.0
    %613 = vmatprep.subr.mxu0 0.0
    %614 = vmatpush1.msra.mxu0 0.0
    %615 = vmatprep.subr.mxu0 0.0
    %616 = vmatpush1.msra.mxu0 0.0
    %617 = vmatprep.subr.mxu0 0.0
    %618 = vmatpush1.msra.mxu0 0.0
    %619 = vmatprep.subr.mxu0 0.0
    %620 = vmatpush1.msra.mxu0 0.0
    %621 = vmatprep.subr.mxu0 0.0
    %622 = vmatpush1.msra.mxu0 0.0
    %623 = vmatprep.subr.mxu0 0.0
    %624 = vmatpush1.msra.mxu0 0.0
    %625 = vmatprep.subr.mxu0 0.0
    %626 = vmatpush1.msra.mxu0 0.0
    %627 = vmatprep.subr.mxu0 0.0
    %628 = vmatpush1.msra.mxu0 0.0
    %629 = vmatprep.subr.mxu0 0.0
    %630 = vmatpush1.msra.mxu0 0.0
    %631 = vmatprep.subr.mxu0 0.0
    %632 = vmatpush1.msra.mxu0 0.0
    %633 = vmatprep.subr.mxu0 0.0
    %634 = vmatpush1.msra.mxu0 0.0
    %635 = vmatprep.subr.mxu0 0.0
    %636 = vmatpush1.msra.mxu0 0.0
    %637 = vmatprep.subr.mxu0 0.0
    %638 = vmatpush1.msra.mxu0 0.0
    %639 = vmatprep.subr.mxu0 0.0
    %640 = vmatpush1.msra.mxu0 0.0
    %641 = vmatprep.subr.mxu0 0.0
    %642 = vmatpush1.msra.mxu0 0.0
    %643 = vmatprep.mubr.f32.mxu0 0.0
    %644 = vmatmul.mubr.f32.gmra.mrb[0].mxu0 %v577
    %v645 = vpop.f32.mrb[0].mxu0
    %v646 = vadd.f32 0.0, %v645
    %v647 = vpop.f32.mrb[0].mxu0
    %648 = vdwg.mxu0
    %v649 = vmul.f32 %v646, 0.010204081
    %v650 = vmul.f32 %v649, %v649
    %v652 = vrot.slane %v650, 7
    %v654 = vsub.f32 %v649, %v652
    %v655 = vlaneseq
    %v656 = vshrl.u32 %v655, 7
    %v657 = vsub.s32 0, %v656
    %v658 = vrot.slane %v649, %v657
    %v659 = vsub.f32 %v532, %v658
    %v660 = vsub.f32 %v537, %v658
    %v661 = vadd.f32 %v654, 1e-05
    %v662 = vrsqrt.pop %v661
    %v663 = vlaneseq
    %v664 = vshrl.u32 %v663, 7
    %v665 = vsub.s32 1, %v664
    %v666 = vrot.slane %v662, %v665
    %v667 = vmul.f32 %v659, %v666
    %v668 = vmul.f32 %v660, %v666
    %v669 = vlaneseq
    %v670 = vshrl.u32 %v669, 7
    %v671 = vsub.s32 2, %v670
    %v672 = vrot.slane %v39, %v671
    %v673 = vmul.f32 %v667, %v672
    %v674 = vmul.f32 %v668, %v672
    %v675 = vlaneseq
    %v676 = vshrl.u32 %v675, 7
    %v677 = vsub.s32 3, %v676
    %v678 = vrot.slane %v39, %v677
    %v679 = vadd.f32 %v673, %v678
    %v680 = vadd.f32 %v674, %v678
    %vm681 = vcmp.gt.f32.partialorder %v679, 0.0
    %vm682 = vcmp.gt.f32.partialorder %v680, 0.0
    %v683 = vmul.f32 %v679, 0.01
    %v684 = vmul.f32 %v680, 0.01
    %v685 = vsel %vm681, %v679, %v683
    %v686 = vsel %vm682, %v680, %v684
    %vm687 = vcmask 915456
    %688 = vst.msk [vmem:[#allocation4] sm:$0x7f] %vm687, %v685
    %vm689 = vcmask 916487
    %690 = vst.msk [vmem:[#allocation4] sm:$0x80] %vm689, %v685
    %691 = vst.msk [vmem:[#allocation4 + $0x8] sm:$0x3f] %vm287, %v686
    %v692 = vld [vmem:[#allocation4] ss:$2 sm:$0x7]
    %s693 = scalar_lea.vmem [#allocation4], 7
    %v694 = vld [vmem:[%s693] ss:$2 sm:$0x7]
    %v696 = vrot.slane %v694, 5
    %vm698 = vcmask 1042432
    %v699 = vsel %vm698, %v692, %v696
    %s700 = scalar_lea.vmem [#allocation4], 1
    %v701 = vld [vmem:[%s700] ss:$2 sm:$0x7]
    %s702 = scalar_lea.vmem [#allocation4], 8
    %v703 = vld [vmem:[%s702] ss:$2 sm:$0x7]
    %v705 = vrot.slane %v703, 5
    %v707 = vsel %vm698, %v701, %v705
    %s708 = scalar_lea.vmem [#allocation4], 2
    %v709 = vld [vmem:[%s708] ss:$2 sm:$0x7]
    %s710 = scalar_lea.vmem [#allocation4], 9
    %v711 = vld [vmem:[%s710] ss:$2 sm:$0x7]
    %v713 = vrot.slane %v711, 5
    %v715 = vsel %vm698, %v709, %v713
    %717 = vrot.lane.b32.xlu0 %v707, 112
    %v718 = vpop.permute.xlu0 %717
    %721 = vrot.lane.b32.xlu0 %v715, 96
    %v722 = vpop.permute.xlu0 %721
    %v724 = vsel %vm283, %v699, %v718
    %v725 = vsel %vm336, %v718, %v722
    %v726 = vld [vmem:[%s4 + $0x1a8] sm:$0xff]
    %v727 = vld [vmem:[%s4 + $0x1b0] sm:$0xff]
    %v728 = vld [vmem:[%s4 + $0x1b8] sm:$0xff]
    %v729 = vld [vmem:[%s4 + $0x1c0] sm:$0xff]
    %v730 = vld [vmem:[%s4 + $0x1c8] sm:$0xff]
    %v731 = vld [vmem:[%s4 + $0x1d0] sm:$0xff]
    %v732 = vld [vmem:[%s4 + $0x1d8] sm:$0xff]
    %v733 = vld [vmem:[%s4 + $0x1e0] sm:$0xff]
    %v734 = vld [vmem:[%s4 + $0x1e8] sm:$0xff]
    %v735 = vld [vmem:[%s4 + $0x1f0] sm:$0xff]
    %v736 = vld [vmem:[%s4 + $0x1f8] sm:$0xff]
    %v737 = vld [vmem:[%s4 + $0x200] sm:$0xff]
    %v738 = vld [vmem:[%s4 + $0x208] sm:$0xff]
    %v739 = vld [vmem:[%s4 + $0x210] sm:$0xff]
    %v740 = vld [vmem:[%s4 + $0x218] sm:$0xff]
    %v741 = vld [vmem:[%s4 + $0x220] sm:$0xff]
    %v742 = vld [vmem:[%s4 + $0x228] sm:$0xff]
    %v743 = vld [vmem:[%s4 + $0x230] sm:$0xff]
    %v744 = vld [vmem:[%s4 + $0x238] sm:$0xff]
    %v745 = vld [vmem:[%s4 + $0x240] sm:$0xff]
    %v746 = vld [vmem:[%s4 + $0x248] sm:$0xff]
    %v747 = vld [vmem:[%s4 + $0x250] sm:$0xff]
    %v748 = vld [vmem:[%s4 + $0x258] sm:$0xff]
    %v749 = vld [vmem:[%s4 + $0x260] sm:$0xff]
    %v750 = vld [vmem:[%s4 + $0x268] sm:$0xff]
    %v751 = vld [vmem:[%s4 + $0x270] sm:$0xff]
    %v752 = vld [vmem:[%s4 + $0x278] sm:$0xff]
    %v753 = vld [vmem:[%s4 + $0x280] sm:$0xff]
    %v754 = vld [vmem:[%s4 + $0x288] sm:$0xff]
    %v755 = vld [vmem:[%s4 + $0x290] sm:$0xff]
    %v756 = vld [vmem:[%s4 + $0x298] sm:$0xff]
    %v757 = vld [vmem:[%s4 + $0x2a0] sm:$0xff]
    %v758 = vld [vmem:[%s4 + $0x2a8] sm:$0xff]
    %v759 = vld [vmem:[%s4 + $0x2b0] sm:$0xff]
    %v760 = vld [vmem:[%s4 + $0x2b8] sm:$0xff]
    %v761 = vld [vmem:[%s4 + $0x2c0] sm:$0xff]
    %v762 = vld [vmem:[%s4 + $0x2c8] sm:$0xff]
    %v763 = vld [vmem:[%s4 + $0x2d0] sm:$0xff]
    %v764 = vld [vmem:[%s4 + $0x2d8] sm:$0xff]
    %v765 = vld [vmem:[%s4 + $0x2e0] sm:$0xff]
    %v766 = vld [vmem:[%s4 + $0x2e8] sm:$0xff]
    %v767 = vld [vmem:[%s4 + $0x2f0] sm:$0xff]
    %v768 = vlaneseq
    %v769 = vshrl.u32 %v768, 7
    %v770 = vsub.s32 4, %v769
    %v771 = vrot.slane %v39, %v770
    %v772 = vsel %vm385, %v722, 0
    %774 = vmatprep.subr.mxu0 0.0
    %775 = vmatpush1.msra.mxu0 %v726
    %776 = vmatprep.subr.mxu0 0.0
    %777 = vmatpush1.msra.mxu0 %v727
    %778 = vmatprep.subr.mxu0 0.0
    %779 = vmatpush1.msra.mxu0 %v728
    %780 = vmatprep.subr.mxu0 0.0
    %781 = vmatpush1.msra.mxu0 %v729
    %782 = vmatprep.subr.mxu0 0.0
    %783 = vmatpush1.msra.mxu0 %v730
    %784 = vmatprep.subr.mxu0 0.0
    %785 = vmatpush1.msra.mxu0 %v731
    %786 = vmatprep.subr.mxu0 0.0
    %787 = vmatpush1.msra.mxu0 %v732
    %788 = vmatprep.subr.mxu0 0.0
    %789 = vmatpush1.msra.mxu0 %v733
    %790 = vmatprep.subr.mxu0 0.0
    %791 = vmatpush1.msra.mxu0 %v734
    %792 = vmatprep.subr.mxu0 0.0
    %793 = vmatpush1.msra.mxu0 %v735
    %794 = vmatprep.subr.mxu0 0.0
    %795 = vmatpush1.msra.mxu0 %v736
    %796 = vmatprep.subr.mxu0 0.0
    %797 = vmatpush1.msra.mxu0 %v737
    %798 = vmatprep.subr.mxu0 0.0
    %799 = vmatpush1.msra.mxu0 %v738
    %800 = vmatprep.subr.mxu0 0.0
    %801 = vmatpush1.msra.mxu0 %v739
    %802 = vmatprep.subr.mxu0 0.0
    %803 = vmatpush1.msra.mxu0 %v740
    %804 = vmatprep.subr.mxu0 0.0
    %805 = vmatpush1.msra.mxu0 %v741
    %806 = vmatprep.subr.mxu0 0.0
    %807 = vmatpush1.msra.mxu0 %v742
    %808 = vmatprep.subr.mxu0 0.0
    %809 = vmatpush1.msra.mxu0 %v743
    %810 = vmatprep.subr.mxu0 0.0
    %811 = vmatpush1.msra.mxu0 %v744
    %812 = vmatprep.subr.mxu0 0.0
    %813 = vmatpush1.msra.mxu0 %v745
    %814 = vmatprep.subr.mxu0 0.0
    %815 = vmatpush1.msra.mxu0 %v746
    %816 = vmatprep.subr.mxu0 0.0
    %817 = vmatpush1.msra.mxu0 %v747
    %818 = vmatprep.subr.mxu0 0.0
    %819 = vmatpush1.msra.mxu0 %v748
    %820 = vmatprep.subr.mxu0 0.0
    %821 = vmatpush1.msra.mxu0 %v749
    %822 = vmatprep.subr.mxu0 0.0
    %823 = vmatpush1.msra.mxu0 %v750
    %824 = vmatprep.subr.mxu0 0.0
    %825 = vmatpush1.msra.mxu0 %v751
    %826 = vmatprep.subr.mxu0 0.0
    %827 = vmatpush1.msra.mxu0 %v752
    %828 = vmatprep.subr.mxu0 0.0
    %829 = vmatpush1.msra.mxu0 %v753
    %830 = vmatprep.subr.mxu0 0.0
    %831 = vmatpush1.msra.mxu0 %v754
    %832 = vmatprep.subr.mxu0 0.0
    %833 = vmatpush1.msra.mxu0 %v755
    %834 = vmatprep.subr.mxu0 0.0
    %835 = vmatpush1.msra.mxu0 %v756
    %836 = vmatprep.subr.mxu0 0.0
    %837 = vmatpush1.msra.mxu0 %v757
    %838 = vmatprep.mubr.f32.mxu0 %v725
    %839 = vmatmul.mubr.f32.gmra.mrb[0].mxu0 %v724
    %v840 = vpop.f32.mrb[0].mxu0
    %v841 = vadd.f32 %v771, %v840
    %v842 = vpop.f32.mrb[0].mxu0
    %843 = vdwg.mxu0
    %844 = vmatprep.subr.mxu0 0.0
    %845 = vmatpush1.msra.mxu0 %v758
    %846 = vmatprep.subr.mxu0 0.0
    %847 = vmatpush1.msra.mxu0 %v759
    %848 = vmatprep.subr.mxu0 0.0
    %849 = vmatpush1.msra.mxu0 %v760
    %850 = vmatprep.subr.mxu0 0.0
    %851 = vmatpush1.msra.mxu0 %v761
    %852 = vmatprep.subr.mxu0 0.0
    %853 = vmatpush1.msra.mxu0 %v762
    %854 = vmatprep.subr.mxu0 0.0
    %855 = vmatpush1.msra.mxu0 %v763
    %856 = vmatprep.subr.mxu0 0.0
    %857 = vmatpush1.msra.mxu0 %v764
    %858 = vmatprep.subr.mxu0 0.0
    %859 = vmatpush1.msra.mxu0 %v765
    %860 = vmatprep.subr.mxu0 0.0
    %861 = vmatpush1.msra.mxu0 %v766
    %862 = vmatprep.subr.mxu0 0.0
    %863 = vmatpush1.msra.mxu0 %v767
    %864 = vmatprep.subr.mxu0 0.0
    %865 = vmatpush1.msra.mxu0 0.0
    %866 = vmatprep.subr.mxu0 0.0
    %867 = vmatpush1.msra.mxu0 0.0
    %868 = vmatprep.subr.mxu0 0.0
    %869 = vmatpush1.msra.mxu0 0.0
    %870 = vmatprep.subr.mxu0 0.0
    %871 = vmatpush1.msra.mxu0 0.0
    %872 = vmatprep.subr.mxu0 0.0
    %873 = vmatpush1.msra.mxu0 0.0
    %874 = vmatprep.subr.mxu0 0.0
    %875 = vmatpush1.msra.mxu0 0.0
    %876 = vmatprep.subr.mxu0 0.0
    %877 = vmatpush1.msra.mxu0 0.0
    %878 = vmatprep.subr.mxu0 0.0
    %879 = vmatpush1.msra.mxu0 0.0
    %880 = vmatprep.subr.mxu0 0.0
    %881 = vmatpush1.msra.mxu0 0.0
    %882 = vmatprep.subr.mxu0 0.0
    %883 = vmatpush1.msra.mxu0 0.0
    %884 = vmatprep.subr.mxu0 0.0
    %885 = vmatpush1.msra.mxu0 0.0
    %886 = vmatprep.subr.mxu0 0.0
    %887 = vmatpush1.msra.mxu0 0.0
    %888 = vmatprep.subr.mxu0 0.0
    %889 = vmatpush1.msra.mxu0 0.0
    %890 = vmatprep.subr.mxu0 0.0
    %891 = vmatpush1.msra.mxu0 0.0
    %892 = vmatprep.subr.mxu0 0.0
    %893 = vmatpush1.msra.mxu0 0.0
    %894 = vmatprep.subr.mxu0 0.0
    %895 = vmatpush1.msra.mxu0 0.0
    %896 = vmatprep.subr.mxu0 0.0
    %897 = vmatpush1.msra.mxu0 0.0
    %898 = vmatprep.subr.mxu0 0.0
    %899 = vmatpush1.msra.mxu0 0.0
    %900 = vmatprep.subr.mxu0 0.0
    %901 = vmatpush1.msra.mxu0 0.0
    %902 = vmatprep.subr.mxu0 0.0
    %903 = vmatpush1.msra.mxu0 0.0
    %904 = vmatprep.subr.mxu0 0.0
    %905 = vmatpush1.msra.mxu0 0.0
    %906 = vmatprep.subr.mxu0 0.0
    %907 = vmatpush1.msra.mxu0 0.0
    %908 = vmatprep.mubr.f32.mxu0 0.0
    %909 = vmatmul.mubr.f32.gmra.mrb[0].mxu0 %v772
    %v910 = vpop.f32.mrb[0].mxu0
    %v911 = vadd.f32 %v841, %v910
    %v912 = vpop.f32.mrb[0].mxu0
    %913 = vdwg.mxu0
    %vm914 = vcmp.gt.f32.partialorder %v911, 0.0
    %v915 = vmul.f32 %v911, 0.01
    %v916 = vsel %vm914, %v911, %v915
    %v918 = vrot.slane %v916, 1
    %919 = vrot.lane.b32.xlu0 %v918, 96
    %v920 = vpop.permute.xlu0 %919
    %v922 = vrot.slane %v916, 2
    %923 = vrot.lane.b32.xlu0 %v922, 64
    %v924 = vpop.permute.xlu0 %923
    %v926 = vsel %vm336, %v916, %v920
    %vm927 = vcmask 523264
    %v928 = vsel %vm927, %v920, %v924
    %v931 = vrot.slane %v926, 2
    %v932 = vrot.slane %v928, 2
    %v933 = vrot.slane %v924, 2
    %v937 = vsel %vm574, %v926, %v931
    %v938 = vsel %vm574, %v928, %v932
    %v939 = vsel %vm574, %v924, %v933
    %v940 = vld [vmem:[%s5] sm:$0xff]
    %v941 = vld [vmem:[%s5 + $0x8] sm:$0xff]
    %v942 = vld [vmem:[%s5 + $0x10] sm:$0xff]
    %v943 = vld [vmem:[%s5 + $0x18] sm:$0xff]
    %v944 = vld [vmem:[%s5 + $0x20] sm:$0xff]
    %v945 = vld [vmem:[%s5 + $0x28] sm:$0xff]
    %v946 = vld [vmem:[%s5 + $0x30] sm:$0xff]
    %v947 = vld [vmem:[%s5 + $0x38] sm:$0xff]
    %v948 = vld [vmem:[%s5 + $0x40] sm:$0xff]
    %v949 = vld [vmem:[%s5 + $0x48] sm:$0xff]
    %v950 = vld [vmem:[%s5 + $0x50] sm:$0xff]
    %v951 = vld [vmem:[%s5 + $0x58] sm:$0xff]
    %v952 = vld [vmem:[%s5 + $0x60] sm:$0xff]
    %v953 = vld [vmem:[%s5 + $0x68] sm:$0xff]
    %v954 = vld [vmem:[%s5 + $0x70] sm:$0xff]
    %v955 = vld [vmem:[%s5 + $0x78] sm:$0xff]
    %v956 = vld [vmem:[%s5 + $0x80] sm:$0xff]
    %v957 = vld [vmem:[%s5 + $0x88] sm:$0xff]
    %v958 = vld [vmem:[%s5 + $0x90] sm:$0xff]
    %v959 = vld [vmem:[%s5 + $0x98] sm:$0xff]
    %v960 = vld [vmem:[%s5 + $0xa0] sm:$0xff]
    %v961 = vld [vmem:[%s5 + $0xa8] sm:$0xff]
    %v962 = vld [vmem:[%s5 + $0xb0] sm:$0xff]
    %v963 = vld [vmem:[%s5 + $0xb8] sm:$0xff]
    %v964 = vld [vmem:[%s5 + $0xc0] sm:$0xff]
    %v965 = vld [vmem:[%s5 + $0xc8] sm:$0xff]
    %v966 = vld [vmem:[%s5 + $0xd0] sm:$0xff]
    %v967 = vld [vmem:[%s5 + $0xd8] sm:$0xff]
    %v968 = vld [vmem:[%s5 + $0xe0] sm:$0xff]
    %v969 = vld [vmem:[%s5 + $0xe8] sm:$0xff]
    %v970 = vld [vmem:[%s5 + $0xf0] sm:$0xff]
    %v971 = vld [vmem:[%s5 + $0xf8] sm:$0xff]
    %v972 = vld [vmem:[%s5 + $0x100] sm:$0xff]
    %v973 = vld [vmem:[%s5 + $0x108] sm:$0xff]
    %v974 = vld [vmem:[%s5 + $0x110] sm:$0xff]
    %v975 = vld [vmem:[%s5 + $0x118] sm:$0xff]
    %v976 = vlaneseq
    %v977 = vshrl.u32 %v976, 7
    %v978 = vsub.s32 5, %v977
    %v979 = vrot.slane %v39, %v978
    %vm980 = vcmask 261120
    %v982 = vsel %vm980, %v939, 0
    %984 = vmatprep.subr.mxu0 0.0
    %985 = vmatpush1.msra.mxu0 %v940
    %986 = vmatprep.subr.mxu0 0.0
    %987 = vmatpush1.msra.mxu0 %v941
    %988 = vmatprep.subr.mxu0 0.0
    %989 = vmatpush1.msra.mxu0 %v942
    %990 = vmatprep.subr.mxu0 0.0
    %991 = vmatpush1.msra.mxu0 %v943
    %992 = vmatprep.subr.mxu0 0.0
    %993 = vmatpush1.msra.mxu0 %v944
    %994 = vmatprep.subr.mxu0 0.0
    %995 = vmatpush1.msra.mxu0 %v945
    %996 = vmatprep.subr.mxu0 0.0
    %997 = vmatpush1.msra.mxu0 %v946
    %998 = vmatprep.subr.mxu0 0.0
    %999 = vmatpush1.msra.mxu0 %v947
    %1000 = vmatprep.subr.mxu0 0.0
    %1001 = vmatpush1.msra.mxu0 %v948
    %1002 = vmatprep.subr.mxu0 0.0
    %1003 = vmatpush1.msra.mxu0 %v949
    %1004 = vmatprep.subr.mxu0 0.0
    %1005 = vmatpush1.msra.mxu0 %v950
    %1006 = vmatprep.subr.mxu0 0.0
    %1007 = vmatpush1.msra.mxu0 %v951
    %1008 = vmatprep.subr.mxu0 0.0
    %1009 = vmatpush1.msra.mxu0 %v952
    %1010 = vmatprep.subr.mxu0 0.0
    %1011 = vmatpush1.msra.mxu0 %v953
    %1012 = vmatprep.subr.mxu0 0.0
    %1013 = vmatpush1.msra.mxu0 %v954
    %1014 = vmatprep.subr.mxu0 0.0
    %1015 = vmatpush1.msra.mxu0 %v955
    %1016 = vmatprep.subr.mxu0 0.0
    %1017 = vmatpush1.msra.mxu0 %v956
    %1018 = vmatprep.subr.mxu0 0.0
    %1019 = vmatpush1.msra.mxu0 %v957
    %1020 = vmatprep.subr.mxu0 0.0
    %1021 = vmatpush1.msra.mxu0 %v958
    %1022 = vmatprep.subr.mxu0 0.0
    %1023 = vmatpush1.msra.mxu0 %v959
    %1024 = vmatprep.subr.mxu0 0.0
    %1025 = vmatpush1.msra.mxu0 %v960
    %1026 = vmatprep.subr.mxu0 0.0
    %1027 = vmatpush1.msra.mxu0 %v961
    %1028 = vmatprep.subr.mxu0 0.0
    %1029 = vmatpush1.msra.mxu0 %v962
    %1030 = vmatprep.subr.mxu0 0.0
    %1031 = vmatpush1.msra.mxu0 %v963
    %1032 = vmatprep.subr.mxu0 0.0
    %1033 = vmatpush1.msra.mxu0 %v964
    %1034 = vmatprep.subr.mxu0 0.0
    %1035 = vmatpush1.msra.mxu0 %v965
    %1036 = vmatprep.subr.mxu0 0.0
    %1037 = vmatpush1.msra.mxu0 %v966
    %1038 = vmatprep.subr.mxu0 0.0
    %1039 = vmatpush1.msra.mxu0 %v967
    %1040 = vmatprep.subr.mxu0 0.0
    %1041 = vmatpush1.msra.mxu0 %v968
    %1042 = vmatprep.subr.mxu0 0.0
    %1043 = vmatpush1.msra.mxu0 %v969
    %1044 = vmatprep.subr.mxu0 0.0
    %1045 = vmatpush1.msra.mxu0 %v970
    %1046 = vmatprep.subr.mxu0 0.0
    %1047 = vmatpush1.msra.mxu0 %v971
    %1048 = vmatprep.mubr.f32.mxu0 %v938
    %1049 = vmatmul.mubr.f32.gmra.mrb[0].mxu0 %v937
    %v1050 = vpop.f32.mrb[0].mxu0
    %v1051 = vadd.f32 %v979, %v1050
    %v1052 = vpop.f32.mrb[0].mxu0
    %1053 = vdwg.mxu0
    %1054 = vmatprep.subr.mxu0 0.0
    %1055 = vmatpush1.msra.mxu0 %v972
    %1056 = vmatprep.subr.mxu0 0.0
    %1057 = vmatpush1.msra.mxu0 %v973
    %1058 = vmatprep.subr.mxu0 0.0
    %1059 = vmatpush1.msra.mxu0 %v974
    %1060 = vmatprep.subr.mxu0 0.0
    %1061 = vmatpush1.msra.mxu0 %v975
    %1062 = vmatprep.subr.mxu0 0.0
    %1063 = vmatpush1.msra.mxu0 0.0
    %1064 = vmatprep.subr.mxu0 0.0
    %1065 = vmatpush1.msra.mxu0 0.0
    %1066 = vmatprep.subr.mxu0 0.0
    %1067 = vmatpush1.msra.mxu0 0.0
    %1068 = vmatprep.subr.mxu0 0.0
    %1069 = vmatpush1.msra.mxu0 0.0
    %1070 = vmatprep.subr.mxu0 0.0
    %1071 = vmatpush1.msra.mxu0 0.0
    %1072 = vmatprep.subr.mxu0 0.0
    %1073 = vmatpush1.msra.mxu0 0.0
    %1074 = vmatprep.subr.mxu0 0.0
    %1075 = vmatpush1.msra.mxu0 0.0
    %1076 = vmatprep.subr.mxu0 0.0
    %1077 = vmatpush1.msra.mxu0 0.0
    %1078 = vmatprep.subr.mxu0 0.0
    %1079 = vmatpush1.msra.mxu0 0.0
    %1080 = vmatprep.subr.mxu0 0.0
    %1081 = vmatpush1.msra.mxu0 0.0
    %1082 = vmatprep.subr.mxu0 0.0
    %1083 = vmatpush1.msra.mxu0 0.0
    %1084 = vmatprep.subr.mxu0 0.0
    %1085 = vmatpush1.msra.mxu0 0.0
    %1086 = vmatprep.subr.mxu0 0.0
    %1087 = vmatpush1.msra.mxu0 0.0
    %1088 = vmatprep.subr.mxu0 0.0
    %1089 = vmatpush1.msra.mxu0 0.0
    %1090 = vmatprep.subr.mxu0 0.0
    %1091 = vmatpush1.msra.mxu0 0.0
    %1092 = vmatprep.subr.mxu0 0.0
    %1093 = vmatpush1.msra.mxu0 0.0
    %1094 = vmatprep.subr.mxu0 0.0
    %1095 = vmatpush1.msra.mxu0 0.0
    %1096 = vmatprep.subr.mxu0 0.0
    %1097 = vmatpush1.msra.mxu0 0.0
    %1098 = vmatprep.subr.mxu0 0.0
    %1099 = vmatpush1.msra.mxu0 0.0
    %1100 = vmatprep.subr.mxu0 0.0
    %1101 = vmatpush1.msra.mxu0 0.0
    %1102 = vmatprep.subr.mxu0 0.0
    %1103 = vmatpush1.msra.mxu0 0.0
    %1104 = vmatprep.subr.mxu0 0.0
    %1105 = vmatpush1.msra.mxu0 0.0
    %1106 = vmatprep.subr.mxu0 0.0
    %1107 = vmatpush1.msra.mxu0 0.0
    %1108 = vmatprep.subr.mxu0 0.0
    %1109 = vmatpush1.msra.mxu0 0.0
    %1110 = vmatprep.subr.mxu0 0.0
    %1111 = vmatpush1.msra.mxu0 0.0
    %1112 = vmatprep.subr.mxu0 0.0
    %1113 = vmatpush1.msra.mxu0 0.0
    %1114 = vmatprep.subr.mxu0 0.0
    %1115 = vmatpush1.msra.mxu0 0.0
    %1116 = vmatprep.subr.mxu0 0.0
    %1117 = vmatpush1.msra.mxu0 0.0
    %1118 = vmatprep.mubr.f32.mxu0 0.0
    %1119 = vmatmul.mubr.f32.gmra.mrb[0].mxu0 %v982
    %v1120 = vpop.f32.mrb[0].mxu0
    %v1121 = vadd.f32 %v1051, %v1120
    %v1122 = vpop.f32.mrb[0].mxu0
    %1123 = vdwg.mxu0
    %vm1124 = vcmp.gt.f32.partialorder %v1121, 0.0
    %v1125 = vmul.f32 %v1121, 0.01
    %v1126 = vsel %vm1124, %v1121, %v1125
    %v1127 = vld [vmem:[%s6] sm:$0xff]
    %v1128 = vld [vmem:[%s6 + $0x8] sm:$0xff]
    %v1129 = vld [vmem:[%s6 + $0x10] sm:$0xff]
    %v1130 = vld [vmem:[%s6 + $0x18] sm:$0xff]
    %v1131 = vld [vmem:[%s6 + $0x20] sm:$0xff]
    %v1132 = vld [vmem:[%s6 + $0x28] sm:$0xff]
    %v1133 = vld [vmem:[%s6 + $0x30] sm:$0xff]
    %v1134 = vld [vmem:[%s6 + $0x38] sm:$0xff]
    %v1135 = vld [vmem:[%s6 + $0x40] sm:$0xff]
    %v1136 = vld [vmem:[%s6 + $0x48] sm:$0xff]
    %v1137 = vld [vmem:[%s6 + $0x50] sm:$0xff]
    %v1138 = vld [vmem:[%s6 + $0x58] sm:$0xff]
    %v1139 = vld [vmem:[%s6 + $0x60] sm:$0xff]
    %v1140 = vld [vmem:[%s6 + $0x68] sm:$0xff]
    %v1141 = vld [vmem:[%s6 + $0x70] sm:$0xff]
    %v1142 = vld [vmem:[%s6 + $0x78] sm:$0xff]
    %v1143 = vlaneseq
    %v1144 = vshrl.u32 %v1143, 7
    %v1145 = vsub.s32 6, %v1144
    %v1146 = vrot.slane %v39, %v1145
    %1147 = vmatprep.subr.mxu0 0.0
    %1148 = vmatpush1.msra.mxu0 %v1127
    %1149 = vmatprep.subr.mxu0 0.0
    %1150 = vmatpush1.msra.mxu0 %v1128
    %1151 = vmatprep.subr.mxu0 0.0
    %1152 = vmatpush1.msra.mxu0 %v1129
    %1153 = vmatprep.subr.mxu0 0.0
    %1154 = vmatpush1.msra.mxu0 %v1130
    %1155 = vmatprep.subr.mxu0 0.0
    %1156 = vmatpush1.msra.mxu0 %v1131
    %1157 = vmatprep.subr.mxu0 0.0
    %1158 = vmatpush1.msra.mxu0 %v1132
    %1159 = vmatprep.subr.mxu0 0.0
    %1160 = vmatpush1.msra.mxu0 %v1133
    %1161 = vmatprep.subr.mxu0 0.0
    %1162 = vmatpush1.msra.mxu0 %v1134
    %1163 = vmatprep.subr.mxu0 0.0
    %1164 = vmatpush1.msra.mxu0 %v1135
    %1165 = vmatprep.subr.mxu0 0.0
    %1166 = vmatpush1.msra.mxu0 %v1136
    %1167 = vmatprep.subr.mxu0 0.0
    %1168 = vmatpush1.msra.mxu0 %v1137
    %1169 = vmatprep.subr.mxu0 0.0
    %1170 = vmatpush1.msra.mxu0 %v1138
    %1171 = vmatprep.subr.mxu0 0.0
    %1172 = vmatpush1.msra.mxu0 %v1139
    %1173 = vmatprep.subr.mxu0 0.0
    %1174 = vmatpush1.msra.mxu0 %v1140
    %1175 = vmatprep.subr.mxu0 0.0
    %1176 = vmatpush1.msra.mxu0 %v1141
    %1177 = vmatprep.subr.mxu0 0.0
    %1178 = vmatpush1.msra.mxu0 %v1142
    %1179 = vmatprep.subr.mxu0 0.0
    %1180 = vmatpush1.msra.mxu0 0.0
    %1181 = vmatprep.subr.mxu0 0.0
    %1182 = vmatpush1.msra.mxu0 0.0
    %1183 = vmatprep.subr.mxu0 0.0
    %1184 = vmatpush1.msra.mxu0 0.0
    %1185 = vmatprep.subr.mxu0 0.0
    %1186 = vmatpush1.msra.mxu0 0.0
    %1187 = vmatprep.subr.mxu0 0.0
    %1188 = vmatpush1.msra.mxu0 0.0
    %1189 = vmatprep.subr.mxu0 0.0
    %1190 = vmatpush1.msra.mxu0 0.0
    %1191 = vmatprep.subr.mxu0 0.0
    %1192 = vmatpush1.msra.mxu0 0.0
    %1193 = vmatprep.subr.mxu0 0.0
    %1194 = vmatpush1.msra.mxu0 0.0
    %1195 = vmatprep.subr.mxu0 0.0
    %1196 = vmatpush1.msra.mxu0 0.0
    %1197 = vmatprep.subr.mxu0 0.0
    %1198 = vmatpush1.msra.mxu0 0.0
    %1199 = vmatprep.subr.mxu0 0.0
    %1200 = vmatpush1.msra.mxu0 0.0
    %1201 = vmatprep.subr.mxu0 0.0
    %1202 = vmatpush1.msra.mxu0 0.0
    %1203 = vmatprep.subr.mxu0 0.0
    %1204 = vmatpush1.msra.mxu0 0.0
    %1205 = vmatprep.subr.mxu0 0.0
    %1206 = vmatpush1.msra.mxu0 0.0
    %1207 = vmatprep.subr.mxu0 0.0
    %1208 = vmatpush1.msra.mxu0 0.0
    %1209 = vmatprep.subr.mxu0 0.0
    %1210 = vmatpush1.msra.mxu0 0.0
    %1211 = vmatprep.mubr.f32.mxu0 0.0
    %1212 = vmatmul.mubr.f32.gmra.mrb[0].mxu0 %v1126
    %v1213 = vpop.f32.mrb[0].mxu0
    %v1214 = vadd.f32 %v1146, %v1213
    %v1215 = vpop.f32.mrb[0].mxu0
    %1216 = vdwg.mxu0
    %v1217 = vmul.f32 %v1214, 1.442695
    %v1218 = vpow.pop %v1217
    %v1219 = vld [vmem:[%s1] sm:$0x3]
    %1221 = vrot.lane.b32.xlu0 %v1219, 4
    %v1222 = vpop.permute.xlu0 %1221
    %v1224 = vmul.f32 %v1218, %v1222
    %1226 = vrot.lane.b32.xlu0 %v1224, 124
    %v1227 = vpop.permute.xlu0 %1226
    %v1229 = vadd.f32 %v1214, %v1227
    %v1230 = vld [vmem:[%s7] sm:$0xf]
    %v1231 = vlaneseq
    %v1232 = vshrl.u32 %v1231, 7
    %v1233 = vsub.s32 7, %v1232
    %v1234 = vrot.slane %v39, %v1233
    %vm1235 = vcmask 31744
    %v1237 = vsel %vm1235, %v1229, 0
    %v1240 = vsel %vm182, %v1230, 0
    %1242 = vmatprep.subr.mxu0 0.0
    %1243 = vmatpush1.msra.mxu0 %v1240
    %1244 = vmatprep.subr.mxu0 0.0
    %1245 = vmatpush1.msra.mxu0 0.0
    %1246 = vmatprep.subr.mxu0 0.0
    %1247 = vmatpush1.msra.mxu0 0.0
    %1248 = vmatprep.subr.mxu0 0.0
    %1249 = vmatpush1.msra.mxu0 0.0
    %1250 = vmatprep.subr.mxu0 0.0
    %1251 = vmatpush1.msra.mxu0 0.0
    %1252 = vmatprep.subr.mxu0 0.0
    %1253 = vmatpush1.msra.mxu0 0.0
    %1254 = vmatprep.subr.mxu0 0.0
    %1255 = vmatpush1.msra.mxu0 0.0
    %1256 = vmatprep.subr.mxu0 0.0
    %1257 = vmatpush1.msra.mxu0 0.0
    %1258 = vmatprep.subr.mxu0 0.0
    %1259 = vmatpush1.msra.mxu0 0.0
    %1260 = vmatprep.subr.mxu0 0.0
    %1261 = vmatpush1.msra.mxu0 0.0
    %1262 = vmatprep.subr.mxu0 0.0
    %1263 = vmatpush1.msra.mxu0 0.0
    %1264 = vmatprep.subr.mxu0 0.0
    %1265 = vmatpush1.msra.mxu0 0.0
    %1266 = vmatprep.subr.mxu0 0.0
    %1267 = vmatpush1.msra.mxu0 0.0
    %1268 = vmatprep.subr.mxu0 0.0
    %1269 = vmatpush1.msra.mxu0 0.0
    %1270 = vmatprep.subr.mxu0 0.0
    %1271 = vmatpush1.msra.mxu0 0.0
    %1272 = vmatprep.subr.mxu0 0.0
    %1273 = vmatpush1.msra.mxu0 0.0
    %1274 = vmatprep.subr.mxu0 0.0
    %1275 = vmatpush1.msra.mxu0 0.0
    %1276 = vmatprep.subr.mxu0 0.0
    %1277 = vmatpush1.msra.mxu0 0.0
    %1278 = vmatprep.subr.mxu0 0.0
    %1279 = vmatpush1.msra.mxu0 0.0
    %1280 = vmatprep.subr.mxu0 0.0
    %1281 = vmatpush1.msra.mxu0 0.0
    %1282 = vmatprep.subr.mxu0 0.0
    %1283 = vmatpush1.msra.mxu0 0.0
    %1284 = vmatprep.subr.mxu0 0.0
    %1285 = vmatpush1.msra.mxu0 0.0
    %1286 = vmatprep.subr.mxu0 0.0
    %1287 = vmatpush1.msra.mxu0 0.0
    %1288 = vmatprep.subr.mxu0 0.0
    %1289 = vmatpush1.msra.mxu0 0.0
    %1290 = vmatprep.subr.mxu0 0.0
    %1291 = vmatpush1.msra.mxu0 0.0
    %1292 = vmatprep.subr.mxu0 0.0
    %1293 = vmatpush1.msra.mxu0 0.0
    %1294 = vmatprep.subr.mxu0 0.0
    %1295 = vmatpush1.msra.mxu0 0.0
    %1296 = vmatprep.subr.mxu0 0.0
    %1297 = vmatpush1.msra.mxu0 0.0
    %1298 = vmatprep.subr.mxu0 0.0
    %1299 = vmatpush1.msra.mxu0 0.0
    %1300 = vmatprep.subr.mxu0 0.0
    %1301 = vmatpush1.msra.mxu0 0.0
    %1302 = vmatprep.subr.mxu0 0.0
    %1303 = vmatpush1.msra.mxu0 0.0
    %1304 = vmatprep.subr.mxu0 0.0
    %1305 = vmatpush1.msra.mxu0 0.0
    %1306 = vmatprep.mubr.f32.mxu0 0.0
    %1307 = vmatmul.mubr.f32.gmra.mrb[0].mxu0 %v1237
    %v1308 = vpop.f32.mrb[0].mxu0
    %v1309 = vadd.f32 %v1234, %v1308
    %v1310 = vpop.f32.mrb[0].mxu0
    %1311 = vdwg.mxu0
    %v1312 = vmax.f32 %v1309, 0.0
    %v1313 = vld [vmem:[%s8] sm:$0xff]
    %v1314 = vld [vmem:[%s8 + $0x8] sm:$0xff]
    %v1315 = vld [vmem:[%s8 + $0x10] sm:$0xff]
    %v1316 = vld [vmem:[%s8 + $0x18] sm:$0xff]
    %v1317 = vld [vmem:[%s8 + $0x20] sm:$0xff]
    %v1318 = vld [vmem:[%s8 + $0x28] sm:$0xff]
    %v1319 = vld [vmem:[%s8 + $0x30] sm:$0xff]
    %v1320 = vld [vmem:[%s8 + $0x38] sm:$0xff]
    %v1321 = vld [vmem:[%s8 + $0x40] sm:$0xff]
    %v1322 = vld [vmem:[%s8 + $0x48] sm:$0xff]
    %v1323 = vld [vmem:[%s8 + $0x50] sm:$0xff]
    %v1324 = vld [vmem:[%s8 + $0x58] sm:$0xff]
    %v1325 = vld [vmem:[%s8 + $0x60] sm:$0xff]
    %v1326 = vld [vmem:[%s8 + $0x68] sm:$0xff]
    %v1327 = vld [vmem:[%s8 + $0x70] sm:$0xff]
    %v1328 = vld [vmem:[%s8 + $0x78] sm:$0xff]
    %v1329 = vld [vmem:[%s8 + $0x80] sm:$0xff]
    %v1330 = vld [vmem:[%s8 + $0x88] sm:$0xff]
    %v1331 = vld [vmem:[%s8 + $0x90] sm:$0xff]
    %v1332 = vld [vmem:[%s8 + $0x98] sm:$0xff]
    %v1333 = vld [vmem:[%s8 + $0xa0] sm:$0xff]
    %v1334 = vld [vmem:[%s8 + $0xa8] sm:$0xff]
    %v1335 = vld [vmem:[%s8 + $0xb0] sm:$0xff]
    %v1336 = vld [vmem:[%s8 + $0xb8] sm:$0xff]
    %v1337 = vld [vmem:[%s8 + $0xc0] sm:$0xff]
    %v1338 = vld [vmem:[%s8 + $0xc8] sm:$0xff]
    %v1339 = vld [vmem:[%s8 + $0xd0] sm:$0xff]
    %v1340 = vld [vmem:[%s8 + $0xd8] sm:$0xff]
    %v1341 = vld [vmem:[%s8 + $0xe0] sm:$0xff]
    %v1342 = vld [vmem:[%s8 + $0xe8] sm:$0xff]
    %v1343 = vld [vmem:[%s8 + $0xf0] sm:$0xff]
    %v1344 = vld [vmem:[%s8 + $0xf8] sm:$0xff]
    %v1345 = vld [vmem:[%s8 + $0x100] sm:$0xff]
    %v1346 = vld [vmem:[%s8 + $0x108] sm:$0xff]
    %v1347 = vld [vmem:[%s8 + $0x110] sm:$0xff]
    %v1348 = vld [vmem:[%s8 + $0x118] sm:$0xff]
    %v1349 = vld [vmem:[%s8 + $0x120] sm:$0xff]
    %v1350 = vld [vmem:[%s8 + $0x128] sm:$0xff]
    %v1351 = vld [vmem:[%s8 + $0x130] sm:$0xff]
    %v1352 = vld [vmem:[%s8 + $0x138] sm:$0xff]
    %v1353 = vld [vmem:[%s8 + $0x140] sm:$0xff]
    %v1354 = vld [vmem:[%s8 + $0x148] sm:$0xff]
    %v1355 = vld [vmem:[%s8 + $0x150] sm:$0xff]
    %v1356 = vld [vmem:[%s8 + $0x158] sm:$0xff]
    %v1357 = vld [vmem:[%s8 + $0x160] sm:$0xff]
    %v1358 = vld [vmem:[%s8 + $0x168] sm:$0xff]
    %v1359 = vld [vmem:[%s8 + $0x170] sm:$0xff]
    %v1360 = vld [vmem:[%s8 + $0x178] sm:$0xff]
    %v1361 = vlaneseq
    %v1362 = vshrl.u32 %v1361, 7
    %v1363 = vsub.s32 0, %v1362
    %v1364 = vrot.slane %v40, %v1363
    %v1365 = vlaneseq
    %v1366 = vshrl.u32 %v1365, 7
    %v1367 = vsub.s32 0, %v1366
    %v1368 = vrot.slane %v41, %v1367
    %v1369 = vlaneseq
    %v1370 = vshrl.u32 %v1369, 7
    %v1371 = vsub.s32 0, %v1370
    %v1372 = vrot.slane %v42, %v1371
    %1373 = vmatprep.subr.mxu0 %v1314
    %1374 = vmatpush1.msra.mxu0 %v1313
    %1375 = vmatprep.subr.mxu0 %v1317
    %1376 = vmatpush1.msra.mxu0 %v1316
    %1377 = vmatprep.subr.mxu0 %v1320
    %1378 = vmatpush1.msra.mxu0 %v1319
    %1379 = vmatprep.subr.mxu0 %v1323
    %1380 = vmatpush1.msra.mxu0 %v1322
    %1381 = vmatprep.subr.mxu0 %v1326
    %1382 = vmatpush1.msra.mxu0 %v1325
    %1383 = vmatprep.subr.mxu0 %v1329
    %1384 = vmatpush1.msra.mxu0 %v1328
    %1385 = vmatprep.subr.mxu0 %v1332
    %1386 = vmatpush1.msra.mxu0 %v1331
    %1387 = vmatprep.subr.mxu0 %v1335
    %1388 = vmatpush1.msra.mxu0 %v1334
    %1389 = vmatprep.subr.mxu0 %v1338
    %1390 = vmatpush1.msra.mxu0 %v1337
    %1391 = vmatprep.subr.mxu0 %v1341
    %1392 = vmatpush1.msra.mxu0 %v1340
    %1393 = vmatprep.subr.mxu0 %v1344
    %1394 = vmatpush1.msra.mxu0 %v1343
    %1395 = vmatprep.subr.mxu0 %v1347
    %1396 = vmatpush1.msra.mxu0 %v1346
    %1397 = vmatprep.subr.mxu0 %v1350
    %1398 = vmatpush1.msra.mxu0 %v1349
    %1399 = vmatprep.subr.mxu0 %v1353
    %1400 = vmatpush1.msra.mxu0 %v1352
    %1401 = vmatprep.subr.mxu0 %v1356
    %1402 = vmatpush1.msra.mxu0 %v1355
    %1403 = vmatprep.subr.mxu0 %v1359
    %1404 = vmatpush1.msra.mxu0 %v1358
    %1405 = vmatprep.subr.mxu0 0.0
    %1406 = vmatpush1.msra.mxu0 0.0
    %1407 = vmatprep.subr.mxu0 0.0
    %1408 = vmatpush1.msra.mxu0 0.0
    %1409 = vmatprep.subr.mxu0 0.0
    %1410 = vmatpush1.msra.mxu0 0.0
    %1411 = vmatprep.subr.mxu0 0.0
    %1412 = vmatpush1.msra.mxu0 0.0
    %1413 = vmatprep.subr.mxu0 0.0
    %1414 = vmatpush1.msra.mxu0 0.0
    %1415 = vmatprep.subr.mxu0 0.0
    %1416 = vmatpush1.msra.mxu0 0.0
    %1417 = vmatprep.subr.mxu0 0.0
    %1418 = vmatpush1.msra.mxu0 0.0
    %1419 = vmatprep.subr.mxu0 0.0
    %1420 = vmatpush1.msra.mxu0 0.0
    %1421 = vmatprep.subr.mxu0 0.0
    %1422 = vmatpush1.msra.mxu0 0.0
    %1423 = vmatprep.subr.mxu0 0.0
    %1424 = vmatpush1.msra.mxu0 0.0
    %1425 = vmatprep.subr.mxu0 0.0
    %1426 = vmatpush1.msra.mxu0 0.0
    %1427 = vmatprep.subr.mxu0 0.0
    %1428 = vmatpush1.msra.mxu0 0.0
    %1429 = vmatprep.subr.mxu0 0.0
    %1430 = vmatpush1.msra.mxu0 0.0
    %1431 = vmatprep.subr.mxu0 0.0
    %1432 = vmatpush1.msra.mxu0 0.0
    %1433 = vmatprep.subr.mxu0 0.0
    %1434 = vmatpush1.msra.mxu0 0.0
    %1435 = vmatprep.subr.mxu0 0.0
    %1436 = vmatpush1.msra.mxu0 0.0
    %1437 = vmatprep.mubr.f32.mxu0 0.0
    %1438 = vmatmul.mubr.f32.gmra.mrb[0].mxu0 %v1312
    %v1439 = vpop.f32.mrb[0].mxu0
    %v1440 = vadd.f32 %v1364, %v1439
    %v1441 = vpop.f32.mrb[0].mxu0
    %v1442 = vadd.f32 %v1368, %v1441
    %1443 = vdwg.mxu0
    %1444 = vmatprep.subr.mxu0 0.0
    %1445 = vmatpush1.msra.mxu0 %v1315
    %1446 = vmatprep.subr.mxu0 0.0
    %1447 = vmatpush1.msra.mxu0 %v1318
    %1448 = vmatprep.subr.mxu0 0.0
    %1449 = vmatpush1.msra.mxu0 %v1321
    %1450 = vmatprep.subr.mxu0 0.0
    %1451 = vmatpush1.msra.mxu0 %v1324
    %1452 = vmatprep.subr.mxu0 0.0
    %1453 = vmatpush1.msra.mxu0 %v1327
    %1454 = vmatprep.subr.mxu0 0.0
    %1455 = vmatpush1.msra.mxu0 %v1330
    %1456 = vmatprep.subr.mxu0 0.0
    %1457 = vmatpush1.msra.mxu0 %v1333
    %1458 = vmatprep.subr.mxu0 0.0
    %1459 = vmatpush1.msra.mxu0 %v1336
    %1460 = vmatprep.subr.mxu0 0.0
    %1461 = vmatpush1.msra.mxu0 %v1339
    %1462 = vmatprep.subr.mxu0 0.0
    %1463 = vmatpush1.msra.mxu0 %v1342
    %1464 = vmatprep.subr.mxu0 0.0
    %1465 = vmatpush1.msra.mxu0 %v1345
    %1466 = vmatprep.subr.mxu0 0.0
    %1467 = vmatpush1.msra.mxu0 %v1348
    %1468 = vmatprep.subr.mxu0 0.0
    %1469 = vmatpush1.msra.mxu0 %v1351
    %1470 = vmatprep.subr.mxu0 0.0
    %1471 = vmatpush1.msra.mxu0 %v1354
    %1472 = vmatprep.subr.mxu0 0.0
    %1473 = vmatpush1.msra.mxu0 %v1357
    %1474 = vmatprep.subr.mxu0 0.0
    %1475 = vmatpush1.msra.mxu0 %v1360
    %1476 = vmatprep.subr.mxu0 0.0
    %1477 = vmatpush1.msra.mxu0 0.0
    %1478 = vmatprep.subr.mxu0 0.0
    %1479 = vmatpush1.msra.mxu0 0.0
    %1480 = vmatprep.subr.mxu0 0.0
    %1481 = vmatpush1.msra.mxu0 0.0
    %1482 = vmatprep.subr.mxu0 0.0
    %1483 = vmatpush1.msra.mxu0 0.0
    %1484 = vmatprep.subr.mxu0 0.0
    %1485 = vmatpush1.msra.mxu0 0.0
    %1486 = vmatprep.subr.mxu0 0.0
    %1487 = vmatpush1.msra.mxu0 0.0
    %1488 = vmatprep.subr.mxu0 0.0
    %1489 = vmatpush1.msra.mxu0 0.0
    %1490 = vmatprep.subr.mxu0 0.0
    %1491 = vmatpush1.msra.mxu0 0.0
    %1492 = vmatprep.subr.mxu0 0.0
    %1493 = vmatpush1.msra.mxu0 0.0
    %1494 = vmatprep.subr.mxu0 0.0
    %1495 = vmatpush1.msra.mxu0 0.0
    %1496 = vmatprep.subr.mxu0 0.0
    %1497 = vmatpush1.msra.mxu0 0.0
    %1498 = vmatprep.subr.mxu0 0.0
    %1499 = vmatpush1.msra.mxu0 0.0
    %1500 = vmatprep.subr.mxu0 0.0
    %1501 = vmatpush1.msra.mxu0 0.0
    %1502 = vmatprep.subr.mxu0 0.0
    %1503 = vmatpush1.msra.mxu0 0.0
    %1504 = vmatprep.subr.mxu0 0.0
    %1505 = vmatpush1.msra.mxu0 0.0
    %1506 = vmatprep.subr.mxu0 0.0
    %1507 = vmatpush1.msra.mxu0 0.0
    %1508 = vmatprep.mubr.f32.mxu0 0.0
    %1509 = vmatmul.mubr.f32.gmra.mrb[0].mxu0 %v1312
    %v1510 = vpop.f32.mrb[0].mxu0
    %v1511 = vadd.f32 %v1372, %v1510
    %v1512 = vpop.f32.mrb[0].mxu0
    %1513 = vdwg.mxu0
    %v1514 = vmax.f32 %v1440, 0.0
    %v1515 = vmax.f32 %v1442, 0.0
    %v1516 = vmax.f32 %v1511, 0.0
    %v1519 = vrot.slane %v1514, 6
    %v1520 = vrot.slane %v1515, 6
    %1521 = vrot.lane.b32.xlu0 %v1519, 32
    %v1522 = vpop.permute.xlu0 %1521
    %1523 = vrot.lane.b32.xlu0 %v1520, 32
    %v1524 = vpop.permute.xlu0 %1523
    %v1525 = vsel %vm980, %v1522, %v1524
    %v1528 = vrot.slane %v1515, 4
    %v1529 = vrot.slane %v1516, 4
    %1530 = vrot.lane.b32.xlu0 %v1528, 64
    %v1531 = vpop.permute.xlu0 %1530
    %1532 = vrot.lane.b32.xlu0 %v1529, 64
    %v1533 = vpop.permute.xlu0 %1532
    %v1534 = vsel %vm927, %v1531, %v1533
    %vm1536 = vcmask 1041408
    %v1537 = vsel %vm1536, %v1514, %v1525
    %v1538 = vsel %vm182, %v1537, %v1534
    %v1539 = vld [vmem:[%s9] sm:$0xff]
    %v1540 = vld [vmem:[%s9 + $0x8] sm:$0xff]
    %v1541 = vld [vmem:[%s9 + $0x10] sm:$0x3]
    %vm1542 = vcmask 48128
    %v1544 = vsel %vm1542, %v1539, 0
    %v1547 = vsel %vm1542, %v1540, 0
    %v1550 = vsel %vm1542, %v1541, 0
    %v1553 = vsel %vm79, %v1538, 0
    %1555 = vmatprep.subr.mxu0 0.0
    %1556 = vmatpush1.msra.mxu0 %v1553
    %1557 = vmatprep.subr.mxu0 0.0
    %1558 = vmatpush1.msra.mxu0 0.0
    %1559 = vmatprep.subr.mxu0 0.0
    %1560 = vmatpush1.msra.mxu0 0.0
    %1561 = vmatprep.subr.mxu0 0.0
    %1562 = vmatpush1.msra.mxu0 0.0
    %1563 = vmatprep.subr.mxu0 0.0
    %1564 = vmatpush1.msra.mxu0 0.0
    %1565 = vmatprep.subr.mxu0 0.0
    %1566 = vmatpush1.msra.mxu0 0.0
    %1567 = vmatprep.subr.mxu0 0.0
    %1568 = vmatpush1.msra.mxu0 0.0
    %1569 = vmatprep.subr.mxu0 0.0
    %1570 = vmatpush1.msra.mxu0 0.0
    %1571 = vmatprep.subr.mxu0 0.0
    %1572 = vmatpush1.msra.mxu0 0.0
    %1573 = vmatprep.subr.mxu0 0.0
    %1574 = vmatpush1.msra.mxu0 0.0
    %1575 = vmatprep.subr.mxu0 0.0
    %1576 = vmatpush1.msra.mxu0 0.0
    %1577 = vmatprep.subr.mxu0 0.0
    %1578 = vmatpush1.msra.mxu0 0.0
    %1579 = vmatprep.subr.mxu0 0.0
    %1580 = vmatpush1.msra.mxu0 0.0
    %1581 = vmatprep.subr.mxu0 0.0
    %1582 = vmatpush1.msra.mxu0 0.0
    %1583 = vmatprep.subr.mxu0 0.0
    %1584 = vmatpush1.msra.mxu0 0.0
    %1585 = vmatprep.subr.mxu0 0.0
    %1586 = vmatpush1.msra.mxu0 0.0
    %1587 = vmatprep.subr.mxu0 0.0
    %1588 = vmatpush1.msra.mxu0 0.0
    %1589 = vmatprep.subr.mxu0 0.0
    %1590 = vmatpush1.msra.mxu0 0.0
    %1591 = vmatprep.subr.mxu0 0.0
    %1592 = vmatpush1.msra.mxu0 0.0
    %1593 = vmatprep.subr.mxu0 0.0
    %1594 = vmatpush1.msra.mxu0 0.0
    %1595 = vmatprep.subr.mxu0 0.0
    %1596 = vmatpush1.msra.mxu0 0.0
    %1597 = vmatprep.subr.mxu0 0.0
    %1598 = vmatpush1.msra.mxu0 0.0
    %1599 = vmatprep.subr.mxu0 0.0
    %1600 = vmatpush1.msra.mxu0 0.0
    %1601 = vmatprep.subr.mxu0 0.0
    %1602 = vmatpush1.msra.mxu0 0.0
    %1603 = vmatprep.subr.mxu0 0.0
    %1604 = vmatpush1.msra.mxu0 0.0
    %1605 = vmatprep.subr.mxu0 0.0
    %1606 = vmatpush1.msra.mxu0 0.0
    %1607 = vmatprep.subr.mxu0 0.0
    %1608 = vmatpush1.msra.mxu0 0.0
    %1609 = vmatprep.subr.mxu0 0.0
    %1610 = vmatpush1.msra.mxu0 0.0
    %1611 = vmatprep.subr.mxu0 0.0
    %1612 = vmatpush1.msra.mxu0 0.0
    %1613 = vmatprep.subr.mxu0 0.0
    %1614 = vmatpush1.msra.mxu0 0.0
    %1615 = vmatprep.subr.mxu0 0.0
    %1616 = vmatpush1.msra.mxu0 0.0
    %1617 = vmatprep.subr.mxu0 0.0
    %1618 = vmatpush1.msra.mxu0 0.0
    %1619 = vmatprep.mubr.f32.mxu0 0.0
    %1620 = vmatmul.mubr.f32.gmra.mrb[0].mxu0 %v1544
    %v1621 = vpop.f32.mrb[0].mxu0
    %v1622 = vadd.f32 0.0, %v1621
    %v1623 = vpop.f32.mrb[0].mxu0
    %1624 = vmatprep.mubr.f32.mxu0 0.0
    %1625 = vmatmul.mubr.f32.gmra.mrb[0].mxu0 %v1547
    %v1626 = vpop.f32.mrb[0].mxu0
    %v1627 = vadd.f32 0.0, %v1626
    %v1628 = vpop.f32.mrb[0].mxu0
    %1629 = vmatprep.mubr.f32.mxu0 0.0
    %1630 = vmatmul.mubr.f32.gmra.mrb[0].mxu0 %v1550
    %v1631 = vpop.f32.mrb[0].mxu0
    %v1632 = vadd.f32 0.0, %v1631
    %v1633 = vpop.f32.mrb[0].mxu0
    %1634 = vdwg.mxu0
    %v1637 = vrot.slane %v1622, 2
    %v1638 = vrot.slane %v1627, 2
    %v1639 = vsel %vm79, %v1637, %v1638
    %v1642 = vrot.slane %v1627, 4
    %v1643 = vrot.slane %v1632, 4
    %v1644 = vsel %vm182, %v1642, %v1643
    %v1647 = vsel %vm302, %v1639, %v1642
    %v1648 = vrot.slane %v1622, 1
    %vm1650 = vcmask 1044480
    %v1651 = vrot.slane %v1627, 3
    %v1652 = vrot.slane %v1632, 3
    %v1653 = vsel %vm1650, %v1651, %v1652
    %v1655 = vsel %vm302, %v1648, %v1651
    %v1657 = vsel %vm302, %v1622, %v1638
    %1659 = vrot.lane.b32.xlu0 %v1655, 96
    %v1660 = vpop.permute.xlu0 %1659
    %1661 = vrot.lane.b32.xlu0 %v1653, 96
    %v1662 = vpop.permute.xlu0 %1661
    %1666 = vrot.lane.b32.xlu0 %v1657, 64
    %v1667 = vpop.permute.xlu0 %1666
    %1668 = vrot.lane.b32.xlu0 %v1638, 64
    %v1669 = vpop.permute.xlu0 %1668
    %v1672 = vsel %vm336, %v1647, %v1660
    %v1673 = vsel %vm336, %v1644, %v1662
    %v1674 = vsel %vm927, %v1660, %v1667
    %v1675 = vsel %vm927, %v1662, %v1669
    %v1676 = vld [vmem:[%s10] sm:$0xff]
    %v1677 = vld [vmem:[%s10 + $0x8] sm:$0xff]
    %v1678 = vld [vmem:[%s10 + $0x10] sm:$0xff]
    %v1679 = vld [vmem:[%s10 + $0x18] sm:$0xff]
    %v1680 = vld [vmem:[%s10 + $0x20] sm:$0xff]
    %v1681 = vld [vmem:[%s10 + $0x28] sm:$0xff]
    %v1682 = vld [vmem:[%s10 + $0x30] sm:$0xff]
    %v1683 = vld [vmem:[%s10 + $0x38] sm:$0xff]
    %v1684 = vld [vmem:[%s10 + $0x40] sm:$0xff]
    %v1685 = vld [vmem:[%s10 + $0x48] sm:$0xff]
    %v1686 = vld [vmem:[%s10 + $0x50] sm:$0xff]
    %v1687 = vld [vmem:[%s10 + $0x58] sm:$0xff]
    %v1688 = vld [vmem:[%s10 + $0x60] sm:$0xff]
    %v1689 = vld [vmem:[%s10 + $0x68] sm:$0xff]
    %v1690 = vld [vmem:[%s10 + $0x70] sm:$0xff]
    %v1691 = vld [vmem:[%s10 + $0x78] sm:$0xff]
    %v1692 = vld [vmem:[%s10 + $0x80] sm:$0xff]
    %v1693 = vld [vmem:[%s10 + $0x88] sm:$0xff]
    %v1694 = vld [vmem:[%s10 + $0x90] sm:$0xff]
    %v1695 = vld [vmem:[%s10 + $0x98] sm:$0xff]
    %v1696 = vld [vmem:[%s10 + $0xa0] sm:$0xff]
    %v1697 = vld [vmem:[%s10 + $0xa8] sm:$0xff]
    %v1698 = vld [vmem:[%s10 + $0xb0] sm:$0xff]
    %v1699 = vld [vmem:[%s10 + $0xb8] sm:$0xff]
    %v1700 = vld [vmem:[%s10 + $0xc0] sm:$0xff]
    %v1701 = vld [vmem:[%s10 + $0xc8] sm:$0xff]
    %v1702 = vld [vmem:[%s10 + $0xd0] sm:$0xff]
    %v1703 = vld [vmem:[%s10 + $0xd8] sm:$0xff]
    %v1704 = vld [vmem:[%s10 + $0xe0] sm:$0xff]
    %v1705 = vld [vmem:[%s10 + $0xe8] sm:$0xff]
    %v1706 = vld [vmem:[%s10 + $0xf0] sm:$0xff]
    %v1707 = vld [vmem:[%s10 + $0xf8] sm:$0xff]
    %v1708 = vld [vmem:[%s10 + $0x100] sm:$0xff]
    %v1709 = vld [vmem:[%s10 + $0x108] sm:$0xff]
    %v1710 = vld [vmem:[%s10 + $0x110] sm:$0xff]
    %v1711 = vld [vmem:[%s10 + $0x118] sm:$0xff]
    %v1712 = vlaneseq
    %v1713 = vshrl.u32 %v1712, 7
    %v1714 = vsub.s32 1, %v1713
    %v1715 = vrot.slane %v40, %v1714
    %v1716 = vsel %vm980, %v1667, 0
    %v1718 = vsel %vm980, %v1669, 0
    %1720 = vmatprep.subr.mxu0 0.0
    %1721 = vmatpush1.msra.mxu0 %v1676
    %1722 = vmatprep.subr.mxu0 0.0
    %1723 = vmatpush1.msra.mxu0 %v1677
    %1724 = vmatprep.subr.mxu0 0.0
    %1725 = vmatpush1.msra.mxu0 %v1678
    %1726 = vmatprep.subr.mxu0 0.0
    %1727 = vmatpush1.msra.mxu0 %v1679
    %1728 = vmatprep.subr.mxu0 0.0
    %1729 = vmatpush1.msra.mxu0 %v1680
    %1730 = vmatprep.subr.mxu0 0.0
    %1731 = vmatpush1.msra.mxu0 %v1681
    %1732 = vmatprep.subr.mxu0 0.0
    %1733 = vmatpush1.msra.mxu0 %v1682
    %1734 = vmatprep.subr.mxu0 0.0
    %1735 = vmatpush1.msra.mxu0 %v1683
    %1736 = vmatprep.subr.mxu0 0.0
    %1737 = vmatpush1.msra.mxu0 %v1684
    %1738 = vmatprep.subr.mxu0 0.0
    %1739 = vmatpush1.msra.mxu0 %v1685
    %1740 = vmatprep.subr.mxu0 0.0
    %1741 = vmatpush1.msra.mxu0 %v1686
    %1742 = vmatprep.subr.mxu0 0.0
    %1743 = vmatpush1.msra.mxu0 %v1687
    %1744 = vmatprep.subr.mxu0 0.0
    %1745 = vmatpush1.msra.mxu0 %v1688
    %1746 = vmatprep.subr.mxu0 0.0
    %1747 = vmatpush1.msra.mxu0 %v1689
    %1748 = vmatprep.subr.mxu0 0.0
    %1749 = vmatpush1.msra.mxu0 %v1690
    %1750 = vmatprep.subr.mxu0 0.0
    %1751 = vmatpush1.msra.mxu0 %v1691
    %1752 = vmatprep.subr.mxu0 0.0
    %1753 = vmatpush1.msra.mxu0 %v1692
    %1754 = vmatprep.subr.mxu0 0.0
    %1755 = vmatpush1.msra.mxu0 %v1693
    %1756 = vmatprep.subr.mxu0 0.0
    %1757 = vmatpush1.msra.mxu0 %v1694
    %1758 = vmatprep.subr.mxu0 0.0
    %1759 = vmatpush1.msra.mxu0 %v1695
    %1760 = vmatprep.subr.mxu0 0.0
    %1761 = vmatpush1.msra.mxu0 %v1696
    %1762 = vmatprep.subr.mxu0 0.0
    %1763 = vmatpush1.msra.mxu0 %v1697
    %1764 = vmatprep.subr.mxu0 0.0
    %1765 = vmatpush1.msra.mxu0 %v1698
    %1766 = vmatprep.subr.mxu0 0.0
    %1767 = vmatpush1.msra.mxu0 %v1699
    %1768 = vmatprep.subr.mxu0 0.0
    %1769 = vmatpush1.msra.mxu0 %v1700
    %1770 = vmatprep.subr.mxu0 0.0
    %1771 = vmatpush1.msra.mxu0 %v1701
    %1772 = vmatprep.subr.mxu0 0.0
    %1773 = vmatpush1.msra.mxu0 %v1702
    %1774 = vmatprep.subr.mxu0 0.0
    %1775 = vmatpush1.msra.mxu0 %v1703
    %1776 = vmatprep.subr.mxu0 0.0
    %1777 = vmatpush1.msra.mxu0 %v1704
    %1778 = vmatprep.subr.mxu0 0.0
    %1779 = vmatpush1.msra.mxu0 %v1705
    %1780 = vmatprep.subr.mxu0 0.0
    %1781 = vmatpush1.msra.mxu0 %v1706
    %1782 = vmatprep.subr.mxu0 0.0
    %1783 = vmatpush1.msra.mxu0 %v1707
    %1784 = vmatprep.mubr.f32.mxu0 %v1674
    %1785 = vmatmul.mubr.f32.gmra.mrb[0].mxu0 %v1672
    %v1786 = vpop.f32.mrb[0].mxu0
    %v1787 = vadd.f32 %v1715, %v1786
    %v1788 = vpop.f32.mrb[0].mxu0
    %1789 = vmatprep.mubr.f32.mxu0 %v1675
    %1790 = vmatmul.mubr.f32.gmra.mrb[0].mxu0 %v1673
    %v1791 = vpop.f32.mrb[0].mxu0
    %v1792 = vadd.f32 %v1715, %v1791
    %v1793 = vpop.f32.mrb[0].mxu0
    %1794 = vdwg.mxu0
    %1795 = vmatprep.subr.mxu0 0.0
    %1796 = vmatpush1.msra.mxu0 %v1708
    %1797 = vmatprep.subr.mxu0 0.0
    %1798 = vmatpush1.msra.mxu0 %v1709
    %1799 = vmatprep.subr.mxu0 0.0
    %1800 = vmatpush1.msra.mxu0 %v1710
    %1801 = vmatprep.subr.mxu0 0.0
    %1802 = vmatpush1.msra.mxu0 %v1711
    %1803 = vmatprep.subr.mxu0 0.0
    %1804 = vmatpush1.msra.mxu0 0.0
    %1805 = vmatprep.subr.mxu0 0.0
    %1806 = vmatpush1.msra.mxu0 0.0
    %1807 = vmatprep.subr.mxu0 0.0
    %1808 = vmatpush1.msra.mxu0 0.0
    %1809 = vmatprep.subr.mxu0 0.0
    %1810 = vmatpush1.msra.mxu0 0.0
    %1811 = vmatprep.subr.mxu0 0.0
    %1812 = vmatpush1.msra.mxu0 0.0
    %1813 = vmatprep.subr.mxu0 0.0
    %1814 = vmatpush1.msra.mxu0 0.0
    %1815 = vmatprep.subr.mxu0 0.0
    %1816 = vmatpush1.msra.mxu0 0.0
    %1817 = vmatprep.subr.mxu0 0.0
    %1818 = vmatpush1.msra.mxu0 0.0
    %1819 = vmatprep.subr.mxu0 0.0
    %1820 = vmatpush1.msra.mxu0 0.0
    %1821 = vmatprep.subr.mxu0 0.0
    %1822 = vmatpush1.msra.mxu0 0.0
    %1823 = vmatprep.subr.mxu0 0.0
    %1824 = vmatpush1.msra.mxu0 0.0
    %1825 = vmatprep.subr.mxu0 0.0
    %1826 = vmatpush1.msra.mxu0 0.0
    %1827 = vmatprep.subr.mxu0 0.0
    %1828 = vmatpush1.msra.mxu0 0.0
    %1829 = vmatprep.subr.mxu0 0.0
    %1830 = vmatpush1.msra.mxu0 0.0
    %1831 = vmatprep.subr.mxu0 0.0
    %1832 = vmatpush1.msra.mxu0 0.0
    %1833 = vmatprep.subr.mxu0 0.0
    %1834 = vmatpush1.msra.mxu0 0.0
    %1835 = vmatprep.subr.mxu0 0.0
    %1836 = vmatpush1.msra.mxu0 0.0
    %1837 = vmatprep.subr.mxu0 0.0
    %1838 = vmatpush1.msra.mxu0 0.0
    %1839 = vmatprep.subr.mxu0 0.0
    %1840 = vmatpush1.msra.mxu0 0.0
    %1841 = vmatprep.subr.mxu0 0.0
    %1842 = vmatpush1.msra.mxu0 0.0
    %1843 = vmatprep.subr.mxu0 0.0
    %1844 = vmatpush1.msra.mxu0 0.0
    %1845 = vmatprep.subr.mxu0 0.0
    %1846 = vmatpush1.msra.mxu0 0.0
    %1847 = vmatprep.subr.mxu0 0.0
    %1848 = vmatpush1.msra.mxu0 0.0
    %1849 = vmatprep.subr.mxu0 0.0
    %1850 = vmatpush1.msra.mxu0 0.0
    %1851 = vmatprep.subr.mxu0 0.0
    %1852 = vmatpush1.msra.mxu0 0.0
    %1853 = vmatprep.subr.mxu0 0.0
    %1854 = vmatpush1.msra.mxu0 0.0
    %1855 = vmatprep.subr.mxu0 0.0
    %1856 = vmatpush1.msra.mxu0 0.0
    %1857 = vmatprep.subr.mxu0 0.0
    %1858 = vmatpush1.msra.mxu0 0.0
    %1859 = vmatprep.mubr.f32.mxu0 0.0
    %1860 = vmatmul.mubr.f32.gmra.mrb[0].mxu0 %v1716
    %v1861 = vpop.f32.mrb[0].mxu0
    %v1862 = vadd.f32 %v1787, %v1861
    %v1863 = vpop.f32.mrb[0].mxu0
    %1864 = vmatprep.mubr.f32.mxu0 0.0
    %1865 = vmatmul.mubr.f32.gmra.mrb[0].mxu0 %v1718
    %v1866 = vpop.f32.mrb[0].mxu0
    %v1867 = vadd.f32 %v1792, %v1866
    %v1868 = vpop.f32.mrb[0].mxu0
    %1869 = vdwg.mxu0
    %v1870 = vld [vmem:[%s3] sm:$0xff]
    %v1871 = vld [vmem:[%s3 + $0x8] sm:$0xff]
    %v1872 = vld [vmem:[%s3 + $0x10] sm:$0xff]
    %v1873 = vld [vmem:[%s3 + $0x18] sm:$0xff]
    %v1874 = vld [vmem:[%s3 + $0x20] sm:$0xff]
    %v1875 = vld [vmem:[%s3 + $0x28] sm:$0xff]
    %v1876 = vld [vmem:[%s3 + $0x30] sm:$0xff]
    %v1877 = vld [vmem:[%s3 + $0x38] sm:$0xff]
    %v1878 = vld [vmem:[%s3 + $0x40] sm:$0xff]
    %v1879 = vld [vmem:[%s3 + $0x48] sm:$0xff]
    %v1880 = vld [vmem:[%s3 + $0x50] sm:$0xff]
    %v1881 = vld [vmem:[%s3 + $0x58] sm:$0xff]
    %v1882 = vld [vmem:[%s3 + $0x60] sm:$0xff]
    %v1883 = vld [vmem:[%s3 + $0x68] sm:$0xff]
    %v1884 = vsel %vm283, %v1862, 0.0
    %v1885 = vsel %vm287, %v1867, 0.0
    %v1886 = vadd.f32 %v1884, %v1885
    %v1887 = vrot.slane %v1886, 4
    %v1888 = vadd.f32 %v1886, %v1887
    %v1889 = vrot.slane %v1888, 2
    %v1890 = vadd.f32 %v1888, %v1889
    %v1891 = vrot.slane %v1890, 1
    %v1892 = vadd.f32 %v1890, %v1891
    %v1893 = vmul.f32 %v1862, %v1862
    %v1894 = vmul.f32 %v1867, %v1867
    %v1895 = vsel %vm283, %v1893, 0.0
    %v1896 = vsel %vm287, %v1894, 0.0
    %v1897 = vadd.f32 %v1895, %v1896
    %v1898 = vrot.slane %v1897, 4
    %v1899 = vadd.f32 %v1897, %v1898
    %v1900 = vrot.slane %v1899, 2
    %v1901 = vadd.f32 %v1899, %v1900
    %v1902 = vrot.slane %v1901, 1
    %v1903 = vadd.f32 %v1901, %v1902
    %v1904 = vsel %vm574, %v1892, %v1903
    %v1906 = vsel %vm283, %v1904, 0
    %1908 = vmatprep.subr.mxu0 0.0
    %1909 = vmatpush1.msra.mxu0 %v1870
    %1910 = vmatprep.subr.mxu0 0.0
    %1911 = vmatpush1.msra.mxu0 %v1871
    %1912 = vmatprep.subr.mxu0 0.0
    %1913 = vmatpush1.msra.mxu0 %v1872
    %1914 = vmatprep.subr.mxu0 0.0
    %1915 = vmatpush1.msra.mxu0 %v1873
    %1916 = vmatprep.subr.mxu0 0.0
    %1917 = vmatpush1.msra.mxu0 %v1874
    %1918 = vmatprep.subr.mxu0 0.0
    %1919 = vmatpush1.msra.mxu0 %v1875
    %1920 = vmatprep.subr.mxu0 0.0
    %1921 = vmatpush1.msra.mxu0 %v1876
    %1922 = vmatprep.subr.mxu0 0.0
    %1923 = vmatpush1.msra.mxu0 %v1877
    %1924 = vmatprep.subr.mxu0 0.0
    %1925 = vmatpush1.msra.mxu0 %v1878
    %1926 = vmatprep.subr.mxu0 0.0
    %1927 = vmatpush1.msra.mxu0 %v1879
    %1928 = vmatprep.subr.mxu0 0.0
    %1929 = vmatpush1.msra.mxu0 %v1880
    %1930 = vmatprep.subr.mxu0 0.0
    %1931 = vmatpush1.msra.mxu0 %v1881
    %1932 = vmatprep.subr.mxu0 0.0
    %1933 = vmatpush1.msra.mxu0 %v1882
    %1934 = vmatprep.subr.mxu0 0.0
    %1935 = vmatpush1.msra.mxu0 %v1883
    %1936 = vmatprep.subr.mxu0 0.0
    %1937 = vmatpush1.msra.mxu0 0.0
    %1938 = vmatprep.subr.mxu0 0.0
    %1939 = vmatpush1.msra.mxu0 0.0
    %1940 = vmatprep.subr.mxu0 0.0
    %1941 = vmatpush1.msra.mxu0 0.0
    %1942 = vmatprep.subr.mxu0 0.0
    %1943 = vmatpush1.msra.mxu0 0.0
    %1944 = vmatprep.subr.mxu0 0.0
    %1945 = vmatpush1.msra.mxu0 0.0
    %1946 = vmatprep.subr.mxu0 0.0
    %1947 = vmatpush1.msra.mxu0 0.0
    %1948 = vmatprep.subr.mxu0 0.0
    %1949 = vmatpush1.msra.mxu0 0.0
    %1950 = vmatprep.subr.mxu0 0.0
    %1951 = vmatpush1.msra.mxu0 0.0
    %1952 = vmatprep.subr.mxu0 0.0
    %1953 = vmatpush1.msra.mxu0 0.0
    %1954 = vmatprep.subr.mxu0 0.0
    %1955 = vmatpush1.msra.mxu0 0.0
    %1956 = vmatprep.subr.mxu0 0.0
    %1957 = vmatpush1.msra.mxu0 0.0
    %1958 = vmatprep.subr.mxu0 0.0
    %1959 = vmatpush1.msra.mxu0 0.0
    %1960 = vmatprep.subr.mxu0 0.0
    %1961 = vmatpush1.msra.mxu0 0.0
    %1962 = vmatprep.subr.mxu0 0.0
    %1963 = vmatpush1.msra.mxu0 0.0
    %1964 = vmatprep.subr.mxu0 0.0
    %1965 = vmatpush1.msra.mxu0 0.0
    %1966 = vmatprep.subr.mxu0 0.0
    %1967 = vmatpush1.msra.mxu0 0.0
    %1968 = vmatprep.subr.mxu0 0.0
    %1969 = vmatpush1.msra.mxu0 0.0
    %1970 = vmatprep.subr.mxu0 0.0
    %1971 = vmatpush1.msra.mxu0 0.0
    %1972 = vmatprep.mubr.f32.mxu0 0.0
    %1973 = vmatmul.mubr.f32.gmra.mrb[0].mxu0 %v1906
    %v1974 = vpop.f32.mrb[0].mxu0
    %v1975 = vadd.f32 0.0, %v1974
    %v1976 = vpop.f32.mrb[0].mxu0
    %1977 = vdwg.mxu0
    %v1978 = vmul.f32 %v1975, 0.010204081
    %v1979 = vmul.f32 %v1978, %v1978
    %v1981 = vrot.slane %v1979, 7
    %v1983 = vsub.f32 %v1978, %v1981
    %v1984 = vlaneseq
    %v1985 = vshrl.u32 %v1984, 7
    %v1986 = vsub.s32 0, %v1985
    %v1987 = vrot.slane %v1978, %v1986
    %v1988 = vsub.f32 %v1862, %v1987
    %v1989 = vsub.f32 %v1867, %v1987
    %v1990 = vadd.f32 %v1983, 1e-05
    %v1991 = vrsqrt.pop %v1990
    %v1992 = vlaneseq
    %v1993 = vshrl.u32 %v1992, 7
    %v1994 = vsub.s32 1, %v1993
    %v1995 = vrot.slane %v1991, %v1994
    %v1996 = vmul.f32 %v1988, %v1995
    %v1997 = vmul.f32 %v1989, %v1995
    %v1998 = vlaneseq
    %v1999 = vshrl.u32 %v1998, 7
    %v2000 = vsub.s32 2, %v1999
    %v2001 = vrot.slane %v40, %v2000
    %v2002 = vmul.f32 %v1996, %v2001
    %v2003 = vmul.f32 %v1997, %v2001
    %v2004 = vlaneseq
    %v2005 = vshrl.u32 %v2004, 7
    %v2006 = vsub.s32 3, %v2005
    %v2007 = vrot.slane %v40, %v2006
    %v2008 = vadd.f32 %v2002, %v2007
    %v2009 = vadd.f32 %v2003, %v2007
    %v2010 = vmax.f32 %v2008, 0.0
    %v2011 = vmax.f32 %v2009, 0.0
    %v2012 = vld [vmem:[%s9 + $0x18] sm:$0xff]
    %v2013 = vld [vmem:[%s9 + $0x20] sm:$0xff]
    %v2014 = vld [vmem:[%s9 + $0x28] sm:$0xff]
    %v2015 = vld [vmem:[%s9 + $0x30] sm:$0xff]
    %vm2016 = vcmask 113664
    %v2018 = vsel %vm2016, %v2012, 0
    %v2021 = vsel %vm2016, %v2013, 0
    %v2024 = vsel %vm2016, %v2014, 0
    %v2027 = vsel %vm2016, %v2015, 0
    %v2030 = vsel %vm79, %v2011, 0
    %2032 = vmatprep.subr.mxu0 0.0
    %2033 = vmatpush1.msra.mxu0 %v2010
    %2034 = vmatprep.subr.mxu0 0.0
    %2035 = vmatpush1.msra.mxu0 %v2030
    %2036 = vmatprep.subr.mxu0 0.0
    %2037 = vmatpush1.msra.mxu0 0.0
    %2038 = vmatprep.subr.mxu0 0.0
    %2039 = vmatpush1.msra.mxu0 0.0
    %2040 = vmatprep.subr.mxu0 0.0
    %2041 = vmatpush1.msra.mxu0 0.0
    %2042 = vmatprep.subr.mxu0 0.0
    %2043 = vmatpush1.msra.mxu0 0.0
    %2044 = vmatprep.subr.mxu0 0.0
    %2045 = vmatpush1.msra.mxu0 0.0
    %2046 = vmatprep.subr.mxu0 0.0
    %2047 = vmatpush1.msra.mxu0 0.0
    %2048 = vmatprep.subr.mxu0 0.0
    %2049 = vmatpush1.msra.mxu0 0.0
    %2050 = vmatprep.subr.mxu0 0.0
    %2051 = vmatpush1.msra.mxu0 0.0
    %2052 = vmatprep.subr.mxu0 0.0
    %2053 = vmatpush1.msra.mxu0 0.0
    %2054 = vmatprep.subr.mxu0 0.0
    %2055 = vmatpush1.msra.mxu0 0.0
    %2056 = vmatprep.subr.mxu0 0.0
    %2057 = vmatpush1.msra.mxu0 0.0
    %2058 = vmatprep.subr.mxu0 0.0
    %2059 = vmatpush1.msra.mxu0 0.0
    %2060 = vmatprep.subr.mxu0 0.0
    %2061 = vmatpush1.msra.mxu0 0.0
    %2062 = vmatprep.subr.mxu0 0.0
    %2063 = vmatpush1.msra.mxu0 0.0
    %2064 = vmatprep.subr.mxu0 0.0
    %2065 = vmatpush1.msra.mxu0 0.0
    %2066 = vmatprep.subr.mxu0 0.0
    %2067 = vmatpush1.msra.mxu0 0.0
    %2068 = vmatprep.subr.mxu0 0.0
    %2069 = vmatpush1.msra.mxu0 0.0
    %2070 = vmatprep.subr.mxu0 0.0
    %2071 = vmatpush1.msra.mxu0 0.0
    %2072 = vmatprep.subr.mxu0 0.0
    %2073 = vmatpush1.msra.mxu0 0.0
    %2074 = vmatprep.subr.mxu0 0.0
    %2075 = vmatpush1.msra.mxu0 0.0
    %2076 = vmatprep.subr.mxu0 0.0
    %2077 = vmatpush1.msra.mxu0 0.0
    %2078 = vmatprep.subr.mxu0 0.0
    %2079 = vmatpush1.msra.mxu0 0.0
    %2080 = vmatprep.subr.mxu0 0.0
    %2081 = vmatpush1.msra.mxu0 0.0
    %2082 = vmatprep.subr.mxu0 0.0
    %2083 = vmatpush1.msra.mxu0 0.0
    %2084 = vmatprep.subr.mxu0 0.0
    %2085 = vmatpush1.msra.mxu0 0.0
    %2086 = vmatprep.subr.mxu0 0.0
    %2087 = vmatpush1.msra.mxu0 0.0
    %2088 = vmatprep.subr.mxu0 0.0
    %2089 = vmatpush1.msra.mxu0 0.0
    %2090 = vmatprep.subr.mxu0 0.0
    %2091 = vmatpush1.msra.mxu0 0.0
    %2092 = vmatprep.subr.mxu0 0.0
    %2093 = vmatpush1.msra.mxu0 0.0
    %2094 = vmatprep.subr.mxu0 0.0
    %2095 = vmatpush1.msra.mxu0 0.0
    %2096 = vmatprep.mubr.f32.mxu0 0.0
    %2097 = vmatmul.mubr.f32.gmra.mrb[0].mxu0 %v2018
    %v2098 = vpop.f32.mrb[0].mxu0
    %v2099 = vadd.f32 0.0, %v2098
    %v2100 = vpop.f32.mrb[0].mxu0
    %2101 = vmatprep.mubr.f32.mxu0 0.0
    %2102 = vmatmul.mubr.f32.gmra.mrb[0].mxu0 %v2021
    %v2103 = vpop.f32.mrb[0].mxu0
    %v2104 = vadd.f32 0.0, %v2103
    %v2105 = vpop.f32.mrb[0].mxu0
    %2106 = vmatprep.mubr.f32.mxu0 0.0
    %2107 = vmatmul.mubr.f32.gmra.mrb[0].mxu0 %v2024
    %v2108 = vpop.f32.mrb[0].mxu0
    %v2109 = vadd.f32 0.0, %v2108
    %v2110 = vpop.f32.mrb[0].mxu0
    %2111 = vmatprep.mubr.f32.mxu0 0.0
    %2112 = vmatmul.mubr.f32.gmra.mrb[0].mxu0 %v2027
    %v2113 = vpop.f32.mrb[0].mxu0
    %v2114 = vadd.f32 0.0, %v2113
    %v2115 = vpop.f32.mrb[0].mxu0
    %2116 = vdwg.mxu0
    %v2119 = vrot.slane %v2099, 2
    %v2120 = vrot.slane %v2104, 2
    %v2121 = vsel %vm79, %v2119, %v2120
    %v2126 = vrot.slane %v2109, 4
    %v2127 = vrot.slane %v2114, 4
    %v2128 = vsel %vm182, %v2126, %v2127
    %v2132 = vsel %vm79, %v2120, %v2126
    %v2133 = vrot.slane %v2099, 1
    %v2134 = vrot.slane %v2104, 1
    %v2135 = vsel %vm302, %v2133, %v2134
    %v2137 = vrot.slane %v2109, 3
    %v2138 = vrot.slane %v2114, 3
    %v2139 = vsel %vm1650, %v2137, %v2138
    %v2141 = vsel %vm79, %v2134, %v2137
    %v2142 = vrot.slane %v2109, 2
    %v2143 = vrot.slane %v2114, 2
    %v2144 = vsel %vm79, %v2142, %v2143
    %v2146 = vsel %vm79, %v2104, %v2142
    %2148 = vrot.lane.b32.xlu0 %v2135, 112
    %v2149 = vpop.permute.xlu0 %2148
    %2150 = vrot.lane.b32.xlu0 %v2141, 112
    %v2151 = vpop.permute.xlu0 %2150
    %2152 = vrot.lane.b32.xlu0 %v2139, 112
    %v2153 = vpop.permute.xlu0 %2152
    %2154 = vrot.lane.b32.xlu0 %v2138, 112
    %v2155 = vpop.permute.xlu0 %2154
    %2161 = vrot.lane.b32.xlu0 %v2099, 96
    %v2162 = vpop.permute.xlu0 %2161
    %2163 = vrot.lane.b32.xlu0 %v2146, 96
    %v2164 = vpop.permute.xlu0 %2163
    %2165 = vrot.lane.b32.xlu0 %v2144, 96
    %v2166 = vpop.permute.xlu0 %2165
    %2167 = vrot.lane.b32.xlu0 %v2143, 96
    %v2168 = vpop.permute.xlu0 %2167
    %v2173 = vsel %vm283, %v2121, %v2149
    %v2174 = vsel %vm283, %v2132, %v2151
    %v2175 = vsel %vm283, %v2128, %v2153
    %v2176 = vsel %vm283, %v2127, %v2155
    %v2177 = vsel %vm336, %v2149, %v2162
    %v2178 = vsel %vm336, %v2151, %v2164
    %v2179 = vsel %vm336, %v2153, %v2166
    %v2180 = vsel %vm336, %v2155, %v2168
    %v2181 = vld [vmem:[%s10 + $0x120] sm:$0xff]
    %v2182 = vld [vmem:[%s10 + $0x128] sm:$0xff]
    %v2183 = vld [vmem:[%s10 + $0x130] sm:$0xff]
    %v2184 = vld [vmem:[%s10 + $0x138] sm:$0xff]
    %v2185 = vld [vmem:[%s10 + $0x140] sm:$0xff]
    %v2186 = vld [vmem:[%s10 + $0x148] sm:$0xff]
    %v2187 = vld [vmem:[%s10 + $0x150] sm:$0xff]
    %v2188 = vld [vmem:[%s10 + $0x158] sm:$0xff]
    %v2189 = vld [vmem:[%s10 + $0x160] sm:$0xff]
    %v2190 = vld [vmem:[%s10 + $0x168] sm:$0xff]
    %v2191 = vld [vmem:[%s10 + $0x170] sm:$0xff]
    %v2192 = vld [vmem:[%s10 + $0x178] sm:$0xff]
    %v2193 = vld [vmem:[%s10 + $0x180] sm:$0xff]
    %v2194 = vld [vmem:[%s10 + $0x188] sm:$0xff]
    %v2195 = vld [vmem:[%s10 + $0x190] sm:$0xff]
    %v2196 = vld [vmem:[%s10 + $0x198] sm:$0xff]
    %v2197 = vld [vmem:[%s10 + $0x1a0] sm:$0xff]
    %v2198 = vld [vmem:[%s10 + $0x1a8] sm:$0xff]
    %v2199 = vld [vmem:[%s10 + $0x1b0] sm:$0xff]
    %v2200 = vld [vmem:[%s10 + $0x1b8] sm:$0xff]
    %v2201 = vld [vmem:[%s10 + $0x1c0] sm:$0xff]
    %v2202 = vld [vmem:[%s10 + $0x1c8] sm:$0xff]
    %v2203 = vld [vmem:[%s10 + $0x1d0] sm:$0xff]
    %v2204 = vld [vmem:[%s10 + $0x1d8] sm:$0xff]
    %v2205 = vld [vmem:[%s10 + $0x1e0] sm:$0xff]
    %v2206 = vld [vmem:[%s10 + $0x1e8] sm:$0xff]
    %v2207 = vld [vmem:[%s10 + $0x1f0] sm:$0xff]
    %v2208 = vld [vmem:[%s10 + $0x1f8] sm:$0xff]
    %v2209 = vld [vmem:[%s10 + $0x200] sm:$0xff]
    %v2210 = vld [vmem:[%s10 + $0x208] sm:$0xff]
    %v2211 = vld [vmem:[%s10 + $0x210] sm:$0xff]
    %v2212 = vld [vmem:[%s10 + $0x218] sm:$0xff]
    %v2213 = vld [vmem:[%s10 + $0x220] sm:$0xff]
    %v2214 = vld [vmem:[%s10 + $0x228] sm:$0xff]
    %v2215 = vld [vmem:[%s10 + $0x230] sm:$0xff]
    %v2216 = vld [vmem:[%s10 + $0x238] sm:$0xff]
    %v2217 = vld [vmem:[%s10 + $0x240] sm:$0xff]
    %v2218 = vld [vmem:[%s10 + $0x248] sm:$0xff]
    %v2219 = vld [vmem:[%s10 + $0x250] sm:$0xff]
    %v2220 = vld [vmem:[%s10 + $0x258] sm:$0xff]
    %v2221 = vld [vmem:[%s10 + $0x260] sm:$0xff]
    %v2222 = vld [vmem:[%s10 + $0x268] sm:$0xff]
    %v2223 = vlaneseq
    %v2224 = vshrl.u32 %v2223, 7
    %v2225 = vsub.s32 4, %v2224
    %v2226 = vrot.slane %v40, %v2225
    %v2227 = vsel %vm385, %v2162, 0
    %v2229 = vsel %vm385, %v2164, 0
    %v2231 = vsel %vm385, %v2166, 0
    %v2233 = vsel %vm385, %v2168, 0
    %2235 = vmatprep.subr.mxu0 0.0
    %2236 = vmatpush1.msra.mxu0 %v2181
    %2237 = vmatprep.subr.mxu0 0.0
    %2238 = vmatpush1.msra.mxu0 %v2182
    %2239 = vmatprep.subr.mxu0 0.0
    %2240 = vmatpush1.msra.mxu0 %v2183
    %2241 = vmatprep.subr.mxu0 0.0
    %2242 = vmatpush1.msra.mxu0 %v2184
    %2243 = vmatprep.subr.mxu0 0.0
    %2244 = vmatpush1.msra.mxu0 %v2185
    %2245 = vmatprep.subr.mxu0 0.0
    %2246 = vmatpush1.msra.mxu0 %v2186
    %2247 = vmatprep.subr.mxu0 0.0
    %2248 = vmatpush1.msra.mxu0 %v2187
    %2249 = vmatprep.subr.mxu0 0.0
    %2250 = vmatpush1.msra.mxu0 %v2188
    %2251 = vmatprep.subr.mxu0 0.0
    %2252 = vmatpush1.msra.mxu0 %v2189
    %2253 = vmatprep.subr.mxu0 0.0
    %2254 = vmatpush1.msra.mxu0 %v2190
    %2255 = vmatprep.subr.mxu0 0.0
    %2256 = vmatpush1.msra.mxu0 %v2191
    %2257 = vmatprep.subr.mxu0 0.0
    %2258 = vmatpush1.msra.mxu0 %v2192
    %2259 = vmatprep.subr.mxu0 0.0
    %2260 = vmatpush1.msra.mxu0 %v2193
    %2261 = vmatprep.subr.mxu0 0.0
    %2262 = vmatpush1.msra.mxu0 %v2194
    %2263 = vmatprep.subr.mxu0 0.0
    %2264 = vmatpush1.msra.mxu0 %v2195
    %2265 = vmatprep.subr.mxu0 0.0
    %2266 = vmatpush1.msra.mxu0 %v2196
    %2267 = vmatprep.subr.mxu0 0.0
    %2268 = vmatpush1.msra.mxu0 %v2197
    %2269 = vmatprep.subr.mxu0 0.0
    %2270 = vmatpush1.msra.mxu0 %v2198
    %2271 = vmatprep.subr.mxu0 0.0
    %2272 = vmatpush1.msra.mxu0 %v2199
    %2273 = vmatprep.subr.mxu0 0.0
    %2274 = vmatpush1.msra.mxu0 %v2200
    %2275 = vmatprep.subr.mxu0 0.0
    %2276 = vmatpush1.msra.mxu0 %v2201
    %2277 = vmatprep.subr.mxu0 0.0
    %2278 = vmatpush1.msra.mxu0 %v2202
    %2279 = vmatprep.subr.mxu0 0.0
    %2280 = vmatpush1.msra.mxu0 %v2203
    %2281 = vmatprep.subr.mxu0 0.0
    %2282 = vmatpush1.msra.mxu0 %v2204
    %2283 = vmatprep.subr.mxu0 0.0
    %2284 = vmatpush1.msra.mxu0 %v2205
    %2285 = vmatprep.subr.mxu0 0.0
    %2286 = vmatpush1.msra.mxu0 %v2206
    %2287 = vmatprep.subr.mxu0 0.0
    %2288 = vmatpush1.msra.mxu0 %v2207
    %2289 = vmatprep.subr.mxu0 0.0
    %2290 = vmatpush1.msra.mxu0 %v2208
    %2291 = vmatprep.subr.mxu0 0.0
    %2292 = vmatpush1.msra.mxu0 %v2209
    %2293 = vmatprep.subr.mxu0 0.0
    %2294 = vmatpush1.msra.mxu0 %v2210
    %2295 = vmatprep.subr.mxu0 0.0
    %2296 = vmatpush1.msra.mxu0 %v2211
    %2297 = vmatprep.subr.mxu0 0.0
    %2298 = vmatpush1.msra.mxu0 %v2212
    %2299 = vmatprep.mubr.f32.mxu0 %v2177
    %2300 = vmatmul.mubr.f32.gmra.mrb[0].mxu0 %v2173
    %v2301 = vpop.f32.mrb[0].mxu0
    %v2302 = vadd.f32 %v2226, %v2301
    %v2303 = vpop.f32.mrb[0].mxu0
    %2304 = vmatprep.mubr.f32.mxu0 %v2178
    %2305 = vmatmul.mubr.f32.gmra.mrb[0].mxu0 %v2174
    %v2306 = vpop.f32.mrb[0].mxu0
    %v2307 = vadd.f32 %v2226, %v2306
    %v2308 = vpop.f32.mrb[0].mxu0
    %2309 = vmatprep.mubr.f32.mxu0 %v2179
    %2310 = vmatmul.mubr.f32.gmra.mrb[0].mxu0 %v2175
    %v2311 = vpop.f32.mrb[0].mxu0
    %v2312 = vadd.f32 %v2226, %v2311
    %v2313 = vpop.f32.mrb[0].mxu0
    %2314 = vmatprep.mubr.f32.mxu0 %v2180
    %2315 = vmatmul.mubr.f32.gmra.mrb[0].mxu0 %v2176
    %v2316 = vpop.f32.mrb[0].mxu0
    %v2317 = vadd.f32 %v2226, %v2316
    %v2318 = vpop.f32.mrb[0].mxu0
    %2319 = vdwg.mxu0
    %2320 = vmatprep.subr.mxu0 0.0
    %2321 = vmatpush1.msra.mxu0 %v2213
    %2322 = vmatprep.subr.mxu0 0.0
    %2323 = vmatpush1.msra.mxu0 %v2214
    %2324 = vmatprep.subr.mxu0 0.0
    %2325 = vmatpush1.msra.mxu0 %v2215
    %2326 = vmatprep.subr.mxu0 0.0
    %2327 = vmatpush1.msra.mxu0 %v2216
    %2328 = vmatprep.subr.mxu0 0.0
    %2329 = vmatpush1.msra.mxu0 %v2217
    %2330 = vmatprep.subr.mxu0 0.0
    %2331 = vmatpush1.msra.mxu0 %v2218
    %2332 = vmatprep.subr.mxu0 0.0
    %2333 = vmatpush1.msra.mxu0 %v2219
    %2334 = vmatprep.subr.mxu0 0.0
    %2335 = vmatpush1.msra.mxu0 %v2220
    %2336 = vmatprep.subr.mxu0 0.0
    %2337 = vmatpush1.msra.mxu0 %v2221
    %2338 = vmatprep.subr.mxu0 0.0
    %2339 = vmatpush1.msra.mxu0 %v2222
    %2340 = vmatprep.subr.mxu0 0.0
    %2341 = vmatpush1.msra.mxu0 0.0
    %2342 = vmatprep.subr.mxu0 0.0
    %2343 = vmatpush1.msra.mxu0 0.0
    %2344 = vmatprep.subr.mxu0 0.0
    %2345 = vmatpush1.msra.mxu0 0.0
    %2346 = vmatprep.subr.mxu0 0.0
    %2347 = vmatpush1.msra.mxu0 0.0
    %2348 = vmatprep.subr.mxu0 0.0
    %2349 = vmatpush1.msra.mxu0 0.0
    %2350 = vmatprep.subr.mxu0 0.0
    %2351 = vmatpush1.msra.mxu0 0.0
    %2352 = vmatprep.subr.mxu0 0.0
    %2353 = vmatpush1.msra.mxu0 0.0
    %2354 = vmatprep.subr.mxu0 0.0
    %2355 = vmatpush1.msra.mxu0 0.0
    %2356 = vmatprep.subr.mxu0 0.0
    %2357 = vmatpush1.msra.mxu0 0.0
    %2358 = vmatprep.subr.mxu0 0.0
    %2359 = vmatpush1.msra.mxu0 0.0
    %2360 = vmatprep.subr.mxu0 0.0
    %2361 = vmatpush1.msra.mxu0 0.0
    %2362 = vmatprep.subr.mxu0 0.0
    %2363 = vmatpush1.msra.mxu0 0.0
    %2364 = vmatprep.subr.mxu0 0.0
    %2365 = vmatpush1.msra.mxu0 0.0
    %2366 = vmatprep.subr.mxu0 0.0
    %2367 = vmatpush1.msra.mxu0 0.0
    %2368 = vmatprep.subr.mxu0 0.0
    %2369 = vmatpush1.msra.mxu0 0.0
    %2370 = vmatprep.subr.mxu0 0.0
    %2371 = vmatpush1.msra.mxu0 0.0
    %2372 = vmatprep.subr.mxu0 0.0
    %2373 = vmatpush1.msra.mxu0 0.0
    %2374 = vmatprep.subr.mxu0 0.0
    %2375 = vmatpush1.msra.mxu0 0.0
    %2376 = vmatprep.subr.mxu0 0.0
    %2377 = vmatpush1.msra.mxu0 0.0
    %2378 = vmatprep.subr.mxu0 0.0
    %2379 = vmatpush1.msra.mxu0 0.0
    %2380 = vmatprep.subr.mxu0 0.0
    %2381 = vmatpush1.msra.mxu0 0.0
    %2382 = vmatprep.subr.mxu0 0.0
    %2383 = vmatpush1.msra.mxu0 0.0
    %2384 = vmatprep.mubr.f32.mxu0 0.0
    %2385 = vmatmul.mubr.f32.gmra.mrb[0].mxu0 %v2227
    %v2386 = vpop.f32.mrb[0].mxu0
    %v2387 = vadd.f32 %v2302, %v2386
    %v2388 = vpop.f32.mrb[0].mxu0
    %2389 = vmatprep.mubr.f32.mxu0 0.0
    %2390 = vmatmul.mubr.f32.gmra.mrb[0].mxu0 %v2229
    %v2391 = vpop.f32.mrb[0].mxu0
    %v2392 = vadd.f32 %v2307, %v2391
    %v2393 = vpop.f32.mrb[0].mxu0
    %2394 = vmatprep.mubr.f32.mxu0 0.0
    %2395 = vmatmul.mubr.f32.gmra.mrb[0].mxu0 %v2231
    %v2396 = vpop.f32.mrb[0].mxu0
    %v2397 = vadd.f32 %v2312, %v2396
    %v2398 = vpop.f32.mrb[0].mxu0
    %2399 = vmatprep.mubr.f32.mxu0 0.0
    %2400 = vmatmul.mubr.f32.gmra.mrb[0].mxu0 %v2233
    %v2401 = vpop.f32.mrb[0].mxu0
    %v2402 = vadd.f32 %v2317, %v2401
    %v2403 = vpop.f32.mrb[0].mxu0
    %2404 = vdwg.mxu0
    %v2405 = vld [vmem:[%s3 + $0x70] sm:$0xff]
    %v2406 = vld [vmem:[%s3 + $0x78] sm:$0xff]
    %v2407 = vld [vmem:[%s3 + $0x80] sm:$0xff]
    %v2408 = vld [vmem:[%s3 + $0x88] sm:$0xff]
    %v2409 = vld [vmem:[%s3 + $0x90] sm:$0xff]
    %v2410 = vld [vmem:[%s3 + $0x98] sm:$0xff]
    %v2411 = vld [vmem:[%s3 + $0xa0] sm:$0xff]
    %v2412 = vld [vmem:[%s3 + $0xa8] sm:$0xff]
    %v2413 = vld [vmem:[%s3 + $0xb0] sm:$0xff]
    %v2414 = vld [vmem:[%s3 + $0xb8] sm:$0xff]
    %v2415 = vld [vmem:[%s3 + $0xc0] sm:$0xff]
    %v2416 = vld [vmem:[%s3 + $0xc8] sm:$0xff]
    %v2417 = vld [vmem:[%s3 + $0xd0] sm:$0xff]
    %v2418 = vld [vmem:[%s3 + $0xd8] sm:$0xff]
    %v2419 = vsel %vm283, %v2387, 0.0
    %v2420 = vsel %vm283, %v2392, 0.0
    %v2421 = vadd.f32 %v2419, %v2420
    %v2422 = vsel %vm283, %v2397, 0.0
    %v2423 = vadd.f32 %v2421, %v2422
    %v2424 = vsel %vm294, %v2402, 0.0
    %v2425 = vadd.f32 %v2423, %v2424
    %v2426 = vrot.slane %v2425, 4
    %v2427 = vadd.f32 %v2425, %v2426
    %v2428 = vrot.slane %v2427, 2
    %v2429 = vadd.f32 %v2427, %v2428
    %v2430 = vrot.slane %v2429, 1
    %v2431 = vadd.f32 %v2429, %v2430
    %v2432 = vmul.f32 %v2387, %v2387
    %v2433 = vmul.f32 %v2392, %v2392
    %v2434 = vmul.f32 %v2397, %v2397
    %v2435 = vmul.f32 %v2402, %v2402
    %v2436 = vsel %vm283, %v2432, 0.0
    %v2437 = vsel %vm283, %v2433, 0.0
    %v2438 = vadd.f32 %v2436, %v2437
    %v2439 = vsel %vm283, %v2434, 0.0
    %v2440 = vadd.f32 %v2438, %v2439
    %v2441 = vsel %vm294, %v2435, 0.0
    %v2442 = vadd.f32 %v2440, %v2441
    %v2443 = vrot.slane %v2442, 4
    %v2444 = vadd.f32 %v2442, %v2443
    %v2445 = vrot.slane %v2444, 2
    %v2446 = vadd.f32 %v2444, %v2445
    %v2447 = vrot.slane %v2446, 1
    %v2448 = vadd.f32 %v2446, %v2447
    %v2449 = vsel %vm574, %v2431, %v2448
    %v2451 = vsel %vm283, %v2449, 0
    %2453 = vmatprep.subr.mxu0 0.0
    %2454 = vmatpush1.msra.mxu0 %v2405
    %2455 = vmatprep.subr.mxu0 0.0
    %2456 = vmatpush1.msra.mxu0 %v2406
    %2457 = vmatprep.subr.mxu0 0.0
    %2458 = vmatpush1.msra.mxu0 %v2407
    %2459 = vmatprep.subr.mxu0 0.0
    %2460 = vmatpush1.msra.mxu0 %v2408
    %2461 = vmatprep.subr.mxu0 0.0
    %2462 = vmatpush1.msra.mxu0 %v2409
    %2463 = vmatprep.subr.mxu0 0.0
    %2464 = vmatpush1.msra.mxu0 %v2410
    %2465 = vmatprep.subr.mxu0 0.0
    %2466 = vmatpush1.msra.mxu0 %v2411
    %2467 = vmatprep.subr.mxu0 0.0
    %2468 = vmatpush1.msra.mxu0 %v2412
    %2469 = vmatprep.subr.mxu0 0.0
    %2470 = vmatpush1.msra.mxu0 %v2413
    %2471 = vmatprep.subr.mxu0 0.0
    %2472 = vmatpush1.msra.mxu0 %v2414
    %2473 = vmatprep.subr.mxu0 0.0
    %2474 = vmatpush1.msra.mxu0 %v2415
    %2475 = vmatprep.subr.mxu0 0.0
    %2476 = vmatpush1.msra.mxu0 %v2416
    %2477 = vmatprep.subr.mxu0 0.0
    %2478 = vmatpush1.msra.mxu0 %v2417
    %2479 = vmatprep.subr.mxu0 0.0
    %2480 = vmatpush1.msra.mxu0 %v2418
    %2481 = vmatprep.subr.mxu0 0.0
    %2482 = vmatpush1.msra.mxu0 0.0
    %2483 = vmatprep.subr.mxu0 0.0
    %2484 = vmatpush1.msra.mxu0 0.0
    %2485 = vmatprep.subr.mxu0 0.0
    %2486 = vmatpush1.msra.mxu0 0.0
    %2487 = vmatprep.subr.mxu0 0.0
    %2488 = vmatpush1.msra.mxu0 0.0
    %2489 = vmatprep.subr.mxu0 0.0
    %2490 = vmatpush1.msra.mxu0 0.0
    %2491 = vmatprep.subr.mxu0 0.0
    %2492 = vmatpush1.msra.mxu0 0.0
    %2493 = vmatprep.subr.mxu0 0.0
    %2494 = vmatpush1.msra.mxu0 0.0
    %2495 = vmatprep.subr.mxu0 0.0
    %2496 = vmatpush1.msra.mxu0 0.0
    %2497 = vmatprep.subr.mxu0 0.0
    %2498 = vmatpush1.msra.mxu0 0.0
    %2499 = vmatprep.subr.mxu0 0.0
    %2500 = vmatpush1.msra.mxu0 0.0
    %2501 = vmatprep.subr.mxu0 0.0
    %2502 = vmatpush1.msra.mxu0 0.0
    %2503 = vmatprep.subr.mxu0 0.0
    %2504 = vmatpush1.msra.mxu0 0.0
    %2505 = vmatprep.subr.mxu0 0.0
    %2506 = vmatpush1.msra.mxu0 0.0
    %2507 = vmatprep.subr.mxu0 0.0
    %2508 = vmatpush1.msra.mxu0 0.0
    %2509 = vmatprep.subr.mxu0 0.0
    %2510 = vmatpush1.msra.mxu0 0.0
    %2511 = vmatprep.subr.mxu0 0.0
    %2512 = vmatpush1.msra.mxu0 0.0
    %2513 = vmatprep.subr.mxu0 0.0
    %2514 = vmatpush1.msra.mxu0 0.0
    %2515 = vmatprep.subr.mxu0 0.0
    %2516 = vmatpush1.msra.mxu0 0.0
    %2517 = vmatprep.mubr.f32.mxu0 0.0
    %2518 = vmatmul.mubr.f32.gmra.mrb[0].mxu0 %v2451
    %v2519 = vpop.f32.mrb[0].mxu0
    %v2520 = vadd.f32 0.0, %v2519
    %v2521 = vpop.f32.mrb[0].mxu0
    %2522 = vdwg.mxu0
    %v2523 = vmul.f32 %v2520, 0.0025510204
    %v2524 = vmul.f32 %v2523, %v2523
    %v2526 = vrot.slane %v2524, 7
    %v2528 = vsub.f32 %v2523, %v2526
    %v2529 = vlaneseq
    %v2530 = vshrl.u32 %v2529, 7
    %v2531 = vsub.s32 0, %v2530
    %v2532 = vrot.slane %v2523, %v2531
    %v2533 = vsub.f32 %v2387, %v2532
    %v2534 = vsub.f32 %v2392, %v2532
    %v2535 = vsub.f32 %v2397, %v2532
    %v2536 = vsub.f32 %v2402, %v2532
    %v2537 = vadd.f32 %v2528, 1e-05
    %v2538 = vrsqrt.pop %v2537
    %v2539 = vlaneseq
    %v2540 = vshrl.u32 %v2539, 7
    %v2541 = vsub.s32 1, %v2540
    %v2542 = vrot.slane %v2538, %v2541
    %v2543 = vmul.f32 %v2533, %v2542
    %v2544 = vmul.f32 %v2534, %v2542
    %v2545 = vmul.f32 %v2535, %v2542
    %v2546 = vmul.f32 %v2536, %v2542
    %v2547 = vlaneseq
    %v2548 = vshrl.u32 %v2547, 7
    %v2549 = vsub.s32 5, %v2548
    %v2550 = vrot.slane %v40, %v2549
    %v2551 = vmul.f32 %v2543, %v2550
    %v2552 = vmul.f32 %v2544, %v2550
    %v2553 = vmul.f32 %v2545, %v2550
    %v2554 = vmul.f32 %v2546, %v2550
    %v2555 = vlaneseq
    %v2556 = vshrl.u32 %v2555, 7
    %v2557 = vsub.s32 6, %v2556
    %v2558 = vrot.slane %v40, %v2557
    %v2559 = vadd.f32 %v2551, %v2558
    %v2560 = vadd.f32 %v2552, %v2558
    %v2561 = vadd.f32 %v2553, %v2558
    %v2562 = vadd.f32 %v2554, %v2558
    %v2563 = vmax.f32 %v2559, 0.0
    %v2564 = vmax.f32 %v2560, 0.0
    %v2565 = vmax.f32 %v2561, 0.0
    %v2566 = vmax.f32 %v2562, 0.0
    %v2567 = vld [vmem:[%s9 + $0x38] sm:$0xff]
    %v2568 = vld [vmem:[%s9 + $0x40] sm:$0xff]
    %v2569 = vld [vmem:[%s9 + $0x48] sm:$0xff]
    %v2570 = vld [vmem:[%s9 + $0x50] sm:$0xff]
    %v2571 = vld [vmem:[%s9 + $0x58] sm:$0xff]
    %v2572 = vld [vmem:[%s9 + $0x60] sm:$0xff]
    %v2573 = vld [vmem:[%s9 + $0x68] sm:$0xff]
    %v2574 = vld [vmem:[%s9 + $0x70] sm:$0xf]
    %v2576 = vsel %vm50, %v2567, 0
    %v2579 = vsel %vm50, %v2568, 0
    %v2582 = vsel %vm50, %v2569, 0
    %v2585 = vsel %vm50, %v2570, 0
    %v2588 = vsel %vm50, %v2571, 0
    %v2591 = vsel %vm50, %v2572, 0
    %v2594 = vsel %vm50, %v2573, 0
    %v2597 = vsel %vm50, %v2574, 0
    %v2600 = vsel %vm182, %v2566, 0
    %2602 = vmatprep.subr.mxu0 0.0
    %2603 = vmatpush1.msra.mxu0 %v2563
    %2604 = vmatprep.subr.mxu0 0.0
    %2605 = vmatpush1.msra.mxu0 %v2564
    %2606 = vmatprep.subr.mxu0 0.0
    %2607 = vmatpush1.msra.mxu0 %v2565
    %2608 = vmatprep.subr.mxu0 0.0
    %2609 = vmatpush1.msra.mxu0 %v2600
    %2610 = vmatprep.subr.mxu0 0.0
    %2611 = vmatpush1.msra.mxu0 0.0
    %2612 = vmatprep.subr.mxu0 0.0
    %2613 = vmatpush1.msra.mxu0 0.0
    %2614 = vmatprep.subr.mxu0 0.0
    %2615 = vmatpush1.msra.mxu0 0.0
    %2616 = vmatprep.subr.mxu0 0.0
    %2617 = vmatpush1.msra.mxu0 0.0
    %2618 = vmatprep.subr.mxu0 0.0
    %2619 = vmatpush1.msra.mxu0 0.0
    %2620 = vmatprep.subr.mxu0 0.0
    %2621 = vmatpush1.msra.mxu0 0.0
    %2622 = vmatprep.subr.mxu0 0.0
    %2623 = vmatpush1.msra.mxu0 0.0
    %2624 = vmatprep.subr.mxu0 0.0
    %2625 = vmatpush1.msra.mxu0 0.0
    %2626 = vmatprep.subr.mxu0 0.0
    %2627 = vmatpush1.msra.mxu0 0.0
    %2628 = vmatprep.subr.mxu0 0.0
    %2629 = vmatpush1.msra.mxu0 0.0
    %2630 = vmatprep.subr.mxu0 0.0
    %2631 = vmatpush1.msra.mxu0 0.0
    %2632 = vmatprep.subr.mxu0 0.0
    %2633 = vmatpush1.msra.mxu0 0.0
    %2634 = vmatprep.subr.mxu0 0.0
    %2635 = vmatpush1.msra.mxu0 0.0
    %2636 = vmatprep.subr.mxu0 0.0
    %2637 = vmatpush1.msra.mxu0 0.0
    %2638 = vmatprep.subr.mxu0 0.0
    %2639 = vmatpush1.msra.mxu0 0.0
    %2640 = vmatprep.subr.mxu0 0.0
    %2641 = vmatpush1.msra.mxu0 0.0
    %2642 = vmatprep.subr.mxu0 0.0
    %2643 = vmatpush1.msra.mxu0 0.0
    %2644 = vmatprep.subr.mxu0 0.0
    %2645 = vmatpush1.msra.mxu0 0.0
    %2646 = vmatprep.subr.mxu0 0.0
    %2647 = vmatpush1.msra.mxu0 0.0
    %2648 = vmatprep.subr.mxu0 0.0
    %2649 = vmatpush1.msra.mxu0 0.0
    %2650 = vmatprep.subr.mxu0 0.0
    %2651 = vmatpush1.msra.mxu0 0.0
    %2652 = vmatprep.subr.mxu0 0.0
    %2653 = vmatpush1.msra.mxu0 0.0
    %2654 = vmatprep.subr.mxu0 0.0
    %2655 = vmatpush1.msra.mxu0 0.0
    %2656 = vmatprep.subr.mxu0 0.0
    %2657 = vmatpush1.msra.mxu0 0.0
    %2658 = vmatprep.subr.mxu0 0.0
    %2659 = vmatpush1.msra.mxu0 0.0
    %2660 = vmatprep.subr.mxu0 0.0
    %2661 = vmatpush1.msra.mxu0 0.0
    %2662 = vmatprep.subr.mxu0 0.0
    %2663 = vmatpush1.msra.mxu0 0.0
    %2664 = vmatprep.subr.mxu0 0.0
    %2665 = vmatpush1.msra.mxu0 0.0
    %2666 = vmatprep.mubr.f32.mxu0 0.0
    %2667 = vmatmul.mubr.f32.gmra.mrb[0].mxu0 %v2576
    %v2668 = vpop.f32.mrb[0].mxu0
    %v2669 = vadd.f32 0.0, %v2668
    %v2670 = vpop.f32.mrb[0].mxu0
    %2671 = vmatprep.mubr.f32.mxu0 0.0
    %2672 = vmatmul.mubr.f32.gmra.mrb[0].mxu0 %v2579
    %v2673 = vpop.f32.mrb[0].mxu0
    %v2674 = vadd.f32 0.0, %v2673
    %v2675 = vpop.f32.mrb[0].mxu0
    %2676 = vmatprep.mubr.f32.mxu0 0.0
    %2677 = vmatmul.mubr.f32.gmra.mrb[0].mxu0 %v2582
    %v2678 = vpop.f32.mrb[0].mxu0
    %v2679 = vadd.f32 0.0, %v2678
    %v2680 = vpop.f32.mrb[0].mxu0
    %2681 = vmatprep.mubr.f32.mxu0 0.0
    %2682 = vmatmul.mubr.f32.gmra.mrb[0].mxu0 %v2585
    %v2683 = vpop.f32.mrb[0].mxu0
    %v2684 = vadd.f32 0.0, %v2683
    %v2685 = vpop.f32.mrb[0].mxu0
    %2686 = vmatprep.mubr.f32.mxu0 0.0
    %2687 = vmatmul.mubr.f32.gmra.mrb[0].mxu0 %v2588
    %v2688 = vpop.f32.mrb[0].mxu0
    %v2689 = vadd.f32 0.0, %v2688
    %v2690 = vpop.f32.mrb[0].mxu0
    %2691 = vmatprep.mubr.f32.mxu0 0.0
    %2692 = vmatmul.mubr.f32.gmra.mrb[0].mxu0 %v2591
    %v2693 = vpop.f32.mrb[0].mxu0
    %v2694 = vadd.f32 0.0, %v2693
    %v2695 = vpop.f32.mrb[0].mxu0
    %2696 = vmatprep.mubr.f32.mxu0 0.0
    %2697 = vmatmul.mubr.f32.gmra.mrb[0].mxu0 %v2594
    %v2698 = vpop.f32.mrb[0].mxu0
    %v2699 = vadd.f32 0.0, %v2698
    %v2700 = vpop.f32.mrb[0].mxu0
    %2701 = vmatprep.mubr.f32.mxu0 0.0
    %2702 = vmatmul.mubr.f32.gmra.mrb[0].mxu0 %v2597
    %v2703 = vpop.f32.mrb[0].mxu0
    %v2704 = vadd.f32 0.0, %v2703
    %v2705 = vpop.f32.mrb[0].mxu0
    %2706 = vdwg.mxu0
    %v2711 = vrot.slane %v2669, 2
    %v2712 = vrot.slane %v2674, 2
    %v2713 = vsel %vm79, %v2711, %v2712
    %v2714 = vrot.slane %v2679, 2
    %v2715 = vsel %vm79, %v2712, %v2714
    %v2716 = vrot.slane %v2684, 2
    %v2717 = vsel %vm79, %v2714, %v2716
    %v2726 = vrot.slane %v2689, 4
    %v2727 = vrot.slane %v2694, 4
    %v2728 = vsel %vm182, %v2726, %v2727
    %v2729 = vrot.slane %v2699, 4
    %v2730 = vsel %vm182, %v2727, %v2729
    %v2731 = vrot.slane %v2704, 4
    %v2732 = vsel %vm182, %v2729, %v2731
    %v2737 = vsel %vm182, %v2716, %v2726
    %v2738 = vrot.slane %v2669, 1
    %v2739 = vrot.slane %v2674, 1
    %v2740 = vsel %vm302, %v2738, %v2739
    %v2741 = vrot.slane %v2679, 1
    %v2742 = vsel %vm302, %v2739, %v2741
    %v2743 = vrot.slane %v2684, 1
    %v2744 = vsel %vm302, %v2741, %v2743
    %v2746 = vrot.slane %v2684, 3
    %v2747 = vrot.slane %v2689, 3
    %v2748 = vsel %vm1650, %v2746, %v2747
    %v2749 = vrot.slane %v2694, 3
    %v2750 = vsel %vm1650, %v2747, %v2749
    %v2751 = vrot.slane %v2699, 3
    %v2752 = vsel %vm1650, %v2749, %v2751
    %v2753 = vrot.slane %v2704, 3
    %v2754 = vsel %vm1650, %v2751, %v2753
    %v2756 = vsel %vm182, %v2743, %v2748
    %v2757 = vrot.slane %v2689, 2
    %v2758 = vsel %vm79, %v2716, %v2757
    %v2759 = vrot.slane %v2694, 2
    %v2760 = vsel %vm79, %v2757, %v2759
    %v2761 = vrot.slane %v2699, 2
    %v2762 = vsel %vm79, %v2759, %v2761
    %v2763 = vrot.slane %v2704, 2
    %v2764 = vsel %vm79, %v2761, %v2763
    %v2766 = vsel %vm182, %v2684, %v2758
    %2768 = vrot.lane.b32.xlu0 %v2740, 112
    %v2769 = vpop.permute.xlu0 %2768
    %2770 = vrot.lane.b32.xlu0 %v2742, 112
    %v2771 = vpop.permute.xlu0 %2770
    %2772 = vrot.lane.b32.xlu0 %v2744, 112
    %v2773 = vpop.permute.xlu0 %2772
    %2774 = vrot.lane.b32.xlu0 %v2756, 112
    %v2775 = vpop.permute.xlu0 %2774
    %2776 = vrot.lane.b32.xlu0 %v2750, 112
    %v2777 = vpop.permute.xlu0 %2776
    %2778 = vrot.lane.b32.xlu0 %v2752, 112
    %v2779 = vpop.permute.xlu0 %2778
    %2780 = vrot.lane.b32.xlu0 %v2754, 112
    %v2781 = vpop.permute.xlu0 %2780
    %2790 = vrot.lane.b32.xlu0 %v2669, 96
    %v2791 = vpop.permute.xlu0 %2790
    %2792 = vrot.lane.b32.xlu0 %v2674, 96
    %v2793 = vpop.permute.xlu0 %2792
    %2794 = vrot.lane.b32.xlu0 %v2679, 96
    %v2795 = vpop.permute.xlu0 %2794
    %2796 = vrot.lane.b32.xlu0 %v2766, 96
    %v2797 = vpop.permute.xlu0 %2796
    %2798 = vrot.lane.b32.xlu0 %v2760, 96
    %v2799 = vpop.permute.xlu0 %2798
    %2800 = vrot.lane.b32.xlu0 %v2762, 96
    %v2801 = vpop.permute.xlu0 %2800
    %2802 = vrot.lane.b32.xlu0 %v2764, 96
    %v2803 = vpop.permute.xlu0 %2802
    %v2811 = vsel %vm283, %v2713, %v2769
    %v2812 = vsel %vm283, %v2715, %v2771
    %v2813 = vsel %vm283, %v2717, %v2773
    %v2814 = vsel %vm283, %v2737, %v2775
    %v2815 = vsel %vm283, %v2728, %v2777
    %v2816 = vsel %vm283, %v2730, %v2779
    %v2817 = vsel %vm283, %v2732, %v2781
    %v2818 = vsel %vm336, %v2769, %v2791
    %v2819 = vsel %vm336, %v2771, %v2793
    %v2820 = vsel %vm336, %v2773, %v2795
    %v2821 = vsel %vm336, %v2775, %v2797
    %v2822 = vsel %vm336, %v2777, %v2799
    %v2823 = vsel %vm336, %v2779, %v2801
    %v2824 = vsel %vm336, %v2781, %v2803
    %v2825 = vld [vmem:[%s10 + $0x270] sm:$0xff]
    %v2826 = vld [vmem:[%s10 + $0x278] sm:$0xff]
    %v2827 = vld [vmem:[%s10 + $0x280] sm:$0xff]
    %v2828 = vld [vmem:[%s10 + $0x288] sm:$0xff]
    %v2829 = vld [vmem:[%s10 + $0x290] sm:$0xff]
    %v2830 = vld [vmem:[%s10 + $0x298] sm:$0xff]
    %v2831 = vld [vmem:[%s10 + $0x2a0] sm:$0xff]
    %v2832 = vld [vmem:[%s10 + $0x2a8] sm:$0xff]
    %v2833 = vld [vmem:[%s10 + $0x2b0] sm:$0xff]
    %v2834 = vld [vmem:[%s10 + $0x2b8] sm:$0xff]
    %v2835 = vld [vmem:[%s10 + $0x2c0] sm:$0xff]
    %v2836 = vld [vmem:[%s10 + $0x2c8] sm:$0xff]
    %v2837 = vld [vmem:[%s10 + $0x2d0] sm:$0xff]
    %v2838 = vld [vmem:[%s10 + $0x2d8] sm:$0xff]
    %v2839 = vld [vmem:[%s10 + $0x2e0] sm:$0xff]
    %v2840 = vld [vmem:[%s10 + $0x2e8] sm:$0xff]
    %v2841 = vld [vmem:[%s10 + $0x2f0] sm:$0xff]
    %v2842 = vld [vmem:[%s10 + $0x2f8] sm:$0xff]
    %v2843 = vld [vmem:[%s10 + $0x300] sm:$0xff]
    %v2844 = vld [vmem:[%s10 + $0x308] sm:$0xff]
    %v2845 = vld [vmem:[%s10 + $0x310] sm:$0xff]
    %v2846 = vld [vmem:[%s10 + $0x318] sm:$0xff]
    %v2847 = vld [vmem:[%s10 + $0x320] sm:$0xff]
    %v2848 = vld [vmem:[%s10 + $0x328] sm:$0xff]
    %v2849 = vld [vmem:[%s10 + $0x330] sm:$0xff]
    %v2850 = vld [vmem:[%s10 + $0x338] sm:$0xff]
    %v2851 = vld [vmem:[%s10 + $0x340] sm:$0xff]
    %v2852 = vld [vmem:[%s10 + $0x348] sm:$0xff]
    %v2853 = vld [vmem:[%s10 + $0x350] sm:$0xff]
    %v2854 = vld [vmem:[%s10 + $0x358] sm:$0xff]
    %v2855 = vld [vmem:[%s10 + $0x360] sm:$0xff]
    %v2856 = vld [vmem:[%s10 + $0x368] sm:$0xff]
    %v2857 = vld [vmem:[%s10 + $0x370] sm:$0xff]
    %v2858 = vld [vmem:[%s10 + $0x378] sm:$0xff]
    %v2859 = vld [vmem:[%s10 + $0x380] sm:$0xff]
    %v2860 = vld [vmem:[%s10 + $0x388] sm:$0xff]
    %v2861 = vld [vmem:[%s10 + $0x390] sm:$0xff]
    %v2862 = vld [vmem:[%s10 + $0x398] sm:$0xff]
    %v2863 = vld [vmem:[%s10 + $0x3a0] sm:$0xff]
    %v2864 = vld [vmem:[%s10 + $0x3a8] sm:$0xff]
    %v2865 = vld [vmem:[%s10 + $0x3b0] sm:$0xff]
    %v2866 = vld [vmem:[%s10 + $0x3b8] sm:$0xff]
    %v2867 = vlaneseq
    %v2868 = vshrl.u32 %v2867, 7
    %v2869 = vsub.s32 7, %v2868
    %v2870 = vrot.slane %v40, %v2869
    %v2871 = vsel %vm385, %v2791, 0
    %v2873 = vsel %vm385, %v2793, 0
    %v2875 = vsel %vm385, %v2795, 0
    %v2877 = vsel %vm385, %v2797, 0
    %v2879 = vsel %vm385, %v2799, 0
    %v2881 = vsel %vm385, %v2801, 0
    %v2883 = vsel %vm385, %v2803, 0
    %2885 = vmatprep.subr.mxu0 0.0
    %2886 = vmatpush1.msra.mxu0 %v2825
    %2887 = vmatprep.subr.mxu0 0.0
    %2888 = vmatpush1.msra.mxu0 %v2826
    %2889 = vmatprep.subr.mxu0 0.0
    %2890 = vmatpush1.msra.mxu0 %v2827
    %2891 = vmatprep.subr.mxu0 0.0
    %2892 = vmatpush1.msra.mxu0 %v2828
    %2893 = vmatprep.subr.mxu0 0.0
    %2894 = vmatpush1.msra.mxu0 %v2829
    %2895 = vmatprep.subr.mxu0 0.0
    %2896 = vmatpush1.msra.mxu0 %v2830
    %2897 = vmatprep.subr.mxu0 0.0
    %2898 = vmatpush1.msra.mxu0 %v2831
    %2899 = vmatprep.subr.mxu0 0.0
    %2900 = vmatpush1.msra.mxu0 %v2832
    %2901 = vmatprep.subr.mxu0 0.0
    %2902 = vmatpush1.msra.mxu0 %v2833
    %2903 = vmatprep.subr.mxu0 0.0
    %2904 = vmatpush1.msra.mxu0 %v2834
    %2905 = vmatprep.subr.mxu0 0.0
    %2906 = vmatpush1.msra.mxu0 %v2835
    %2907 = vmatprep.subr.mxu0 0.0
    %2908 = vmatpush1.msra.mxu0 %v2836
    %2909 = vmatprep.subr.mxu0 0.0
    %2910 = vmatpush1.msra.mxu0 %v2837
    %2911 = vmatprep.subr.mxu0 0.0
    %2912 = vmatpush1.msra.mxu0 %v2838
    %2913 = vmatprep.subr.mxu0 0.0
    %2914 = vmatpush1.msra.mxu0 %v2839
    %2915 = vmatprep.subr.mxu0 0.0
    %2916 = vmatpush1.msra.mxu0 %v2840
    %2917 = vmatprep.subr.mxu0 0.0
    %2918 = vmatpush1.msra.mxu0 %v2841
    %2919 = vmatprep.subr.mxu0 0.0
    %2920 = vmatpush1.msra.mxu0 %v2842
    %2921 = vmatprep.subr.mxu0 0.0
    %2922 = vmatpush1.msra.mxu0 %v2843
    %2923 = vmatprep.subr.mxu0 0.0
    %2924 = vmatpush1.msra.mxu0 %v2844
    %2925 = vmatprep.subr.mxu0 0.0
    %2926 = vmatpush1.msra.mxu0 %v2845
    %2927 = vmatprep.subr.mxu0 0.0
    %2928 = vmatpush1.msra.mxu0 %v2846
    %2929 = vmatprep.subr.mxu0 0.0
    %2930 = vmatpush1.msra.mxu0 %v2847
    %2931 = vmatprep.subr.mxu0 0.0
    %2932 = vmatpush1.msra.mxu0 %v2848
    %2933 = vmatprep.subr.mxu0 0.0
    %2934 = vmatpush1.msra.mxu0 %v2849
    %2935 = vmatprep.subr.mxu0 0.0
    %2936 = vmatpush1.msra.mxu0 %v2850
    %2937 = vmatprep.subr.mxu0 0.0
    %2938 = vmatpush1.msra.mxu0 %v2851
    %2939 = vmatprep.subr.mxu0 0.0
    %2940 = vmatpush1.msra.mxu0 %v2852
    %2941 = vmatprep.subr.mxu0 0.0
    %2942 = vmatpush1.msra.mxu0 %v2853
    %2943 = vmatprep.subr.mxu0 0.0
    %2944 = vmatpush1.msra.mxu0 %v2854
    %2945 = vmatprep.subr.mxu0 0.0
    %2946 = vmatpush1.msra.mxu0 %v2855
    %2947 = vmatprep.subr.mxu0 0.0
    %2948 = vmatpush1.msra.mxu0 %v2856
    %2949 = vmatprep.mubr.f32.mxu0 %v2818
    %2950 = vmatmul.mubr.f32.gmra.mrb[0].mxu0 %v2811
    %v2951 = vpop.f32.mrb[0].mxu0
    %v2952 = vadd.f32 %v2870, %v2951
    %v2953 = vpop.f32.mrb[0].mxu0
    %2954 = vmatprep.mubr.f32.mxu0 %v2819
    %2955 = vmatmul.mubr.f32.gmra.mrb[0].mxu0 %v2812
    %v2956 = vpop.f32.mrb[0].mxu0
    %v2957 = vadd.f32 %v2870, %v2956
    %v2958 = vpop.f32.mrb[0].mxu0
    %2959 = vmatprep.mubr.f32.mxu0 %v2820
    %2960 = vmatmul.mubr.f32.gmra.mrb[0].mxu0 %v2813
    %v2961 = vpop.f32.mrb[0].mxu0
    %v2962 = vadd.f32 %v2870, %v2961
    %v2963 = vpop.f32.mrb[0].mxu0
    %2964 = vmatprep.mubr.f32.mxu0 %v2821
    %2965 = vmatmul.mubr.f32.gmra.mrb[0].mxu0 %v2814
    %v2966 = vpop.f32.mrb[0].mxu0
    %v2967 = vadd.f32 %v2870, %v2966
    %v2968 = vpop.f32.mrb[0].mxu0
    %2969 = vmatprep.mubr.f32.mxu0 %v2822
    %2970 = vmatmul.mubr.f32.gmra.mrb[0].mxu0 %v2815
    %v2971 = vpop.f32.mrb[0].mxu0
    %v2972 = vadd.f32 %v2870, %v2971
    %v2973 = vpop.f32.mrb[0].mxu0
    %2974 = vmatprep.mubr.f32.mxu0 %v2823
    %2975 = vmatmul.mubr.f32.gmra.mrb[0].mxu0 %v2816
    %v2976 = vpop.f32.mrb[0].mxu0
    %v2977 = vadd.f32 %v2870, %v2976
    %v2978 = vpop.f32.mrb[0].mxu0
    %2979 = vmatprep.mubr.f32.mxu0 %v2824
    %2980 = vmatmul.mubr.f32.gmra.mrb[0].mxu0 %v2817
    %v2981 = vpop.f32.mrb[0].mxu0
    %v2982 = vadd.f32 %v2870, %v2981
    %v2983 = vpop.f32.mrb[0].mxu0
    %2984 = vdwg.mxu0
    %2985 = vmatprep.subr.mxu0 0.0
    %2986 = vmatpush1.msra.mxu0 %v2857
    %2987 = vmatprep.subr.mxu0 0.0
    %2988 = vmatpush1.msra.mxu0 %v2858
    %2989 = vmatprep.subr.mxu0 0.0
    %2990 = vmatpush1.msra.mxu0 %v2859
    %2991 = vmatprep.subr.mxu0 0.0
    %2992 = vmatpush1.msra.mxu0 %v2860
    %2993 = vmatprep.subr.mxu0 0.0
    %2994 = vmatpush1.msra.mxu0 %v2861
    %2995 = vmatprep.subr.mxu0 0.0
    %2996 = vmatpush1.msra.mxu0 %v2862
    %2997 = vmatprep.subr.mxu0 0.0
    %2998 = vmatpush1.msra.mxu0 %v2863
    %2999 = vmatprep.subr.mxu0 0.0
    %3000 = vmatpush1.msra.mxu0 %v2864
    %3001 = vmatprep.subr.mxu0 0.0
    %3002 = vmatpush1.msra.mxu0 %v2865
    %3003 = vmatprep.subr.mxu0 0.0
    %3004 = vmatpush1.msra.mxu0 %v2866
    %3005 = vmatprep.subr.mxu0 0.0
    %3006 = vmatpush1.msra.mxu0 0.0
    %3007 = vmatprep.subr.mxu0 0.0
    %3008 = vmatpush1.msra.mxu0 0.0
    %3009 = vmatprep.subr.mxu0 0.0
    %3010 = vmatpush1.msra.mxu0 0.0
    %3011 = vmatprep.subr.mxu0 0.0
    %3012 = vmatpush1.msra.mxu0 0.0
    %3013 = vmatprep.subr.mxu0 0.0
    %3014 = vmatpush1.msra.mxu0 0.0
    %3015 = vmatprep.subr.mxu0 0.0
    %3016 = vmatpush1.msra.mxu0 0.0
    %3017 = vmatprep.subr.mxu0 0.0
    %3018 = vmatpush1.msra.mxu0 0.0
    %3019 = vmatprep.subr.mxu0 0.0
    %3020 = vmatpush1.msra.mxu0 0.0
    %3021 = vmatprep.subr.mxu0 0.0
    %3022 = vmatpush1.msra.mxu0 0.0
    %3023 = vmatprep.subr.mxu0 0.0
    %3024 = vmatpush1.msra.mxu0 0.0
    %3025 = vmatprep.subr.mxu0 0.0
    %3026 = vmatpush1.msra.mxu0 0.0
    %3027 = vmatprep.subr.mxu0 0.0
    %3028 = vmatpush1.msra.mxu0 0.0
    %3029 = vmatprep.subr.mxu0 0.0
    %3030 = vmatpush1.msra.mxu0 0.0
    %3031 = vmatprep.subr.mxu0 0.0
    %3032 = vmatpush1.msra.mxu0 0.0
    %3033 = vmatprep.subr.mxu0 0.0
    %3034 = vmatpush1.msra.mxu0 0.0
    %3035 = vmatprep.subr.mxu0 0.0
    %3036 = vmatpush1.msra.mxu0 0.0
    %3037 = vmatprep.subr.mxu0 0.0
    %3038 = vmatpush1.msra.mxu0 0.0
    %3039 = vmatprep.subr.mxu0 0.0
    %3040 = vmatpush1.msra.mxu0 0.0
    %3041 = vmatprep.subr.mxu0 0.0
    %3042 = vmatpush1.msra.mxu0 0.0
    %3043 = vmatprep.subr.mxu0 0.0
    %3044 = vmatpush1.msra.mxu0 0.0
    %3045 = vmatprep.subr.mxu0 0.0
    %3046 = vmatpush1.msra.mxu0 0.0
    %3047 = vmatprep.subr.mxu0 0.0
    %3048 = vmatpush1.msra.mxu0 0.0
    %3049 = vmatprep.mubr.f32.mxu0 0.0
    %3050 = vmatmul.mubr.f32.gmra.mrb[0].mxu0 %v2871
    %v3051 = vpop.f32.mrb[0].mxu0
    %v3052 = vadd.f32 %v2952, %v3051
    %v3053 = vpop.f32.mrb[0].mxu0
    %3054 = vmatprep.mubr.f32.mxu0 0.0
    %3055 = vmatmul.mubr.f32.gmra.mrb[0].mxu0 %v2873
    %v3056 = vpop.f32.mrb[0].mxu0
    %v3057 = vadd.f32 %v2957, %v3056
    %v3058 = vpop.f32.mrb[0].mxu0
    %3059 = vmatprep.mubr.f32.mxu0 0.0
    %3060 = vmatmul.mubr.f32.gmra.mrb[0].mxu0 %v2875
    %v3061 = vpop.f32.mrb[0].mxu0
    %v3062 = vadd.f32 %v2962, %v3061
    %v3063 = vpop.f32.mrb[0].mxu0
    %3064 = vmatprep.mubr.f32.mxu0 0.0
    %3065 = vmatmul.mubr.f32.gmra.mrb[0].mxu0 %v2877
    %v3066 = vpop.f32.mrb[0].mxu0
    %v3067 = vadd.f32 %v2967, %v3066
    %v3068 = vpop.f32.mrb[0].mxu0
    %3069 = vmatprep.mubr.f32.mxu0 0.0
    %3070 = vmatmul.mubr.f32.gmra.mrb[0].mxu0 %v2879
    %v3071 = vpop.f32.mrb[0].mxu0
    %v3072 = vadd.f32 %v2972, %v3071
    %v3073 = vpop.f32.mrb[0].mxu0
    %3074 = vmatprep.mubr.f32.mxu0 0.0
    %3075 = vmatmul.mubr.f32.gmra.mrb[0].mxu0 %v2881
    %v3076 = vpop.f32.mrb[0].mxu0
    %v3077 = vadd.f32 %v2977, %v3076
    %v3078 = vpop.f32.mrb[0].mxu0
    %3079 = vmatprep.mubr.f32.mxu0 0.0
    %3080 = vmatmul.mubr.f32.gmra.mrb[0].mxu0 %v2883
    %v3081 = vpop.f32.mrb[0].mxu0
    %v3082 = vadd.f32 %v2982, %v3081
    %v3083 = vpop.f32.mrb[0].mxu0
    %3084 = vdwg.mxu0
    %v3085 = vsub.f32 0.0, %v3052
    %v3086 = vsub.f32 0.0, %v3057
    %v3087 = vsub.f32 0.0, %v3062
    %v3088 = vsub.f32 0.0, %v3067
    %v3089 = vsub.f32 0.0, %v3072
    %v3090 = vsub.f32 0.0, %v3077
    %v3091 = vsub.f32 0.0, %v3082
    %v3092 = vmul.f32 %v3085, 1.442695
    %v3093 = vpow.pop %v3092
    %v3094 = vmul.f32 %v3086, 1.442695
    %v3095 = vpow.pop %v3094
    %v3096 = vmul.f32 %v3087, 1.442695
    %v3097 = vpow.pop %v3096
    %v3098 = vmul.f32 %v3088, 1.442695
    %v3099 = vpow.pop %v3098
    %v3100 = vmul.f32 %v3089, 1.442695
    %v3101 = vpow.pop %v3100
    %v3102 = vmul.f32 %v3090, 1.442695
    %v3103 = vpow.pop %v3102
    %v3104 = vmul.f32 %v3091, 1.442695
    %v3105 = vpow.pop %v3104
    %v3106 = vadd.f32 %v3093, 1.0
    %v3107 = vadd.f32 %v3095, 1.0
    %v3108 = vadd.f32 %v3097, 1.0
    %v3109 = vadd.f32 %v3099, 1.0
    %v3110 = vadd.f32 %v3101, 1.0
    %v3111 = vadd.f32 %v3103, 1.0
    %v3112 = vadd.f32 %v3105, 1.0
    %v3113 = vrcp.pop %v3106
    %v3114 = vmul.f32 1.0, %v3113
    %v3115 = vrcp.pop %v3107
    %v3116 = vmul.f32 1.0, %v3115
    %v3117 = vrcp.pop %v3108
    %v3118 = vmul.f32 1.0, %v3117
    %v3119 = vrcp.pop %v3109
    %v3120 = vmul.f32 1.0, %v3119
    %v3121 = vrcp.pop %v3110
    %v3122 = vmul.f32 1.0, %v3121
    %v3123 = vrcp.pop %v3111
    %v3124 = vmul.f32 1.0, %v3123
    %v3125 = vrcp.pop %v3112
    %v3126 = vmul.f32 1.0, %v3125
    %3127 = vst.msk [vmem:[#allocation5] sm:$0xff] %vm50, %v3114
    %3128 = vst.msk [vmem:[#allocation5 + $0x8] sm:$0xff] %vm50, %v3116
    %3129 = vst.msk [vmem:[#allocation5 + $0x10] sm:$0xff] %vm50, %v3118
    %3130 = vst.msk [vmem:[#allocation5 + $0x18] sm:$0xff] %vm50, %v3120
    %3131 = vst.msk [vmem:[#allocation5 + $0x20] sm:$0xff] %vm50, %v3122
    %3132 = vst.msk [vmem:[#allocation5 + $0x28] sm:$0xff] %vm50, %v3124
    %3133 = vst.msk [vmem:[#allocation5 + $0x30] sm:$0xff] %vm50, %v3126
    // Predicated region
    $region46: #{vae_nn_fwd.1} parent=1 // pred_check
      _
    $region47: #{vae_nn_fwd.1} parent=1 // pred_check_branch
      %3135 = sbr.rel (0) target = $region49
    $region48: #{vae_nn_fwd.1} parent=1 // pred_region
      %s3137 = ssub.s32 896, 896
      %3138 = vsyncadd [#allocation6], %s3137
      %s3139 = sshll.u32 [#allocation5], 4
      %s3140 = int_to_ptr.vmem [resolvable:$true] %s3139
      %3145 = dma.vmem_to_hbm [thread:$0]  %s3140, 896, %s11, [#allocation6], 128, 128, 8
    $region49: #{vae_nn_fwd.1} parent=1 // pred_fallthru
      _
    // Predicated region
    $region50: #{vae_nn_fwd.1} parent=1 // pred_check
      _
    $region51: #{vae_nn_fwd.1} parent=1 // pred_check_branch
      %3147 = sbr.rel (0) target = $region53
    $region52: #{vae_nn_fwd.1} parent=1 // pred_region
      %3148 = dma.done [#allocation6], 896
    $region53: #{vae_nn_fwd.1} parent=1 // pred_fallthru
      _
    %3149 = vsyncpa [#allocation6], 1

</llo_original>
